<compile_context>
chip_gen: v7x
topology: tpu7x:2x2x1
jax: 0.10.0
libtpu: 0.0.40
codegen_flags: <defaults>
</compile_context>

<pallas_src>
import functools
import math

import jax
import jax.numpy as jnp
import numpy as np
from jax.experimental import pallas as pl
from jax.experimental.pallas import tpu as pltpu


# ----------------------------------------------------------------------------
# Bilinear interpolation matrix (align_corners=True), built on host with numpy.
# ----------------------------------------------------------------------------
def _interp_matrix(n_in: int, n_out: int) -> np.ndarray:
    """(n_out, n_in) linear interpolation matrix, align_corners=True."""
    a = np.zeros((n_out, n_in), np.float32)
    if n_in == 1:
        a[:, 0] = 1.0
        return a
    scale = (n_in - 1) / (n_out - 1)
    for i in range(n_out):
        src = i * scale
        i0 = min(int(np.floor(src)), n_in - 2)
        f = src - i0
        a[i, i0] += 1.0 - f
        a[i, i0 + 1] += f
    return a


# ----------------------------------------------------------------------------
# Fused kernel: upsample -> pad/concat -> (conv3x3+BN+ReLU) x 2, one image/step.
# ----------------------------------------------------------------------------
def _up_fused_kernel(wa_ref, s1_ref, t1_ref, wb_ref, s2_ref, t2_ref,
                     ah_ref, awt_ref, x1_ref, x2_ref, o_ref,
                     xcat_ref, mid_ref, *,
                     c_skip, c_up, c_in, c_mid, c_out,
                     h, w, hin, win, h_up, w_up, py0, px0):
    f32 = jnp.float32

    # ---- 0. zero-init padded scratches (conv halo + F.pad zeros) -----------
    xcat_ref[...] = jnp.zeros_like(xcat_ref)
    mid_ref[...] = jnp.zeros_like(mid_ref)

    # ---- 1. channel "concat": skip connection x2 occupies channels [0, c_skip)
    for ci in range(c_skip):
        xcat_ref[ci, 1:1 + h, 1:1 + w] = x2_ref[ci].astype(f32)

    # ---- 2. bilinear 2x upsample (align_corners=True) of x1, written after
    #         the skip channels at the F.pad (py0, px0) offset ----------------
    # Exact f32 separable interpolation via VPU rank-1 FMAs.
    # TODO(synk): for production H/W this should become an MXU matmul per channel.
    ah = ah_ref[...].astype(f32)      # (h_up, hin)
    awt = awt_ref[...].astype(f32)    # (win, w_up)
    for ci in range(c_up):
        xc = x1_ref[ci].astype(f32)                            # (hin, win)
        th = jnp.zeros((h_up, win), f32)
        for i in range(hin):                                   # H pass
            th = th + ah[:, i:i + 1] * xc[i:i + 1, :]
        yc = jnp.zeros((h_up, w_up), f32)
        for j in range(win):                                   # W pass
            yc = yc + th[:, j:j + 1] * awt[j:j + 1, :]
        xcat_ref[c_skip + ci,
                 1 + py0:1 + py0 + h_up,
                 1 + px0:1 + px0 + w_up] = yc

    # ---- 3/4. DoubleConv: conv3x3(pad=1, no bias) + folded BN + ReLU, twice --
    def conv_bn_relu(src_ref, ww_ref, s_ref, t_ref, ci_n, co_n, emit):
        # src_ref: VMEM (ci_n, h+2, w+2) f32, already zero-padded.
        # ww_ref:  SMEM (co_n*ci_n*9,) flattened OIHW weights.
        # One partial accumulator per (co, dy) -> independent FMA chains (ILP).
        accs = [[jnp.zeros((h, w), f32) for _ in range(3)] for _ in range(co_n)]
        for ci in range(ci_n):
            xc = src_ref[ci]                                   # (h+2, w+2) f32
            # hoist the 3 lane (dx) shifts: reused by every c_out and dy tap
            xsh = [xc[:, dxx:dxx + w] for dxx in range(3)]     # 3 x (h+2, w)
            for co in range(co_n):
                base = (co * ci_n + ci) * 9
                for dyy in range(3):
                    a = accs[co][dyy]
                    for dxx in range(3):
                        a = a + ww_ref[base + dyy * 3 + dxx] * xsh[dxx][dyy:dyy + h, :]
                    accs[co][dyy] = a
        for co in range(co_n):
            y = (accs[co][0] + accs[co][1] + accs[co][2]) * s_ref[co] + t_ref[co]
            emit(co, jnp.maximum(y, 0.0))

    def emit_mid(co, v):                       # mid activation stays in VMEM
        mid_ref[co, 1:1 + h, 1:1 + w] = v

    def emit_out(co, v):                       # only the final result hits HBM
        o_ref[co] = v.astype(o_ref.dtype)

    conv_bn_relu(xcat_ref, wa_ref, s1_ref, t1_ref, c_in, c_mid, emit_mid)
    conv_bn_relu(mid_ref, wb_ref, s2_ref, t2_ref, c_mid, c_out, emit_out)


# ----------------------------------------------------------------------------
# Wrapper: Up.forward (bilinear=True), eval-mode BatchNorm folded to scale/shift.
# ----------------------------------------------------------------------------
def _bn_fold(gamma, beta, mean, var, eps=1e-5):
    scale = gamma / jnp.sqrt(var + eps)
    return scale, beta - mean * scale


def up_forward(x1, x2, w1, bn1, w2, bn2):
    """Forward pass of `Up` (bilinear=True).

    x1: (N, C1, Hin, Win) decoder feature (to be 2x upsampled)
    x2: (N, C2, H, W)     skip connection
    w1: (C_mid, C1+C2, 3, 3), w2: (C_out, C_mid, 3, 3)
    bn1/bn2: (gamma, beta, running_mean, running_var)
    """
    # TODO(synk): BatchNorm is implemented in inference (eval) mode — running stats
    # folded into a per-channel scale/shift; training-mode batch statistics are not
    # computed.
    n, c_up, hin, win = x1.shape
    n2, c_skip, h, w = x2.shape
    assert n == n2
    c_in = c_skip + c_up
    c_mid = w1.shape[0]
    c_out = w2.shape[0]
    assert w1.shape == (c_mid, c_in, 3, 3) and w2.shape == (c_out, c_mid, 3, 3)

    h_up, w_up = 2 * hin, 2 * win
    dy, dx = h - h_up, w - w_up
    # F.pad with negative sizes would crop in PyTorch; not supported here.
    assert dy >= 0 and dx >= 0, "x2 must be at least as large as upsampled x1"
    py0, px0 = dy // 2, dx // 2

    ah = jnp.asarray(_interp_matrix(hin, h_up))                 # (h_up, hin)
    awt = jnp.asarray(_interp_matrix(win, w_up).T)              # (win, w_up)
    s1, t1 = _bn_fold(*bn1)
    s2, t2 = _bn_fold(*bn2)
    wa = w1.astype(jnp.float32).reshape(-1)                     # OIHW flattened
    wb = w2.astype(jnp.float32).reshape(-1)

    kernel = functools.partial(
        _up_fused_kernel,
        c_skip=c_skip, c_up=c_up, c_in=c_in, c_mid=c_mid, c_out=c_out,
        h=h, w=w, hin=hin, win=win, h_up=h_up, w_up=w_up, py0=py0, px0=px0)

    flops = (2 * n * c_up * (hin * h_up * win + win * h_up * w_up)     # upsample
             + 2 * n * c_mid * c_in * 9 * h * w                        # conv1
             + 2 * n * c_out * c_mid * 9 * h * w)                      # conv2
    bytes_acc = 4 * (x1.size + x2.size + n * c_out * h * w
                     + wa.size + wb.size + ah.size + awt.size + 2 * (c_mid + c_out))

    smem = pl.BlockSpec(memory_space=pltpu.MemorySpace.SMEM)
    return pl.pallas_call(
        kernel,
        out_shape=jax.ShapeDtypeStruct((n, c_out, h, w), x2.dtype),
        grid_spec=pltpu.PrefetchScalarGridSpec(
            num_scalar_prefetch=0,
            grid=(n,),
            in_specs=[
                smem,                                            # conv1 weights
                smem, smem,                                      # bn1 scale/shift
                smem,                                            # conv2 weights
                smem, smem,                                      # bn2 scale/shift
                pl.BlockSpec((h_up, hin), lambda b: (0, 0)),     # ah
                pl.BlockSpec((win, w_up), lambda b: (0, 0)),     # awt
                pl.BlockSpec((None, c_up, hin, win), lambda b: (b, 0, 0, 0)),   # x1
                pl.BlockSpec((None, c_skip, h, w), lambda b: (b, 0, 0, 0)),     # x2
            ],
            out_specs=pl.BlockSpec((None, c_out, h, w), lambda b: (b, 0, 0, 0)),
            scratch_shapes=[
                pltpu.VMEM((c_in, h + 2, w + 2), jnp.float32),   # padded concat input
                pltpu.VMEM((c_mid, h + 2, w + 2), jnp.float32),  # padded mid activation
            ],
        ),
        compiler_params=pltpu.CompilerParams(dimension_semantics=("parallel",)),
        cost_estimate=pl.CostEstimate(flops=flops, transcendentals=0,
                                      bytes_accessed=bytes_acc),
    )(wa, s1.astype(jnp.float32), t1.astype(jnp.float32),
      wb, s2.astype(jnp.float32), t2.astype(jnp.float32),
      ah, awt, x1, x2)


# ----------------------------------------------------------------------------
# Pure-JAX reference (independent implementation for the sanity check).
# ----------------------------------------------------------------------------
def _reference(x1, x2, w1, bn1, w2, bn2):
    n, c, hin, win = x1.shape
    ah = jnp.asarray(_interp_matrix(hin, 2 * hin))
    aw = jnp.asarray(_interp_matrix(win, 2 * win))
    x1u = jnp.einsum("yh,nchw,xw->ncyx", ah, x1, aw,
                     precision=jax.lax.Precision.HIGHEST)
    dy = x2.shape[2] - x1u.shape[2]
    dx = x2.shape[3] - x1u.shape[3]
    x1u = jnp.pad(x1u, ((0, 0), (0, 0),
                        (dy // 2, dy - dy // 2), (dx // 2, dx - dx // 2)))
    x = jnp.concatenate([x2, x1u], axis=1)

    def cbr(z, wgt, gamma, beta, mean, var, eps=1e-5):
        y = jax.lax.conv_general_dilated(
            z, wgt, window_strides=(1, 1), padding=((1, 1), (1, 1)),
            dimension_numbers=("NCHW", "OIHW", "NCHW"),
            precision=jax.lax.Precision.HIGHEST)
        y = (y - mean[None, :, None, None]) * (
            gamma[None, :, None, None] / jnp.sqrt(var[None, :, None, None] + eps))
        y = y + beta[None, :, None, None]
        return jnp.maximum(y, 0.0)

    y = cbr(x, w1, *bn1)
    return cbr(y, w2, *bn2)


if __name__ == "__main__":
    key = jax.random.PRNGKey(0)
    ks = jax.random.split(key, 6)

    # Up(in_channels=4, out_channels=4, bilinear=True):
    #   x1: (N, in_channels//2, H/2, W/2)   decoder feature (to be upsampled)
    #   x2: (N, in_channels//2, H,   W)     skip connection
    in_channels, out_channels = 4, 4
    mid_channels = in_channels // 2
    n, h, w = 2, 16, 16

    x1 = jax.random.normal(ks[0], (n, in_channels // 2, h // 2, w // 2), jnp.float32)
    x2 = jax.random.normal(ks[1], (n, in_channels // 2, h, w), jnp.float32)

    def conv_w(k, c_out, c_in):        # PyTorch Conv2d default init (uniform +/- 1/sqrt(fan_in))
        bound = 1.0 / math.sqrt(c_in * 9)
        return jax.random.uniform(k, (c_out, c_in, 3, 3), jnp.float32, -bound, bound)

    w1 = conv_w(ks[2], mid_channels, in_channels)    # DoubleConv conv1: 4 -> 2
    w2 = conv_w(ks[3], out_channels, mid_channels)   # DoubleConv conv2: 2 -> 4

    def bn_params(k, c):               # non-trivial eval-mode BN stats/affine
        kg, kb, km, kv = jax.random.split(k, 4)
        gamma = jax.random.uniform(kg, (c,), jnp.float32, 0.5, 1.5)
        beta = 0.1 * jax.random.normal(kb, (c,), jnp.float32)
        mean = 0.1 * jax.random.normal(km, (c,), jnp.float32)
        var = jax.random.uniform(kv, (c,), jnp.float32, 0.5, 1.5)
        return gamma, beta, mean, var

    bn1 = bn_params(ks[4], mid_channels)
    bn2 = bn_params(ks[5], out_channels)

    y = up_forward(x1, x2, w1, bn1, w2, bn2)
    y = jax.block_until_ready(y)

    y_ref = _reference(x1, x2, w1, bn1, w2, bn2)
    assert y.shape == (n, out_channels, h, w)
    err = float(jnp.max(jnp.abs(y - y_ref)))
    assert jnp.allclose(y, y_ref, atol=1e-4, rtol=1e-4), f"max abs err {err}"

    print("KERNEL_OK")
</pallas_src>

<mosaic_0001>
module attributes {stable_mosaic.version = 11 : i64} {
  func.func @_up_fused_kernel(%arg0: i32, %arg1: memref<72xf32, #tpu.memory_space<smem>>, %arg2: memref<2xf32, #tpu.memory_space<smem>>, %arg3: memref<2xf32, #tpu.memory_space<smem>>, %arg4: memref<72xf32, #tpu.memory_space<smem>>, %arg5: memref<4xf32, #tpu.memory_space<smem>>, %arg6: memref<4xf32, #tpu.memory_space<smem>>, %arg7: memref<16x8xf32, #tpu.memory_space<vmem>>, %arg8: memref<8x16xf32, #tpu.memory_space<vmem>>, %arg9: memref<1x2x8x8xf32, #tpu.memory_space<vmem>>, %arg10: memref<1x2x16x16xf32, #tpu.memory_space<vmem>>, %arg11: memref<1x4x16x16xf32, #tpu.memory_space<vmem>>, %arg12: memref<4x18x18xf32, #tpu.memory_space<vmem>>, %arg13: memref<2x18x18xf32, #tpu.memory_space<vmem>>) attributes {dimension_semantics = [#tpu.dimension_semantics<parallel>], iteration_bounds = array<i64: 2>, scalar_prefetch = 0 : i64, scratch_operands = 2 : i64, tpu.core_type = #tpu.core_type<tc>, window_params = [{transform_indices = @transform_0, window_bounds = array<i64: 72>}, {transform_indices = @transform_1, window_bounds = array<i64: 2>}, {transform_indices = @transform_2, window_bounds = array<i64: 2>}, {transform_indices = @transform_3, window_bounds = array<i64: 72>}, {transform_indices = @transform_4, window_bounds = array<i64: 4>}, {transform_indices = @transform_5, window_bounds = array<i64: 4>}, {pipeline_mode = #tpu.pipeline_mode<synchronous>, transform_indices = @transform_6, window_bounds = array<i64: 16, 8>}, {pipeline_mode = #tpu.pipeline_mode<synchronous>, transform_indices = @transform_7, window_bounds = array<i64: 8, 16>}, {transform_indices = @transform_8, window_bounds = array<i64: 1, 2, 8, 8>}, {transform_indices = @transform_9, window_bounds = array<i64: 1, 2, 16, 16>}, {transform_indices = @transform_10, window_bounds = array<i64: 1, 4, 16, 16>}]} {
    %cst = arith.constant 0.000000e+00 : f32
    %0 = vector.broadcast %cst : f32 to vector<4x18x18xf32>
    %c0 = arith.constant 0 : index
    %c0_0 = arith.constant 0 : index
    %c0_1 = arith.constant 0 : index
    %1 = vector.load %arg12[%c0, %c0_0, %c0_1] : memref<4x18x18xf32, #tpu.memory_space<vmem>>, vector<4x18x18xf32>
    tpu.vector_store %arg12[%c0, %c0_0, %c0_1], %0 {strides = array<i32>} : memref<4x18x18xf32, #tpu.memory_space<vmem>>, vector<4x18x18xf32>,
    %cst_2 = arith.constant 0.000000e+00 : f32
    %2 = vector.broadcast %cst_2 : f32 to vector<2x18x18xf32>
    %c0_3 = arith.constant 0 : index
    %c0_4 = arith.constant 0 : index
    %c0_5 = arith.constant 0 : index
    %3 = vector.load %arg13[%c0_3, %c0_4, %c0_5] : memref<2x18x18xf32, #tpu.memory_space<vmem>>, vector<2x18x18xf32>
    tpu.vector_store %arg13[%c0_3, %c0_4, %c0_5], %2 {strides = array<i32>} : memref<2x18x18xf32, #tpu.memory_space<vmem>>, vector<2x18x18xf32>,
    %c0_6 = arith.constant 0 : index
    %c0_7 = arith.constant 0 : index
    %c0_8 = arith.constant 0 : index
    %c0_9 = arith.constant 0 : index
    %4 = vector.load %arg10[%c0_6, %c0_7, %c0_8, %c0_9] : memref<1x2x16x16xf32, #tpu.memory_space<vmem>>, vector<1x1x16x16xf32>
    %5 = vector.shape_cast %4 : vector<1x1x16x16xf32> to vector<16x16xf32>
    %c0_10 = arith.constant 0 : index
    %c1 = arith.constant 1 : index
    %c1_11 = arith.constant 1 : index
    %6 = vector.load %arg12[%c0_10, %c1, %c1_11] : memref<4x18x18xf32, #tpu.memory_space<vmem>>, vector<1x16x16xf32>
    %7 = vector.shape_cast %6 : vector<1x16x16xf32> to vector<16x16xf32>
    %8 = vector.shape_cast %5 : vector<16x16xf32> to vector<1x16x16xf32>
    tpu.vector_store %arg12[%c0_10, %c1, %c1_11], %8 {strides = array<i32>} : memref<4x18x18xf32, #tpu.memory_space<vmem>>, vector<1x16x16xf32>,
    %c0_12 = arith.constant 0 : index
    %c1_13 = arith.constant 1 : index
    %c0_14 = arith.constant 0 : index
    %c0_15 = arith.constant 0 : index
    %9 = vector.load %arg10[%c0_12, %c1_13, %c0_14, %c0_15] : memref<1x2x16x16xf32, #tpu.memory_space<vmem>>, vector<1x1x16x16xf32>
    %10 = vector.shape_cast %9 : vector<1x1x16x16xf32> to vector<16x16xf32>
    %c1_16 = arith.constant 1 : index
    %c1_17 = arith.constant 1 : index
    %c1_18 = arith.constant 1 : index
    %11 = vector.load %arg12[%c1_16, %c1_17, %c1_18] : memref<4x18x18xf32, #tpu.memory_space<vmem>>, vector<1x16x16xf32>
    %12 = vector.shape_cast %11 : vector<1x16x16xf32> to vector<16x16xf32>
    %13 = vector.shape_cast %10 : vector<16x16xf32> to vector<1x16x16xf32>
    tpu.vector_store %arg12[%c1_16, %c1_17, %c1_18], %13 {strides = array<i32>} : memref<4x18x18xf32, #tpu.memory_space<vmem>>, vector<1x16x16xf32>,
    %c0_19 = arith.constant 0 : index
    %c0_20 = arith.constant 0 : index
    %14 = vector.load %arg7[%c0_19, %c0_20] : memref<16x8xf32, #tpu.memory_space<vmem>>, vector<16x8xf32>
    %c0_21 = arith.constant 0 : index
    %c0_22 = arith.constant 0 : index
    %15 = vector.load %arg8[%c0_21, %c0_22] : memref<8x16xf32, #tpu.memory_space<vmem>>, vector<8x16xf32>
    %c0_23 = arith.constant 0 : index
    %c0_24 = arith.constant 0 : index
    %c0_25 = arith.constant 0 : index
    %c0_26 = arith.constant 0 : index
    %16 = vector.load %arg9[%c0_23, %c0_24, %c0_25, %c0_26] : memref<1x2x8x8xf32, #tpu.memory_space<vmem>>, vector<1x1x8x8xf32>
    %17 = vector.shape_cast %16 : vector<1x1x8x8xf32> to vector<8x8xf32>
    %cst_27 = arith.constant 0.000000e+00 : f32
    %18 = vector.broadcast %cst_27 : f32 to vector<16x8xf32>
    %19 = vector.extract_strided_slice %14 {offsets = [0, 0], sizes = [16, 1], strides = [1, 1]} : vector<16x8xf32> to vector<16x1xf32>
    %20 = vector.extract_strided_slice %17 {offsets = [0, 0], sizes = [1, 8], strides = [1, 1]} : vector<8x8xf32> to vector<1x8xf32>
    %21 = vector.broadcast %19 : vector<16x1xf32> to vector<16x8xf32>
    %22 = vector.broadcast %20 : vector<1x8xf32> to vector<16x8xf32>
    %23 = arith.mulf %21, %22 : vector<16x8xf32>
    %24 = arith.addf %18, %23 : vector<16x8xf32>
    %25 = vector.extract_strided_slice %14 {offsets = [0, 1], sizes = [16, 1], strides = [1, 1]} : vector<16x8xf32> to vector<16x1xf32>
    %26 = vector.extract_strided_slice %17 {offsets = [1, 0], sizes = [1, 8], strides = [1, 1]} : vector<8x8xf32> to vector<1x8xf32>
    %27 = vector.broadcast %25 : vector<16x1xf32> to vector<16x8xf32>
    %28 = vector.broadcast %26 : vector<1x8xf32> to vector<16x8xf32>
    %29 = arith.mulf %27, %28 : vector<16x8xf32>
    %30 = arith.addf %24, %29 : vector<16x8xf32>
    %31 = vector.extract_strided_slice %14 {offsets = [0, 2], sizes = [16, 1], strides = [1, 1]} : vector<16x8xf32> to vector<16x1xf32>
    %32 = vector.extract_strided_slice %17 {offsets = [2, 0], sizes = [1, 8], strides = [1, 1]} : vector<8x8xf32> to vector<1x8xf32>
    %33 = vector.broadcast %31 : vector<16x1xf32> to vector<16x8xf32>
    %34 = vector.broadcast %32 : vector<1x8xf32> to vector<16x8xf32>
    %35 = arith.mulf %33, %34 : vector<16x8xf32>
    %36 = arith.addf %30, %35 : vector<16x8xf32>
    %37 = vector.extract_strided_slice %14 {offsets = [0, 3], sizes = [16, 1], strides = [1, 1]} : vector<16x8xf32> to vector<16x1xf32>
    %38 = vector.extract_strided_slice %17 {offsets = [3, 0], sizes = [1, 8], strides = [1, 1]} : vector<8x8xf32> to vector<1x8xf32>
    %39 = vector.broadcast %37 : vector<16x1xf32> to vector<16x8xf32>
    %40 = vector.broadcast %38 : vector<1x8xf32> to vector<16x8xf32>
    %41 = arith.mulf %39, %40 : vector<16x8xf32>
    %42 = arith.addf %36, %41 : vector<16x8xf32>
    %43 = vector.extract_strided_slice %14 {offsets = [0, 4], sizes = [16, 1], strides = [1, 1]} : vector<16x8xf32> to vector<16x1xf32>
    %44 = vector.extract_strided_slice %17 {offsets = [4, 0], sizes = [1, 8], strides = [1, 1]} : vector<8x8xf32> to vector<1x8xf32>
    %45 = vector.broadcast %43 : vector<16x1xf32> to vector<16x8xf32>
    %46 = vector.broadcast %44 : vector<1x8xf32> to vector<16x8xf32>
    %47 = arith.mulf %45, %46 : vector<16x8xf32>
    %48 = arith.addf %42, %47 : vector<16x8xf32>
    %49 = vector.extract_strided_slice %14 {offsets = [0, 5], sizes = [16, 1], strides = [1, 1]} : vector<16x8xf32> to vector<16x1xf32>
    %50 = vector.extract_strided_slice %17 {offsets = [5, 0], sizes = [1, 8], strides = [1, 1]} : vector<8x8xf32> to vector<1x8xf32>
    %51 = vector.broadcast %49 : vector<16x1xf32> to vector<16x8xf32>
    %52 = vector.broadcast %50 : vector<1x8xf32> to vector<16x8xf32>
    %53 = arith.mulf %51, %52 : vector<16x8xf32>
    %54 = arith.addf %48, %53 : vector<16x8xf32>
    %55 = vector.extract_strided_slice %14 {offsets = [0, 6], sizes = [16, 1], strides = [1, 1]} : vector<16x8xf32> to vector<16x1xf32>
    %56 = vector.extract_strided_slice %17 {offsets = [6, 0], sizes = [1, 8], strides = [1, 1]} : vector<8x8xf32> to vector<1x8xf32>
    %57 = vector.broadcast %55 : vector<16x1xf32> to vector<16x8xf32>
    %58 = vector.broadcast %56 : vector<1x8xf32> to vector<16x8xf32>
    %59 = arith.mulf %57, %58 : vector<16x8xf32>
    %60 = arith.addf %54, %59 : vector<16x8xf32>
    %61 = vector.extract_strided_slice %14 {offsets = [0, 7], sizes = [16, 1], strides = [1, 1]} : vector<16x8xf32> to vector<16x1xf32>
    %62 = vector.extract_strided_slice %17 {offsets = [7, 0], sizes = [1, 8], strides = [1, 1]} : vector<8x8xf32> to vector<1x8xf32>
    %63 = vector.broadcast %61 : vector<16x1xf32> to vector<16x8xf32>
    %64 = vector.broadcast %62 : vector<1x8xf32> to vector<16x8xf32>
    %65 = arith.mulf %63, %64 : vector<16x8xf32>
    %66 = arith.addf %60, %65 : vector<16x8xf32>
    %cst_28 = arith.constant 0.000000e+00 : f32
    %67 = vector.broadcast %cst_28 : f32 to vector<16x16xf32>
    %68 = vector.extract_strided_slice %66 {offsets = [0, 0], sizes = [16, 1], strides = [1, 1]} : vector<16x8xf32> to vector<16x1xf32>
    %69 = vector.extract_strided_slice %15 {offsets = [0, 0], sizes = [1, 16], strides = [1, 1]} : vector<8x16xf32> to vector<1x16xf32>
    %70 = vector.broadcast %68 : vector<16x1xf32> to vector<16x16xf32>
    %71 = vector.broadcast %69 : vector<1x16xf32> to vector<16x16xf32>
    %72 = arith.mulf %70, %71 : vector<16x16xf32>
    %73 = arith.addf %67, %72 : vector<16x16xf32>
    %74 = vector.extract_strided_slice %66 {offsets = [0, 1], sizes = [16, 1], strides = [1, 1]} : vector<16x8xf32> to vector<16x1xf32>
    %75 = vector.extract_strided_slice %15 {offsets = [1, 0], sizes = [1, 16], strides = [1, 1]} : vector<8x16xf32> to vector<1x16xf32>
    %76 = vector.broadcast %74 : vector<16x1xf32> to vector<16x16xf32>
    %77 = vector.broadcast %75 : vector<1x16xf32> to vector<16x16xf32>
    %78 = arith.mulf %76, %77 : vector<16x16xf32>
    %79 = arith.addf %73, %78 : vector<16x16xf32>
    %80 = vector.extract_strided_slice %66 {offsets = [0, 2], sizes = [16, 1], strides = [1, 1]} : vector<16x8xf32> to vector<16x1xf32>
    %81 = vector.extract_strided_slice %15 {offsets = [2, 0], sizes = [1, 16], strides = [1, 1]} : vector<8x16xf32> to vector<1x16xf32>
    %82 = vector.broadcast %80 : vector<16x1xf32> to vector<16x16xf32>
    %83 = vector.broadcast %81 : vector<1x16xf32> to vector<16x16xf32>
    %84 = arith.mulf %82, %83 : vector<16x16xf32>
    %85 = arith.addf %79, %84 : vector<16x16xf32>
    %86 = vector.extract_strided_slice %66 {offsets = [0, 3], sizes = [16, 1], strides = [1, 1]} : vector<16x8xf32> to vector<16x1xf32>
    %87 = vector.extract_strided_slice %15 {offsets = [3, 0], sizes = [1, 16], strides = [1, 1]} : vector<8x16xf32> to vector<1x16xf32>
    %88 = vector.broadcast %86 : vector<16x1xf32> to vector<16x16xf32>
    %89 = vector.broadcast %87 : vector<1x16xf32> to vector<16x16xf32>
    %90 = arith.mulf %88, %89 : vector<16x16xf32>
    %91 = arith.addf %85, %90 : vector<16x16xf32>
    %92 = vector.extract_strided_slice %66 {offsets = [0, 4], sizes = [16, 1], strides = [1, 1]} : vector<16x8xf32> to vector<16x1xf32>
    %93 = vector.extract_strided_slice %15 {offsets = [4, 0], sizes = [1, 16], strides = [1, 1]} : vector<8x16xf32> to vector<1x16xf32>
    %94 = vector.broadcast %92 : vector<16x1xf32> to vector<16x16xf32>
    %95 = vector.broadcast %93 : vector<1x16xf32> to vector<16x16xf32>
    %96 = arith.mulf %94, %95 : vector<16x16xf32>
    %97 = arith.addf %91, %96 : vector<16x16xf32>
    %98 = vector.extract_strided_slice %66 {offsets = [0, 5], sizes = [16, 1], strides = [1, 1]} : vector<16x8xf32> to vector<16x1xf32>
    %99 = vector.extract_strided_slice %15 {offsets = [5, 0], sizes = [1, 16], strides = [1, 1]} : vector<8x16xf32> to vector<1x16xf32>
    %100 = vector.broadcast %98 : vector<16x1xf32> to vector<16x16xf32>
    %101 = vector.broadcast %99 : vector<1x16xf32> to vector<16x16xf32>
    %102 = arith.mulf %100, %101 : vector<16x16xf32>
    %103 = arith.addf %97, %102 : vector<16x16xf32>
    %104 = vector.extract_strided_slice %66 {offsets = [0, 6], sizes = [16, 1], strides = [1, 1]} : vector<16x8xf32> to vector<16x1xf32>
    %105 = vector.extract_strided_slice %15 {offsets = [6, 0], sizes = [1, 16], strides = [1, 1]} : vector<8x16xf32> to vector<1x16xf32>
    %106 = vector.broadcast %104 : vector<16x1xf32> to vector<16x16xf32>
    %107 = vector.broadcast %105 : vector<1x16xf32> to vector<16x16xf32>
    %108 = arith.mulf %106, %107 : vector<16x16xf32>
    %109 = arith.addf %103, %108 : vector<16x16xf32>
    %110 = vector.extract_strided_slice %66 {offsets = [0, 7], sizes = [16, 1], strides = [1, 1]} : vector<16x8xf32> to vector<16x1xf32>
    %111 = vector.extract_strided_slice %15 {offsets = [7, 0], sizes = [1, 16], strides = [1, 1]} : vector<8x16xf32> to vector<1x16xf32>
    %112 = vector.broadcast %110 : vector<16x1xf32> to vector<16x16xf32>
    %113 = vector.broadcast %111 : vector<1x16xf32> to vector<16x16xf32>
    %114 = arith.mulf %112, %113 : vector<16x16xf32>
    %115 = arith.addf %109, %114 : vector<16x16xf32>
    %c2 = arith.constant 2 : index
    %c1_29 = arith.constant 1 : index
    %c1_30 = arith.constant 1 : index
    %116 = vector.load %arg12[%c2, %c1_29, %c1_30] : memref<4x18x18xf32, #tpu.memory_space<vmem>>, vector<1x16x16xf32>
    %117 = vector.shape_cast %116 : vector<1x16x16xf32> to vector<16x16xf32>
    %118 = vector.shape_cast %115 : vector<16x16xf32> to vector<1x16x16xf32>
    tpu.vector_store %arg12[%c2, %c1_29, %c1_30], %118 {strides = array<i32>} : memref<4x18x18xf32, #tpu.memory_space<vmem>>, vector<1x16x16xf32>,
    %c0_31 = arith.constant 0 : index
    %c1_32 = arith.constant 1 : index
    %c0_33 = arith.constant 0 : index
    %c0_34 = arith.constant 0 : index
    %119 = vector.load %arg9[%c0_31, %c1_32, %c0_33, %c0_34] : memref<1x2x8x8xf32, #tpu.memory_space<vmem>>, vector<1x1x8x8xf32>
    %120 = vector.shape_cast %119 : vector<1x1x8x8xf32> to vector<8x8xf32>
    %cst_35 = arith.constant 0.000000e+00 : f32
    %121 = vector.broadcast %cst_35 : f32 to vector<16x8xf32>
    %122 = vector.extract_strided_slice %14 {offsets = [0, 0], sizes = [16, 1], strides = [1, 1]} : vector<16x8xf32> to vector<16x1xf32>
    %123 = vector.extract_strided_slice %120 {offsets = [0, 0], sizes = [1, 8], strides = [1, 1]} : vector<8x8xf32> to vector<1x8xf32>
    %124 = vector.broadcast %122 : vector<16x1xf32> to vector<16x8xf32>
    %125 = vector.broadcast %123 : vector<1x8xf32> to vector<16x8xf32>
    %126 = arith.mulf %124, %125 : vector<16x8xf32>
    %127 = arith.addf %121, %126 : vector<16x8xf32>
    %128 = vector.extract_strided_slice %14 {offsets = [0, 1], sizes = [16, 1], strides = [1, 1]} : vector<16x8xf32> to vector<16x1xf32>
    %129 = vector.extract_strided_slice %120 {offsets = [1, 0], sizes = [1, 8], strides = [1, 1]} : vector<8x8xf32> to vector<1x8xf32>
    %130 = vector.broadcast %128 : vector<16x1xf32> to vector<16x8xf32>
    %131 = vector.broadcast %129 : vector<1x8xf32> to vector<16x8xf32>
    %132 = arith.mulf %130, %131 : vector<16x8xf32>
    %133 = arith.addf %127, %132 : vector<16x8xf32>
    %134 = vector.extract_strided_slice %14 {offsets = [0, 2], sizes = [16, 1], strides = [1, 1]} : vector<16x8xf32> to vector<16x1xf32>
    %135 = vector.extract_strided_slice %120 {offsets = [2, 0], sizes = [1, 8], strides = [1, 1]} : vector<8x8xf32> to vector<1x8xf32>
    %136 = vector.broadcast %134 : vector<16x1xf32> to vector<16x8xf32>
    %137 = vector.broadcast %135 : vector<1x8xf32> to vector<16x8xf32>
    %138 = arith.mulf %136, %137 : vector<16x8xf32>
    %139 = arith.addf %133, %138 : vector<16x8xf32>
    %140 = vector.extract_strided_slice %14 {offsets = [0, 3], sizes = [16, 1], strides = [1, 1]} : vector<16x8xf32> to vector<16x1xf32>
    %141 = vector.extract_strided_slice %120 {offsets = [3, 0], sizes = [1, 8], strides = [1, 1]} : vector<8x8xf32> to vector<1x8xf32>
    %142 = vector.broadcast %140 : vector<16x1xf32> to vector<16x8xf32>
    %143 = vector.broadcast %141 : vector<1x8xf32> to vector<16x8xf32>
    %144 = arith.mulf %142, %143 : vector<16x8xf32>
    %145 = arith.addf %139, %144 : vector<16x8xf32>
    %146 = vector.extract_strided_slice %14 {offsets = [0, 4], sizes = [16, 1], strides = [1, 1]} : vector<16x8xf32> to vector<16x1xf32>
    %147 = vector.extract_strided_slice %120 {offsets = [4, 0], sizes = [1, 8], strides = [1, 1]} : vector<8x8xf32> to vector<1x8xf32>
    %148 = vector.broadcast %146 : vector<16x1xf32> to vector<16x8xf32>
    %149 = vector.broadcast %147 : vector<1x8xf32> to vector<16x8xf32>
    %150 = arith.mulf %148, %149 : vector<16x8xf32>
    %151 = arith.addf %145, %150 : vector<16x8xf32>
    %152 = vector.extract_strided_slice %14 {offsets = [0, 5], sizes = [16, 1], strides = [1, 1]} : vector<16x8xf32> to vector<16x1xf32>
    %153 = vector.extract_strided_slice %120 {offsets = [5, 0], sizes = [1, 8], strides = [1, 1]} : vector<8x8xf32> to vector<1x8xf32>
    %154 = vector.broadcast %152 : vector<16x1xf32> to vector<16x8xf32>
    %155 = vector.broadcast %153 : vector<1x8xf32> to vector<16x8xf32>
    %156 = arith.mulf %154, %155 : vector<16x8xf32>
    %157 = arith.addf %151, %156 : vector<16x8xf32>
    %158 = vector.extract_strided_slice %14 {offsets = [0, 6], sizes = [16, 1], strides = [1, 1]} : vector<16x8xf32> to vector<16x1xf32>
    %159 = vector.extract_strided_slice %120 {offsets = [6, 0], sizes = [1, 8], strides = [1, 1]} : vector<8x8xf32> to vector<1x8xf32>
    %160 = vector.broadcast %158 : vector<16x1xf32> to vector<16x8xf32>
    %161 = vector.broadcast %159 : vector<1x8xf32> to vector<16x8xf32>
    %162 = arith.mulf %160, %161 : vector<16x8xf32>
    %163 = arith.addf %157, %162 : vector<16x8xf32>
    %164 = vector.extract_strided_slice %14 {offsets = [0, 7], sizes = [16, 1], strides = [1, 1]} : vector<16x8xf32> to vector<16x1xf32>
    %165 = vector.extract_strided_slice %120 {offsets = [7, 0], sizes = [1, 8], strides = [1, 1]} : vector<8x8xf32> to vector<1x8xf32>
    %166 = vector.broadcast %164 : vector<16x1xf32> to vector<16x8xf32>
    %167 = vector.broadcast %165 : vector<1x8xf32> to vector<16x8xf32>
    %168 = arith.mulf %166, %167 : vector<16x8xf32>
    %169 = arith.addf %163, %168 : vector<16x8xf32>
    %cst_36 = arith.constant 0.000000e+00 : f32
    %170 = vector.broadcast %cst_36 : f32 to vector<16x16xf32>
    %171 = vector.extract_strided_slice %169 {offsets = [0, 0], sizes = [16, 1], strides = [1, 1]} : vector<16x8xf32> to vector<16x1xf32>
    %172 = vector.extract_strided_slice %15 {offsets = [0, 0], sizes = [1, 16], strides = [1, 1]} : vector<8x16xf32> to vector<1x16xf32>
    %173 = vector.broadcast %171 : vector<16x1xf32> to vector<16x16xf32>
    %174 = vector.broadcast %172 : vector<1x16xf32> to vector<16x16xf32>
    %175 = arith.mulf %173, %174 : vector<16x16xf32>
    %176 = arith.addf %170, %175 : vector<16x16xf32>
    %177 = vector.extract_strided_slice %169 {offsets = [0, 1], sizes = [16, 1], strides = [1, 1]} : vector<16x8xf32> to vector<16x1xf32>
    %178 = vector.extract_strided_slice %15 {offsets = [1, 0], sizes = [1, 16], strides = [1, 1]} : vector<8x16xf32> to vector<1x16xf32>
    %179 = vector.broadcast %177 : vector<16x1xf32> to vector<16x16xf32>
    %180 = vector.broadcast %178 : vector<1x16xf32> to vector<16x16xf32>
    %181 = arith.mulf %179, %180 : vector<16x16xf32>
    %182 = arith.addf %176, %181 : vector<16x16xf32>
    %183 = vector.extract_strided_slice %169 {offsets = [0, 2], sizes = [16, 1], strides = [1, 1]} : vector<16x8xf32> to vector<16x1xf32>
    %184 = vector.extract_strided_slice %15 {offsets = [2, 0], sizes = [1, 16], strides = [1, 1]} : vector<8x16xf32> to vector<1x16xf32>
    %185 = vector.broadcast %183 : vector<16x1xf32> to vector<16x16xf32>
    %186 = vector.broadcast %184 : vector<1x16xf32> to vector<16x16xf32>
    %187 = arith.mulf %185, %186 : vector<16x16xf32>
    %188 = arith.addf %182, %187 : vector<16x16xf32>
    %189 = vector.extract_strided_slice %169 {offsets = [0, 3], sizes = [16, 1], strides = [1, 1]} : vector<16x8xf32> to vector<16x1xf32>
    %190 = vector.extract_strided_slice %15 {offsets = [3, 0], sizes = [1, 16], strides = [1, 1]} : vector<8x16xf32> to vector<1x16xf32>
    %191 = vector.broadcast %189 : vector<16x1xf32> to vector<16x16xf32>
    %192 = vector.broadcast %190 : vector<1x16xf32> to vector<16x16xf32>
    %193 = arith.mulf %191, %192 : vector<16x16xf32>
    %194 = arith.addf %188, %193 : vector<16x16xf32>
    %195 = vector.extract_strided_slice %169 {offsets = [0, 4], sizes = [16, 1], strides = [1, 1]} : vector<16x8xf32> to vector<16x1xf32>
    %196 = vector.extract_strided_slice %15 {offsets = [4, 0], sizes = [1, 16], strides = [1, 1]} : vector<8x16xf32> to vector<1x16xf32>
    %197 = vector.broadcast %195 : vector<16x1xf32> to vector<16x16xf32>
    %198 = vector.broadcast %196 : vector<1x16xf32> to vector<16x16xf32>
    %199 = arith.mulf %197, %198 : vector<16x16xf32>
    %200 = arith.addf %194, %199 : vector<16x16xf32>
    %201 = vector.extract_strided_slice %169 {offsets = [0, 5], sizes = [16, 1], strides = [1, 1]} : vector<16x8xf32> to vector<16x1xf32>
    %202 = vector.extract_strided_slice %15 {offsets = [5, 0], sizes = [1, 16], strides = [1, 1]} : vector<8x16xf32> to vector<1x16xf32>
    %203 = vector.broadcast %201 : vector<16x1xf32> to vector<16x16xf32>
    %204 = vector.broadcast %202 : vector<1x16xf32> to vector<16x16xf32>
    %205 = arith.mulf %203, %204 : vector<16x16xf32>
    %206 = arith.addf %200, %205 : vector<16x16xf32>
    %207 = vector.extract_strided_slice %169 {offsets = [0, 6], sizes = [16, 1], strides = [1, 1]} : vector<16x8xf32> to vector<16x1xf32>
    %208 = vector.extract_strided_slice %15 {offsets = [6, 0], sizes = [1, 16], strides = [1, 1]} : vector<8x16xf32> to vector<1x16xf32>
    %209 = vector.broadcast %207 : vector<16x1xf32> to vector<16x16xf32>
    %210 = vector.broadcast %208 : vector<1x16xf32> to vector<16x16xf32>
    %211 = arith.mulf %209, %210 : vector<16x16xf32>
    %212 = arith.addf %206, %211 : vector<16x16xf32>
    %213 = vector.extract_strided_slice %169 {offsets = [0, 7], sizes = [16, 1], strides = [1, 1]} : vector<16x8xf32> to vector<16x1xf32>
    %214 = vector.extract_strided_slice %15 {offsets = [7, 0], sizes = [1, 16], strides = [1, 1]} : vector<8x16xf32> to vector<1x16xf32>
    %215 = vector.broadcast %213 : vector<16x1xf32> to vector<16x16xf32>
    %216 = vector.broadcast %214 : vector<1x16xf32> to vector<16x16xf32>
    %217 = arith.mulf %215, %216 : vector<16x16xf32>
    %218 = arith.addf %212, %217 : vector<16x16xf32>
    %c3 = arith.constant 3 : index
    %c1_37 = arith.constant 1 : index
    %c1_38 = arith.constant 1 : index
    %219 = vector.load %arg12[%c3, %c1_37, %c1_38] : memref<4x18x18xf32, #tpu.memory_space<vmem>>, vector<1x16x16xf32>
    %220 = vector.shape_cast %219 : vector<1x16x16xf32> to vector<16x16xf32>
    %221 = vector.shape_cast %218 : vector<16x16xf32> to vector<1x16x16xf32>
    tpu.vector_store %arg12[%c3, %c1_37, %c1_38], %221 {strides = array<i32>} : memref<4x18x18xf32, #tpu.memory_space<vmem>>, vector<1x16x16xf32>,
    %cst_39 = arith.constant 0.000000e+00 : f32
    %222 = vector.broadcast %cst_39 : f32 to vector<16x16xf32>
    %cst_40 = arith.constant 0.000000e+00 : f32
    %223 = vector.broadcast %cst_40 : f32 to vector<16x16xf32>
    %cst_41 = arith.constant 0.000000e+00 : f32
    %224 = vector.broadcast %cst_41 : f32 to vector<16x16xf32>
    %cst_42 = arith.constant 0.000000e+00 : f32
    %225 = vector.broadcast %cst_42 : f32 to vector<16x16xf32>
    %cst_43 = arith.constant 0.000000e+00 : f32
    %226 = vector.broadcast %cst_43 : f32 to vector<16x16xf32>
    %cst_44 = arith.constant 0.000000e+00 : f32
    %227 = vector.broadcast %cst_44 : f32 to vector<16x16xf32>
    %c0_45 = arith.constant 0 : index
    %c0_46 = arith.constant 0 : index
    %c0_47 = arith.constant 0 : index
    %228 = vector.load %arg12[%c0_45, %c0_46, %c0_47] : memref<4x18x18xf32, #tpu.memory_space<vmem>>, vector<1x18x18xf32>
    %229 = vector.shape_cast %228 : vector<1x18x18xf32> to vector<18x18xf32>
    %230 = vector.extract_strided_slice %229 {offsets = [0, 0], sizes = [18, 16], strides = [1, 1]} : vector<18x18xf32> to vector<18x16xf32>
    %231 = vector.extract_strided_slice %229 {offsets = [0, 1], sizes = [18, 16], strides = [1, 1]} : vector<18x18xf32> to vector<18x16xf32>
    %232 = vector.extract_strided_slice %229 {offsets = [0, 2], sizes = [18, 16], strides = [1, 1]} : vector<18x18xf32> to vector<18x16xf32>
    %c0_48 = arith.constant 0 : index
    %233 = memref.load %arg1[%c0_48] : memref<72xf32, #tpu.memory_space<smem>>
    %234 = vector.extract_strided_slice %230 {offsets = [0, 0], sizes = [16, 16], strides = [1, 1]} : vector<18x16xf32> to vector<16x16xf32>
    %235 = vector.broadcast %233 : f32 to vector<16x16xf32>
    %236 = arith.mulf %235, %234 : vector<16x16xf32>
    %237 = arith.addf %222, %236 : vector<16x16xf32>
    %c1_49 = arith.constant 1 : index
    %238 = memref.load %arg1[%c1_49] : memref<72xf32, #tpu.memory_space<smem>>
    %239 = vector.extract_strided_slice %231 {offsets = [0, 0], sizes = [16, 16], strides = [1, 1]} : vector<18x16xf32> to vector<16x16xf32>
    %240 = vector.broadcast %238 : f32 to vector<16x16xf32>
    %241 = arith.mulf %240, %239 : vector<16x16xf32>
    %242 = arith.addf %237, %241 : vector<16x16xf32>
    %c2_50 = arith.constant 2 : index
    %243 = memref.load %arg1[%c2_50] : memref<72xf32, #tpu.memory_space<smem>>
    %244 = vector.extract_strided_slice %232 {offsets = [0, 0], sizes = [16, 16], strides = [1, 1]} : vector<18x16xf32> to vector<16x16xf32>
    %245 = vector.broadcast %243 : f32 to vector<16x16xf32>
    %246 = arith.mulf %245, %244 : vector<16x16xf32>
    %247 = arith.addf %242, %246 : vector<16x16xf32>
    %c3_51 = arith.constant 3 : index
    %248 = memref.load %arg1[%c3_51] : memref<72xf32, #tpu.memory_space<smem>>
    %249 = vector.extract_strided_slice %230 {offsets = [1, 0], sizes = [16, 16], strides = [1, 1]} : vector<18x16xf32> to vector<16x16xf32>
    %250 = vector.broadcast %248 : f32 to vector<16x16xf32>
    %251 = arith.mulf %250, %249 : vector<16x16xf32>
    %252 = arith.addf %223, %251 : vector<16x16xf32>
    %c4 = arith.constant 4 : index
    %253 = memref.load %arg1[%c4] : memref<72xf32, #tpu.memory_space<smem>>
    %254 = vector.extract_strided_slice %231 {offsets = [1, 0], sizes = [16, 16], strides = [1, 1]} : vector<18x16xf32> to vector<16x16xf32>
    %255 = vector.broadcast %253 : f32 to vector<16x16xf32>
    %256 = arith.mulf %255, %254 : vector<16x16xf32>
    %257 = arith.addf %252, %256 : vector<16x16xf32>
    %c5 = arith.constant 5 : index
    %258 = memref.load %arg1[%c5] : memref<72xf32, #tpu.memory_space<smem>>
    %259 = vector.extract_strided_slice %232 {offsets = [1, 0], sizes = [16, 16], strides = [1, 1]} : vector<18x16xf32> to vector<16x16xf32>
    %260 = vector.broadcast %258 : f32 to vector<16x16xf32>
    %261 = arith.mulf %260, %259 : vector<16x16xf32>
    %262 = arith.addf %257, %261 : vector<16x16xf32>
    %c6 = arith.constant 6 : index
    %263 = memref.load %arg1[%c6] : memref<72xf32, #tpu.memory_space<smem>>
    %264 = vector.extract_strided_slice %230 {offsets = [2, 0], sizes = [16, 16], strides = [1, 1]} : vector<18x16xf32> to vector<16x16xf32>
    %265 = vector.broadcast %263 : f32 to vector<16x16xf32>
    %266 = arith.mulf %265, %264 : vector<16x16xf32>
    %267 = arith.addf %224, %266 : vector<16x16xf32>
    %c7 = arith.constant 7 : index
    %268 = memref.load %arg1[%c7] : memref<72xf32, #tpu.memory_space<smem>>
    %269 = vector.extract_strided_slice %231 {offsets = [2, 0], sizes = [16, 16], strides = [1, 1]} : vector<18x16xf32> to vector<16x16xf32>
    %270 = vector.broadcast %268 : f32 to vector<16x16xf32>
    %271 = arith.mulf %270, %269 : vector<16x16xf32>
    %272 = arith.addf %267, %271 : vector<16x16xf32>
    %c8 = arith.constant 8 : index
    %273 = memref.load %arg1[%c8] : memref<72xf32, #tpu.memory_space<smem>>
    %274 = vector.extract_strided_slice %232 {offsets = [2, 0], sizes = [16, 16], strides = [1, 1]} : vector<18x16xf32> to vector<16x16xf32>
    %275 = vector.broadcast %273 : f32 to vector<16x16xf32>
    %276 = arith.mulf %275, %274 : vector<16x16xf32>
    %277 = arith.addf %272, %276 : vector<16x16xf32>
    %c36 = arith.constant 36 : index
    %278 = memref.load %arg1[%c36] : memref<72xf32, #tpu.memory_space<smem>>
    %279 = vector.extract_strided_slice %230 {offsets = [0, 0], sizes = [16, 16], strides = [1, 1]} : vector<18x16xf32> to vector<16x16xf32>
    %280 = vector.broadcast %278 : f32 to vector<16x16xf32>
    %281 = arith.mulf %280, %279 : vector<16x16xf32>
    %282 = arith.addf %225, %281 : vector<16x16xf32>
    %c37 = arith.constant 37 : index
    %283 = memref.load %arg1[%c37] : memref<72xf32, #tpu.memory_space<smem>>
    %284 = vector.extract_strided_slice %231 {offsets = [0, 0], sizes = [16, 16], strides = [1, 1]} : vector<18x16xf32> to vector<16x16xf32>
    %285 = vector.broadcast %283 : f32 to vector<16x16xf32>
    %286 = arith.mulf %285, %284 : vector<16x16xf32>
    %287 = arith.addf %282, %286 : vector<16x16xf32>
    %c38 = arith.constant 38 : index
    %288 = memref.load %arg1[%c38] : memref<72xf32, #tpu.memory_space<smem>>
    %289 = vector.extract_strided_slice %232 {offsets = [0, 0], sizes = [16, 16], strides = [1, 1]} : vector<18x16xf32> to vector<16x16xf32>
    %290 = vector.broadcast %288 : f32 to vector<16x16xf32>
    %291 = arith.mulf %290, %289 : vector<16x16xf32>
    %292 = arith.addf %287, %291 : vector<16x16xf32>
    %c39 = arith.constant 39 : index
    %293 = memref.load %arg1[%c39] : memref<72xf32, #tpu.memory_space<smem>>
    %294 = vector.extract_strided_slice %230 {offsets = [1, 0], sizes = [16, 16], strides = [1, 1]} : vector<18x16xf32> to vector<16x16xf32>
    %295 = vector.broadcast %293 : f32 to vector<16x16xf32>
    %296 = arith.mulf %295, %294 : vector<16x16xf32>
    %297 = arith.addf %226, %296 : vector<16x16xf32>
    %c40 = arith.constant 40 : index
    %298 = memref.load %arg1[%c40] : memref<72xf32, #tpu.memory_space<smem>>
    %299 = vector.extract_strided_slice %231 {offsets = [1, 0], sizes = [16, 16], strides = [1, 1]} : vector<18x16xf32> to vector<16x16xf32>
    %300 = vector.broadcast %298 : f32 to vector<16x16xf32>
    %301 = arith.mulf %300, %299 : vector<16x16xf32>
    %302 = arith.addf %297, %301 : vector<16x16xf32>
    %c41 = arith.constant 41 : index
    %303 = memref.load %arg1[%c41] : memref<72xf32, #tpu.memory_space<smem>>
    %304 = vector.extract_strided_slice %232 {offsets = [1, 0], sizes = [16, 16], strides = [1, 1]} : vector<18x16xf32> to vector<16x16xf32>
    %305 = vector.broadcast %303 : f32 to vector<16x16xf32>
    %306 = arith.mulf %305, %304 : vector<16x16xf32>
    %307 = arith.addf %302, %306 : vector<16x16xf32>
    %c42 = arith.constant 42 : index
    %308 = memref.load %arg1[%c42] : memref<72xf32, #tpu.memory_space<smem>>
    %309 = vector.extract_strided_slice %230 {offsets = [2, 0], sizes = [16, 16], strides = [1, 1]} : vector<18x16xf32> to vector<16x16xf32>
    %310 = vector.broadcast %308 : f32 to vector<16x16xf32>
    %311 = arith.mulf %310, %309 : vector<16x16xf32>
    %312 = arith.addf %227, %311 : vector<16x16xf32>
    %c43 = arith.constant 43 : index
    %313 = memref.load %arg1[%c43] : memref<72xf32, #tpu.memory_space<smem>>
    %314 = vector.extract_strided_slice %231 {offsets = [2, 0], sizes = [16, 16], strides = [1, 1]} : vector<18x16xf32> to vector<16x16xf32>
    %315 = vector.broadcast %313 : f32 to vector<16x16xf32>
    %316 = arith.mulf %315, %314 : vector<16x16xf32>
    %317 = arith.addf %312, %316 : vector<16x16xf32>
    %c44 = arith.constant 44 : index
    %318 = memref.load %arg1[%c44] : memref<72xf32, #tpu.memory_space<smem>>
    %319 = vector.extract_strided_slice %232 {offsets = [2, 0], sizes = [16, 16], strides = [1, 1]} : vector<18x16xf32> to vector<16x16xf32>
    %320 = vector.broadcast %318 : f32 to vector<16x16xf32>
    %321 = arith.mulf %320, %319 : vector<16x16xf32>
    %322 = arith.addf %317, %321 : vector<16x16xf32>
    %c1_52 = arith.constant 1 : index
    %c0_53 = arith.constant 0 : index
    %c0_54 = arith.constant 0 : index
    %323 = vector.load %arg12[%c1_52, %c0_53, %c0_54] : memref<4x18x18xf32, #tpu.memory_space<vmem>>, vector<1x18x18xf32>
    %324 = vector.shape_cast %323 : vector<1x18x18xf32> to vector<18x18xf32>
    %325 = vector.extract_strided_slice %324 {offsets = [0, 0], sizes = [18, 16], strides = [1, 1]} : vector<18x18xf32> to vector<18x16xf32>
    %326 = vector.extract_strided_slice %324 {offsets = [0, 1], sizes = [18, 16], strides = [1, 1]} : vector<18x18xf32> to vector<18x16xf32>
    %327 = vector.extract_strided_slice %324 {offsets = [0, 2], sizes = [18, 16], strides = [1, 1]} : vector<18x18xf32> to vector<18x16xf32>
    %c9 = arith.constant 9 : index
    %328 = memref.load %arg1[%c9] : memref<72xf32, #tpu.memory_space<smem>>
    %329 = vector.extract_strided_slice %325 {offsets = [0, 0], sizes = [16, 16], strides = [1, 1]} : vector<18x16xf32> to vector<16x16xf32>
    %330 = vector.broadcast %328 : f32 to vector<16x16xf32>
    %331 = arith.mulf %330, %329 : vector<16x16xf32>
    %332 = arith.addf %247, %331 : vector<16x16xf32>
    %c10 = arith.constant 10 : index
    %333 = memref.load %arg1[%c10] : memref<72xf32, #tpu.memory_space<smem>>
    %334 = vector.extract_strided_slice %326 {offsets = [0, 0], sizes = [16, 16], strides = [1, 1]} : vector<18x16xf32> to vector<16x16xf32>
    %335 = vector.broadcast %333 : f32 to vector<16x16xf32>
    %336 = arith.mulf %335, %334 : vector<16x16xf32>
    %337 = arith.addf %332, %336 : vector<16x16xf32>
    %c11 = arith.constant 11 : index
    %338 = memref.load %arg1[%c11] : memref<72xf32, #tpu.memory_space<smem>>
    %339 = vector.extract_strided_slice %327 {offsets = [0, 0], sizes = [16, 16], strides = [1, 1]} : vector<18x16xf32> to vector<16x16xf32>
    %340 = vector.broadcast %338 : f32 to vector<16x16xf32>
    %341 = arith.mulf %340, %339 : vector<16x16xf32>
    %342 = arith.addf %337, %341 : vector<16x16xf32>
    %c12 = arith.constant 12 : index
    %343 = memref.load %arg1[%c12] : memref<72xf32, #tpu.memory_space<smem>>
    %344 = vector.extract_strided_slice %325 {offsets = [1, 0], sizes = [16, 16], strides = [1, 1]} : vector<18x16xf32> to vector<16x16xf32>
    %345 = vector.broadcast %343 : f32 to vector<16x16xf32>
    %346 = arith.mulf %345, %344 : vector<16x16xf32>
    %347 = arith.addf %262, %346 : vector<16x16xf32>
    %c13 = arith.constant 13 : index
    %348 = memref.load %arg1[%c13] : memref<72xf32, #tpu.memory_space<smem>>
    %349 = vector.extract_strided_slice %326 {offsets = [1, 0], sizes = [16, 16], strides = [1, 1]} : vector<18x16xf32> to vector<16x16xf32>
    %350 = vector.broadcast %348 : f32 to vector<16x16xf32>
    %351 = arith.mulf %350, %349 : vector<16x16xf32>
    %352 = arith.addf %347, %351 : vector<16x16xf32>
    %c14 = arith.constant 14 : index
    %353 = memref.load %arg1[%c14] : memref<72xf32, #tpu.memory_space<smem>>
    %354 = vector.extract_strided_slice %327 {offsets = [1, 0], sizes = [16, 16], strides = [1, 1]} : vector<18x16xf32> to vector<16x16xf32>
    %355 = vector.broadcast %353 : f32 to vector<16x16xf32>
    %356 = arith.mulf %355, %354 : vector<16x16xf32>
    %357 = arith.addf %352, %356 : vector<16x16xf32>
    %c15 = arith.constant 15 : index
    %358 = memref.load %arg1[%c15] : memref<72xf32, #tpu.memory_space<smem>>
    %359 = vector.extract_strided_slice %325 {offsets = [2, 0], sizes = [16, 16], strides = [1, 1]} : vector<18x16xf32> to vector<16x16xf32>
    %360 = vector.broadcast %358 : f32 to vector<16x16xf32>
    %361 = arith.mulf %360, %359 : vector<16x16xf32>
    %362 = arith.addf %277, %361 : vector<16x16xf32>
    %c16 = arith.constant 16 : index
    %363 = memref.load %arg1[%c16] : memref<72xf32, #tpu.memory_space<smem>>
    %364 = vector.extract_strided_slice %326 {offsets = [2, 0], sizes = [16, 16], strides = [1, 1]} : vector<18x16xf32> to vector<16x16xf32>
    %365 = vector.broadcast %363 : f32 to vector<16x16xf32>
    %366 = arith.mulf %365, %364 : vector<16x16xf32>
    %367 = arith.addf %362, %366 : vector<16x16xf32>
    %c17 = arith.constant 17 : index
    %368 = memref.load %arg1[%c17] : memref<72xf32, #tpu.memory_space<smem>>
    %369 = vector.extract_strided_slice %327 {offsets = [2, 0], sizes = [16, 16], strides = [1, 1]} : vector<18x16xf32> to vector<16x16xf32>
    %370 = vector.broadcast %368 : f32 to vector<16x16xf32>
    %371 = arith.mulf %370, %369 : vector<16x16xf32>
    %372 = arith.addf %367, %371 : vector<16x16xf32>
    %c45 = arith.constant 45 : index
    %373 = memref.load %arg1[%c45] : memref<72xf32, #tpu.memory_space<smem>>
    %374 = vector.extract_strided_slice %325 {offsets = [0, 0], sizes = [16, 16], strides = [1, 1]} : vector<18x16xf32> to vector<16x16xf32>
    %375 = vector.broadcast %373 : f32 to vector<16x16xf32>
    %376 = arith.mulf %375, %374 : vector<16x16xf32>
    %377 = arith.addf %292, %376 : vector<16x16xf32>
    %c46 = arith.constant 46 : index
    %378 = memref.load %arg1[%c46] : memref<72xf32, #tpu.memory_space<smem>>
    %379 = vector.extract_strided_slice %326 {offsets = [0, 0], sizes = [16, 16], strides = [1, 1]} : vector<18x16xf32> to vector<16x16xf32>
    %380 = vector.broadcast %378 : f32 to vector<16x16xf32>
    %381 = arith.mulf %380, %379 : vector<16x16xf32>
    %382 = arith.addf %377, %381 : vector<16x16xf32>
    %c47 = arith.constant 47 : index
    %383 = memref.load %arg1[%c47] : memref<72xf32, #tpu.memory_space<smem>>
    %384 = vector.extract_strided_slice %327 {offsets = [0, 0], sizes = [16, 16], strides = [1, 1]} : vector<18x16xf32> to vector<16x16xf32>
    %385 = vector.broadcast %383 : f32 to vector<16x16xf32>
    %386 = arith.mulf %385, %384 : vector<16x16xf32>
    %387 = arith.addf %382, %386 : vector<16x16xf32>
    %c48 = arith.constant 48 : index
    %388 = memref.load %arg1[%c48] : memref<72xf32, #tpu.memory_space<smem>>
    %389 = vector.extract_strided_slice %325 {offsets = [1, 0], sizes = [16, 16], strides = [1, 1]} : vector<18x16xf32> to vector<16x16xf32>
    %390 = vector.broadcast %388 : f32 to vector<16x16xf32>
    %391 = arith.mulf %390, %389 : vector<16x16xf32>
    %392 = arith.addf %307, %391 : vector<16x16xf32>
    %c49 = arith.constant 49 : index
    %393 = memref.load %arg1[%c49] : memref<72xf32, #tpu.memory_space<smem>>
    %394 = vector.extract_strided_slice %326 {offsets = [1, 0], sizes = [16, 16], strides = [1, 1]} : vector<18x16xf32> to vector<16x16xf32>
    %395 = vector.broadcast %393 : f32 to vector<16x16xf32>
    %396 = arith.mulf %395, %394 : vector<16x16xf32>
    %397 = arith.addf %392, %396 : vector<16x16xf32>
    %c50 = arith.constant 50 : index
    %398 = memref.load %arg1[%c50] : memref<72xf32, #tpu.memory_space<smem>>
    %399 = vector.extract_strided_slice %327 {offsets = [1, 0], sizes = [16, 16], strides = [1, 1]} : vector<18x16xf32> to vector<16x16xf32>
    %400 = vector.broadcast %398 : f32 to vector<16x16xf32>
    %401 = arith.mulf %400, %399 : vector<16x16xf32>
    %402 = arith.addf %397, %401 : vector<16x16xf32>
    %c51 = arith.constant 51 : index
    %403 = memref.load %arg1[%c51] : memref<72xf32, #tpu.memory_space<smem>>
    %404 = vector.extract_strided_slice %325 {offsets = [2, 0], sizes = [16, 16], strides = [1, 1]} : vector<18x16xf32> to vector<16x16xf32>
    %405 = vector.broadcast %403 : f32 to vector<16x16xf32>
    %406 = arith.mulf %405, %404 : vector<16x16xf32>
    %407 = arith.addf %322, %406 : vector<16x16xf32>
    %c52 = arith.constant 52 : index
    %408 = memref.load %arg1[%c52] : memref<72xf32, #tpu.memory_space<smem>>
    %409 = vector.extract_strided_slice %326 {offsets = [2, 0], sizes = [16, 16], strides = [1, 1]} : vector<18x16xf32> to vector<16x16xf32>
    %410 = vector.broadcast %408 : f32 to vector<16x16xf32>
    %411 = arith.mulf %410, %409 : vector<16x16xf32>
    %412 = arith.addf %407, %411 : vector<16x16xf32>
    %c53 = arith.constant 53 : index
    %413 = memref.load %arg1[%c53] : memref<72xf32, #tpu.memory_space<smem>>
    %414 = vector.extract_strided_slice %327 {offsets = [2, 0], sizes = [16, 16], strides = [1, 1]} : vector<18x16xf32> to vector<16x16xf32>
    %415 = vector.broadcast %413 : f32 to vector<16x16xf32>
    %416 = arith.mulf %415, %414 : vector<16x16xf32>
    %417 = arith.addf %412, %416 : vector<16x16xf32>
    %c2_55 = arith.constant 2 : index
    %c0_56 = arith.constant 0 : index
    %c0_57 = arith.constant 0 : index
    %418 = vector.load %arg12[%c2_55, %c0_56, %c0_57] : memref<4x18x18xf32, #tpu.memory_space<vmem>>, vector<1x18x18xf32>
    %419 = vector.shape_cast %418 : vector<1x18x18xf32> to vector<18x18xf32>
    %420 = vector.extract_strided_slice %419 {offsets = [0, 0], sizes = [18, 16], strides = [1, 1]} : vector<18x18xf32> to vector<18x16xf32>
    %421 = vector.extract_strided_slice %419 {offsets = [0, 1], sizes = [18, 16], strides = [1, 1]} : vector<18x18xf32> to vector<18x16xf32>
    %422 = vector.extract_strided_slice %419 {offsets = [0, 2], sizes = [18, 16], strides = [1, 1]} : vector<18x18xf32> to vector<18x16xf32>
    %c18 = arith.constant 18 : index
    %423 = memref.load %arg1[%c18] : memref<72xf32, #tpu.memory_space<smem>>
    %424 = vector.extract_strided_slice %420 {offsets = [0, 0], sizes = [16, 16], strides = [1, 1]} : vector<18x16xf32> to vector<16x16xf32>
    %425 = vector.broadcast %423 : f32 to vector<16x16xf32>
    %426 = arith.mulf %425, %424 : vector<16x16xf32>
    %427 = arith.addf %342, %426 : vector<16x16xf32>
    %c19 = arith.constant 19 : index
    %428 = memref.load %arg1[%c19] : memref<72xf32, #tpu.memory_space<smem>>
    %429 = vector.extract_strided_slice %421 {offsets = [0, 0], sizes = [16, 16], strides = [1, 1]} : vector<18x16xf32> to vector<16x16xf32>
    %430 = vector.broadcast %428 : f32 to vector<16x16xf32>
    %431 = arith.mulf %430, %429 : vector<16x16xf32>
    %432 = arith.addf %427, %431 : vector<16x16xf32>
    %c20 = arith.constant 20 : index
    %433 = memref.load %arg1[%c20] : memref<72xf32, #tpu.memory_space<smem>>
    %434 = vector.extract_strided_slice %422 {offsets = [0, 0], sizes = [16, 16], strides = [1, 1]} : vector<18x16xf32> to vector<16x16xf32>
    %435 = vector.broadcast %433 : f32 to vector<16x16xf32>
    %436 = arith.mulf %435, %434 : vector<16x16xf32>
    %437 = arith.addf %432, %436 : vector<16x16xf32>
    %c21 = arith.constant 21 : index
    %438 = memref.load %arg1[%c21] : memref<72xf32, #tpu.memory_space<smem>>
    %439 = vector.extract_strided_slice %420 {offsets = [1, 0], sizes = [16, 16], strides = [1, 1]} : vector<18x16xf32> to vector<16x16xf32>
    %440 = vector.broadcast %438 : f32 to vector<16x16xf32>
    %441 = arith.mulf %440, %439 : vector<16x16xf32>
    %442 = arith.addf %357, %441 : vector<16x16xf32>
    %c22 = arith.constant 22 : index
    %443 = memref.load %arg1[%c22] : memref<72xf32, #tpu.memory_space<smem>>
    %444 = vector.extract_strided_slice %421 {offsets = [1, 0], sizes = [16, 16], strides = [1, 1]} : vector<18x16xf32> to vector<16x16xf32>
    %445 = vector.broadcast %443 : f32 to vector<16x16xf32>
    %446 = arith.mulf %445, %444 : vector<16x16xf32>
    %447 = arith.addf %442, %446 : vector<16x16xf32>
    %c23 = arith.constant 23 : index
    %448 = memref.load %arg1[%c23] : memref<72xf32, #tpu.memory_space<smem>>
    %449 = vector.extract_strided_slice %422 {offsets = [1, 0], sizes = [16, 16], strides = [1, 1]} : vector<18x16xf32> to vector<16x16xf32>
    %450 = vector.broadcast %448 : f32 to vector<16x16xf32>
    %451 = arith.mulf %450, %449 : vector<16x16xf32>
    %452 = arith.addf %447, %451 : vector<16x16xf32>
    %c24 = arith.constant 24 : index
    %453 = memref.load %arg1[%c24] : memref<72xf32, #tpu.memory_space<smem>>
    %454 = vector.extract_strided_slice %420 {offsets = [2, 0], sizes = [16, 16], strides = [1, 1]} : vector<18x16xf32> to vector<16x16xf32>
    %455 = vector.broadcast %453 : f32 to vector<16x16xf32>
    %456 = arith.mulf %455, %454 : vector<16x16xf32>
    %457 = arith.addf %372, %456 : vector<16x16xf32>
    %c25 = arith.constant 25 : index
    %458 = memref.load %arg1[%c25] : memref<72xf32, #tpu.memory_space<smem>>
    %459 = vector.extract_strided_slice %421 {offsets = [2, 0], sizes = [16, 16], strides = [1, 1]} : vector<18x16xf32> to vector<16x16xf32>
    %460 = vector.broadcast %458 : f32 to vector<16x16xf32>
    %461 = arith.mulf %460, %459 : vector<16x16xf32>
    %462 = arith.addf %457, %461 : vector<16x16xf32>
    %c26 = arith.constant 26 : index
    %463 = memref.load %arg1[%c26] : memref<72xf32, #tpu.memory_space<smem>>
    %464 = vector.extract_strided_slice %422 {offsets = [2, 0], sizes = [16, 16], strides = [1, 1]} : vector<18x16xf32> to vector<16x16xf32>
    %465 = vector.broadcast %463 : f32 to vector<16x16xf32>
    %466 = arith.mulf %465, %464 : vector<16x16xf32>
    %467 = arith.addf %462, %466 : vector<16x16xf32>
    %c54 = arith.constant 54 : index
    %468 = memref.load %arg1[%c54] : memref<72xf32, #tpu.memory_space<smem>>
    %469 = vector.extract_strided_slice %420 {offsets = [0, 0], sizes = [16, 16], strides = [1, 1]} : vector<18x16xf32> to vector<16x16xf32>
    %470 = vector.broadcast %468 : f32 to vector<16x16xf32>
    %471 = arith.mulf %470, %469 : vector<16x16xf32>
    %472 = arith.addf %387, %471 : vector<16x16xf32>
    %c55 = arith.constant 55 : index
    %473 = memref.load %arg1[%c55] : memref<72xf32, #tpu.memory_space<smem>>
    %474 = vector.extract_strided_slice %421 {offsets = [0, 0], sizes = [16, 16], strides = [1, 1]} : vector<18x16xf32> to vector<16x16xf32>
    %475 = vector.broadcast %473 : f32 to vector<16x16xf32>
    %476 = arith.mulf %475, %474 : vector<16x16xf32>
    %477 = arith.addf %472, %476 : vector<16x16xf32>
    %c56 = arith.constant 56 : index
    %478 = memref.load %arg1[%c56] : memref<72xf32, #tpu.memory_space<smem>>
    %479 = vector.extract_strided_slice %422 {offsets = [0, 0], sizes = [16, 16], strides = [1, 1]} : vector<18x16xf32> to vector<16x16xf32>
    %480 = vector.broadcast %478 : f32 to vector<16x16xf32>
    %481 = arith.mulf %480, %479 : vector<16x16xf32>
    %482 = arith.addf %477, %481 : vector<16x16xf32>
    %c57 = arith.constant 57 : index
    %483 = memref.load %arg1[%c57] : memref<72xf32, #tpu.memory_space<smem>>
    %484 = vector.extract_strided_slice %420 {offsets = [1, 0], sizes = [16, 16], strides = [1, 1]} : vector<18x16xf32> to vector<16x16xf32>
    %485 = vector.broadcast %483 : f32 to vector<16x16xf32>
    %486 = arith.mulf %485, %484 : vector<16x16xf32>
    %487 = arith.addf %402, %486 : vector<16x16xf32>
    %c58 = arith.constant 58 : index
    %488 = memref.load %arg1[%c58] : memref<72xf32, #tpu.memory_space<smem>>
    %489 = vector.extract_strided_slice %421 {offsets = [1, 0], sizes = [16, 16], strides = [1, 1]} : vector<18x16xf32> to vector<16x16xf32>
    %490 = vector.broadcast %488 : f32 to vector<16x16xf32>
    %491 = arith.mulf %490, %489 : vector<16x16xf32>
    %492 = arith.addf %487, %491 : vector<16x16xf32>
    %c59 = arith.constant 59 : index
    %493 = memref.load %arg1[%c59] : memref<72xf32, #tpu.memory_space<smem>>
    %494 = vector.extract_strided_slice %422 {offsets = [1, 0], sizes = [16, 16], strides = [1, 1]} : vector<18x16xf32> to vector<16x16xf32>
    %495 = vector.broadcast %493 : f32 to vector<16x16xf32>
    %496 = arith.mulf %495, %494 : vector<16x16xf32>
    %497 = arith.addf %492, %496 : vector<16x16xf32>
    %c60 = arith.constant 60 : index
    %498 = memref.load %arg1[%c60] : memref<72xf32, #tpu.memory_space<smem>>
    %499 = vector.extract_strided_slice %420 {offsets = [2, 0], sizes = [16, 16], strides = [1, 1]} : vector<18x16xf32> to vector<16x16xf32>
    %500 = vector.broadcast %498 : f32 to vector<16x16xf32>
    %501 = arith.mulf %500, %499 : vector<16x16xf32>
    %502 = arith.addf %417, %501 : vector<16x16xf32>
    %c61 = arith.constant 61 : index
    %503 = memref.load %arg1[%c61] : memref<72xf32, #tpu.memory_space<smem>>
    %504 = vector.extract_strided_slice %421 {offsets = [2, 0], sizes = [16, 16], strides = [1, 1]} : vector<18x16xf32> to vector<16x16xf32>
    %505 = vector.broadcast %503 : f32 to vector<16x16xf32>
    %506 = arith.mulf %505, %504 : vector<16x16xf32>
    %507 = arith.addf %502, %506 : vector<16x16xf32>
    %c62 = arith.constant 62 : index
    %508 = memref.load %arg1[%c62] : memref<72xf32, #tpu.memory_space<smem>>
    %509 = vector.extract_strided_slice %422 {offsets = [2, 0], sizes = [16, 16], strides = [1, 1]} : vector<18x16xf32> to vector<16x16xf32>
    %510 = vector.broadcast %508 : f32 to vector<16x16xf32>
    %511 = arith.mulf %510, %509 : vector<16x16xf32>
    %512 = arith.addf %507, %511 : vector<16x16xf32>
    %c3_58 = arith.constant 3 : index
    %c0_59 = arith.constant 0 : index
    %c0_60 = arith.constant 0 : index
    %513 = vector.load %arg12[%c3_58, %c0_59, %c0_60] : memref<4x18x18xf32, #tpu.memory_space<vmem>>, vector<1x18x18xf32>
    %514 = vector.shape_cast %513 : vector<1x18x18xf32> to vector<18x18xf32>
    %515 = vector.extract_strided_slice %514 {offsets = [0, 0], sizes = [18, 16], strides = [1, 1]} : vector<18x18xf32> to vector<18x16xf32>
    %516 = vector.extract_strided_slice %514 {offsets = [0, 1], sizes = [18, 16], strides = [1, 1]} : vector<18x18xf32> to vector<18x16xf32>
    %517 = vector.extract_strided_slice %514 {offsets = [0, 2], sizes = [18, 16], strides = [1, 1]} : vector<18x18xf32> to vector<18x16xf32>
    %c27 = arith.constant 27 : index
    %518 = memref.load %arg1[%c27] : memref<72xf32, #tpu.memory_space<smem>>
    %519 = vector.extract_strided_slice %515 {offsets = [0, 0], sizes = [16, 16], strides = [1, 1]} : vector<18x16xf32> to vector<16x16xf32>
    %520 = vector.broadcast %518 : f32 to vector<16x16xf32>
    %521 = arith.mulf %520, %519 : vector<16x16xf32>
    %522 = arith.addf %437, %521 : vector<16x16xf32>
    %c28 = arith.constant 28 : index
    %523 = memref.load %arg1[%c28] : memref<72xf32, #tpu.memory_space<smem>>
    %524 = vector.extract_strided_slice %516 {offsets = [0, 0], sizes = [16, 16], strides = [1, 1]} : vector<18x16xf32> to vector<16x16xf32>
    %525 = vector.broadcast %523 : f32 to vector<16x16xf32>
    %526 = arith.mulf %525, %524 : vector<16x16xf32>
    %527 = arith.addf %522, %526 : vector<16x16xf32>
    %c29 = arith.constant 29 : index
    %528 = memref.load %arg1[%c29] : memref<72xf32, #tpu.memory_space<smem>>
    %529 = vector.extract_strided_slice %517 {offsets = [0, 0], sizes = [16, 16], strides = [1, 1]} : vector<18x16xf32> to vector<16x16xf32>
    %530 = vector.broadcast %528 : f32 to vector<16x16xf32>
    %531 = arith.mulf %530, %529 : vector<16x16xf32>
    %532 = arith.addf %527, %531 : vector<16x16xf32>
    %c30 = arith.constant 30 : index
    %533 = memref.load %arg1[%c30] : memref<72xf32, #tpu.memory_space<smem>>
    %534 = vector.extract_strided_slice %515 {offsets = [1, 0], sizes = [16, 16], strides = [1, 1]} : vector<18x16xf32> to vector<16x16xf32>
    %535 = vector.broadcast %533 : f32 to vector<16x16xf32>
    %536 = arith.mulf %535, %534 : vector<16x16xf32>
    %537 = arith.addf %452, %536 : vector<16x16xf32>
    %c31 = arith.constant 31 : index
    %538 = memref.load %arg1[%c31] : memref<72xf32, #tpu.memory_space<smem>>
    %539 = vector.extract_strided_slice %516 {offsets = [1, 0], sizes = [16, 16], strides = [1, 1]} : vector<18x16xf32> to vector<16x16xf32>
    %540 = vector.broadcast %538 : f32 to vector<16x16xf32>
    %541 = arith.mulf %540, %539 : vector<16x16xf32>
    %542 = arith.addf %537, %541 : vector<16x16xf32>
    %c32 = arith.constant 32 : index
    %543 = memref.load %arg1[%c32] : memref<72xf32, #tpu.memory_space<smem>>
    %544 = vector.extract_strided_slice %517 {offsets = [1, 0], sizes = [16, 16], strides = [1, 1]} : vector<18x16xf32> to vector<16x16xf32>
    %545 = vector.broadcast %543 : f32 to vector<16x16xf32>
    %546 = arith.mulf %545, %544 : vector<16x16xf32>
    %547 = arith.addf %542, %546 : vector<16x16xf32>
    %c33 = arith.constant 33 : index
    %548 = memref.load %arg1[%c33] : memref<72xf32, #tpu.memory_space<smem>>
    %549 = vector.extract_strided_slice %515 {offsets = [2, 0], sizes = [16, 16], strides = [1, 1]} : vector<18x16xf32> to vector<16x16xf32>
    %550 = vector.broadcast %548 : f32 to vector<16x16xf32>
    %551 = arith.mulf %550, %549 : vector<16x16xf32>
    %552 = arith.addf %467, %551 : vector<16x16xf32>
    %c34 = arith.constant 34 : index
    %553 = memref.load %arg1[%c34] : memref<72xf32, #tpu.memory_space<smem>>
    %554 = vector.extract_strided_slice %516 {offsets = [2, 0], sizes = [16, 16], strides = [1, 1]} : vector<18x16xf32> to vector<16x16xf32>
    %555 = vector.broadcast %553 : f32 to vector<16x16xf32>
    %556 = arith.mulf %555, %554 : vector<16x16xf32>
    %557 = arith.addf %552, %556 : vector<16x16xf32>
    %c35 = arith.constant 35 : index
    %558 = memref.load %arg1[%c35] : memref<72xf32, #tpu.memory_space<smem>>
    %559 = vector.extract_strided_slice %517 {offsets = [2, 0], sizes = [16, 16], strides = [1, 1]} : vector<18x16xf32> to vector<16x16xf32>
    %560 = vector.broadcast %558 : f32 to vector<16x16xf32>
    %561 = arith.mulf %560, %559 : vector<16x16xf32>
    %562 = arith.addf %557, %561 : vector<16x16xf32>
    %c63 = arith.constant 63 : index
    %563 = memref.load %arg1[%c63] : memref<72xf32, #tpu.memory_space<smem>>
    %564 = vector.extract_strided_slice %515 {offsets = [0, 0], sizes = [16, 16], strides = [1, 1]} : vector<18x16xf32> to vector<16x16xf32>
    %565 = vector.broadcast %563 : f32 to vector<16x16xf32>
    %566 = arith.mulf %565, %564 : vector<16x16xf32>
    %567 = arith.addf %482, %566 : vector<16x16xf32>
    %c64 = arith.constant 64 : index
    %568 = memref.load %arg1[%c64] : memref<72xf32, #tpu.memory_space<smem>>
    %569 = vector.extract_strided_slice %516 {offsets = [0, 0], sizes = [16, 16], strides = [1, 1]} : vector<18x16xf32> to vector<16x16xf32>
    %570 = vector.broadcast %568 : f32 to vector<16x16xf32>
    %571 = arith.mulf %570, %569 : vector<16x16xf32>
    %572 = arith.addf %567, %571 : vector<16x16xf32>
    %c65 = arith.constant 65 : index
    %573 = memref.load %arg1[%c65] : memref<72xf32, #tpu.memory_space<smem>>
    %574 = vector.extract_strided_slice %517 {offsets = [0, 0], sizes = [16, 16], strides = [1, 1]} : vector<18x16xf32> to vector<16x16xf32>
    %575 = vector.broadcast %573 : f32 to vector<16x16xf32>
    %576 = arith.mulf %575, %574 : vector<16x16xf32>
    %577 = arith.addf %572, %576 : vector<16x16xf32>
    %c66 = arith.constant 66 : index
    %578 = memref.load %arg1[%c66] : memref<72xf32, #tpu.memory_space<smem>>
    %579 = vector.extract_strided_slice %515 {offsets = [1, 0], sizes = [16, 16], strides = [1, 1]} : vector<18x16xf32> to vector<16x16xf32>
    %580 = vector.broadcast %578 : f32 to vector<16x16xf32>
    %581 = arith.mulf %580, %579 : vector<16x16xf32>
    %582 = arith.addf %497, %581 : vector<16x16xf32>
    %c67 = arith.constant 67 : index
    %583 = memref.load %arg1[%c67] : memref<72xf32, #tpu.memory_space<smem>>
    %584 = vector.extract_strided_slice %516 {offsets = [1, 0], sizes = [16, 16], strides = [1, 1]} : vector<18x16xf32> to vector<16x16xf32>
    %585 = vector.broadcast %583 : f32 to vector<16x16xf32>
    %586 = arith.mulf %585, %584 : vector<16x16xf32>
    %587 = arith.addf %582, %586 : vector<16x16xf32>
    %c68 = arith.constant 68 : index
    %588 = memref.load %arg1[%c68] : memref<72xf32, #tpu.memory_space<smem>>
    %589 = vector.extract_strided_slice %517 {offsets = [1, 0], sizes = [16, 16], strides = [1, 1]} : vector<18x16xf32> to vector<16x16xf32>
    %590 = vector.broadcast %588 : f32 to vector<16x16xf32>
    %591 = arith.mulf %590, %589 : vector<16x16xf32>
    %592 = arith.addf %587, %591 : vector<16x16xf32>
    %c69 = arith.constant 69 : index
    %593 = memref.load %arg1[%c69] : memref<72xf32, #tpu.memory_space<smem>>
    %594 = vector.extract_strided_slice %515 {offsets = [2, 0], sizes = [16, 16], strides = [1, 1]} : vector<18x16xf32> to vector<16x16xf32>
    %595 = vector.broadcast %593 : f32 to vector<16x16xf32>
    %596 = arith.mulf %595, %594 : vector<16x16xf32>
    %597 = arith.addf %512, %596 : vector<16x16xf32>
    %c70 = arith.constant 70 : index
    %598 = memref.load %arg1[%c70] : memref<72xf32, #tpu.memory_space<smem>>
    %599 = vector.extract_strided_slice %516 {offsets = [2, 0], sizes = [16, 16], strides = [1, 1]} : vector<18x16xf32> to vector<16x16xf32>
    %600 = vector.broadcast %598 : f32 to vector<16x16xf32>
    %601 = arith.mulf %600, %599 : vector<16x16xf32>
    %602 = arith.addf %597, %601 : vector<16x16xf32>
    %c71 = arith.constant 71 : index
    %603 = memref.load %arg1[%c71] : memref<72xf32, #tpu.memory_space<smem>>
    %604 = vector.extract_strided_slice %517 {offsets = [2, 0], sizes = [16, 16], strides = [1, 1]} : vector<18x16xf32> to vector<16x16xf32>
    %605 = vector.broadcast %603 : f32 to vector<16x16xf32>
    %606 = arith.mulf %605, %604 : vector<16x16xf32>
    %607 = arith.addf %602, %606 : vector<16x16xf32>
    %608 = arith.addf %532, %547 : vector<16x16xf32>
    %609 = arith.addf %608, %562 : vector<16x16xf32>
    %c0_61 = arith.constant 0 : index
    %610 = memref.load %arg2[%c0_61] : memref<2xf32, #tpu.memory_space<smem>>
    %611 = vector.broadcast %610 : f32 to vector<16x16xf32>
    %612 = arith.mulf %609, %611 : vector<16x16xf32>
    %c0_62 = arith.constant 0 : index
    %613 = memref.load %arg3[%c0_62] : memref<2xf32, #tpu.memory_space<smem>>
    %614 = vector.broadcast %613 : f32 to vector<16x16xf32>
    %615 = arith.addf %612, %614 : vector<16x16xf32>
    %cst_63 = arith.constant 0.000000e+00 : f32
    %616 = vector.broadcast %cst_63 : f32 to vector<16x16xf32>
    %617 = arith.maximumf %615, %616 : vector<16x16xf32>
    %c0_64 = arith.constant 0 : index
    %c1_65 = arith.constant 1 : index
    %c1_66 = arith.constant 1 : index
    %618 = vector.load %arg13[%c0_64, %c1_65, %c1_66] : memref<2x18x18xf32, #tpu.memory_space<vmem>>, vector<1x16x16xf32>
    %619 = vector.shape_cast %618 : vector<1x16x16xf32> to vector<16x16xf32>
    %620 = vector.shape_cast %617 : vector<16x16xf32> to vector<1x16x16xf32>
    tpu.vector_store %arg13[%c0_64, %c1_65, %c1_66], %620 {strides = array<i32>} : memref<2x18x18xf32, #tpu.memory_space<vmem>>, vector<1x16x16xf32>,
    %621 = arith.addf %577, %592 : vector<16x16xf32>
    %622 = arith.addf %621, %607 : vector<16x16xf32>
    %c1_67 = arith.constant 1 : index
    %623 = memref.load %arg2[%c1_67] : memref<2xf32, #tpu.memory_space<smem>>
    %624 = vector.broadcast %623 : f32 to vector<16x16xf32>
    %625 = arith.mulf %622, %624 : vector<16x16xf32>
    %c1_68 = arith.constant 1 : index
    %626 = memref.load %arg3[%c1_68] : memref<2xf32, #tpu.memory_space<smem>>
    %627 = vector.broadcast %626 : f32 to vector<16x16xf32>
    %628 = arith.addf %625, %627 : vector<16x16xf32>
    %cst_69 = arith.constant 0.000000e+00 : f32
    %629 = vector.broadcast %cst_69 : f32 to vector<16x16xf32>
    %630 = arith.maximumf %628, %629 : vector<16x16xf32>
    %c1_70 = arith.constant 1 : index
    %c1_71 = arith.constant 1 : index
    %c1_72 = arith.constant 1 : index
    %631 = vector.load %arg13[%c1_70, %c1_71, %c1_72] : memref<2x18x18xf32, #tpu.memory_space<vmem>>, vector<1x16x16xf32>
    %632 = vector.shape_cast %631 : vector<1x16x16xf32> to vector<16x16xf32>
    %633 = vector.shape_cast %630 : vector<16x16xf32> to vector<1x16x16xf32>
    tpu.vector_store %arg13[%c1_70, %c1_71, %c1_72], %633 {strides = array<i32>} : memref<2x18x18xf32, #tpu.memory_space<vmem>>, vector<1x16x16xf32>,
    %cst_73 = arith.constant 0.000000e+00 : f32
    %634 = vector.broadcast %cst_73 : f32 to vector<16x16xf32>
    %cst_74 = arith.constant 0.000000e+00 : f32
    %635 = vector.broadcast %cst_74 : f32 to vector<16x16xf32>
    %cst_75 = arith.constant 0.000000e+00 : f32
    %636 = vector.broadcast %cst_75 : f32 to vector<16x16xf32>
    %cst_76 = arith.constant 0.000000e+00 : f32
    %637 = vector.broadcast %cst_76 : f32 to vector<16x16xf32>
    %cst_77 = arith.constant 0.000000e+00 : f32
    %638 = vector.broadcast %cst_77 : f32 to vector<16x16xf32>
    %cst_78 = arith.constant 0.000000e+00 : f32
    %639 = vector.broadcast %cst_78 : f32 to vector<16x16xf32>
    %cst_79 = arith.constant 0.000000e+00 : f32
    %640 = vector.broadcast %cst_79 : f32 to vector<16x16xf32>
    %cst_80 = arith.constant 0.000000e+00 : f32
    %641 = vector.broadcast %cst_80 : f32 to vector<16x16xf32>
    %cst_81 = arith.constant 0.000000e+00 : f32
    %642 = vector.broadcast %cst_81 : f32 to vector<16x16xf32>
    %cst_82 = arith.constant 0.000000e+00 : f32
    %643 = vector.broadcast %cst_82 : f32 to vector<16x16xf32>
    %cst_83 = arith.constant 0.000000e+00 : f32
    %644 = vector.broadcast %cst_83 : f32 to vector<16x16xf32>
    %cst_84 = arith.constant 0.000000e+00 : f32
    %645 = vector.broadcast %cst_84 : f32 to vector<16x16xf32>
    %c0_85 = arith.constant 0 : index
    %c0_86 = arith.constant 0 : index
    %c0_87 = arith.constant 0 : index
    %646 = vector.load %arg13[%c0_85, %c0_86, %c0_87] : memref<2x18x18xf32, #tpu.memory_space<vmem>>, vector<1x18x18xf32>
    %647 = vector.shape_cast %646 : vector<1x18x18xf32> to vector<18x18xf32>
    %648 = vector.extract_strided_slice %647 {offsets = [0, 0], sizes = [18, 16], strides = [1, 1]} : vector<18x18xf32> to vector<18x16xf32>
    %649 = vector.extract_strided_slice %647 {offsets = [0, 1], sizes = [18, 16], strides = [1, 1]} : vector<18x18xf32> to vector<18x16xf32>
    %650 = vector.extract_strided_slice %647 {offsets = [0, 2], sizes = [18, 16], strides = [1, 1]} : vector<18x18xf32> to vector<18x16xf32>
    %c0_88 = arith.constant 0 : index
    %651 = memref.load %arg4[%c0_88] : memref<72xf32, #tpu.memory_space<smem>>
    %652 = vector.extract_strided_slice %648 {offsets = [0, 0], sizes = [16, 16], strides = [1, 1]} : vector<18x16xf32> to vector<16x16xf32>
    %653 = vector.broadcast %651 : f32 to vector<16x16xf32>
    %654 = arith.mulf %653, %652 : vector<16x16xf32>
    %655 = arith.addf %634, %654 : vector<16x16xf32>
    %c1_89 = arith.constant 1 : index
    %656 = memref.load %arg4[%c1_89] : memref<72xf32, #tpu.memory_space<smem>>
    %657 = vector.extract_strided_slice %649 {offsets = [0, 0], sizes = [16, 16], strides = [1, 1]} : vector<18x16xf32> to vector<16x16xf32>
    %658 = vector.broadcast %656 : f32 to vector<16x16xf32>
    %659 = arith.mulf %658, %657 : vector<16x16xf32>
    %660 = arith.addf %655, %659 : vector<16x16xf32>
    %c2_90 = arith.constant 2 : index
    %661 = memref.load %arg4[%c2_90] : memref<72xf32, #tpu.memory_space<smem>>
    %662 = vector.extract_strided_slice %650 {offsets = [0, 0], sizes = [16, 16], strides = [1, 1]} : vector<18x16xf32> to vector<16x16xf32>
    %663 = vector.broadcast %661 : f32 to vector<16x16xf32>
    %664 = arith.mulf %663, %662 : vector<16x16xf32>
    %665 = arith.addf %660, %664 : vector<16x16xf32>
    %c3_91 = arith.constant 3 : index
    %666 = memref.load %arg4[%c3_91] : memref<72xf32, #tpu.memory_space<smem>>
    %667 = vector.extract_strided_slice %648 {offsets = [1, 0], sizes = [16, 16], strides = [1, 1]} : vector<18x16xf32> to vector<16x16xf32>
    %668 = vector.broadcast %666 : f32 to vector<16x16xf32>
    %669 = arith.mulf %668, %667 : vector<16x16xf32>
    %670 = arith.addf %635, %669 : vector<16x16xf32>
    %c4_92 = arith.constant 4 : index
    %671 = memref.load %arg4[%c4_92] : memref<72xf32, #tpu.memory_space<smem>>
    %672 = vector.extract_strided_slice %649 {offsets = [1, 0], sizes = [16, 16], strides = [1, 1]} : vector<18x16xf32> to vector<16x16xf32>
    %673 = vector.broadcast %671 : f32 to vector<16x16xf32>
    %674 = arith.mulf %673, %672 : vector<16x16xf32>
    %675 = arith.addf %670, %674 : vector<16x16xf32>
    %c5_93 = arith.constant 5 : index
    %676 = memref.load %arg4[%c5_93] : memref<72xf32, #tpu.memory_space<smem>>
    %677 = vector.extract_strided_slice %650 {offsets = [1, 0], sizes = [16, 16], strides = [1, 1]} : vector<18x16xf32> to vector<16x16xf32>
    %678 = vector.broadcast %676 : f32 to vector<16x16xf32>
    %679 = arith.mulf %678, %677 : vector<16x16xf32>
    %680 = arith.addf %675, %679 : vector<16x16xf32>
    %c6_94 = arith.constant 6 : index
    %681 = memref.load %arg4[%c6_94] : memref<72xf32, #tpu.memory_space<smem>>
    %682 = vector.extract_strided_slice %648 {offsets = [2, 0], sizes = [16, 16], strides = [1, 1]} : vector<18x16xf32> to vector<16x16xf32>
    %683 = vector.broadcast %681 : f32 to vector<16x16xf32>
    %684 = arith.mulf %683, %682 : vector<16x16xf32>
    %685 = arith.addf %636, %684 : vector<16x16xf32>
    %c7_95 = arith.constant 7 : index
    %686 = memref.load %arg4[%c7_95] : memref<72xf32, #tpu.memory_space<smem>>
    %687 = vector.extract_strided_slice %649 {offsets = [2, 0], sizes = [16, 16], strides = [1, 1]} : vector<18x16xf32> to vector<16x16xf32>
    %688 = vector.broadcast %686 : f32 to vector<16x16xf32>
    %689 = arith.mulf %688, %687 : vector<16x16xf32>
    %690 = arith.addf %685, %689 : vector<16x16xf32>
    %c8_96 = arith.constant 8 : index
    %691 = memref.load %arg4[%c8_96] : memref<72xf32, #tpu.memory_space<smem>>
    %692 = vector.extract_strided_slice %650 {offsets = [2, 0], sizes = [16, 16], strides = [1, 1]} : vector<18x16xf32> to vector<16x16xf32>
    %693 = vector.broadcast %691 : f32 to vector<16x16xf32>
    %694 = arith.mulf %693, %692 : vector<16x16xf32>
    %695 = arith.addf %690, %694 : vector<16x16xf32>
    %c18_97 = arith.constant 18 : index
    %696 = memref.load %arg4[%c18_97] : memref<72xf32, #tpu.memory_space<smem>>
    %697 = vector.extract_strided_slice %648 {offsets = [0, 0], sizes = [16, 16], strides = [1, 1]} : vector<18x16xf32> to vector<16x16xf32>
    %698 = vector.broadcast %696 : f32 to vector<16x16xf32>
    %699 = arith.mulf %698, %697 : vector<16x16xf32>
    %700 = arith.addf %637, %699 : vector<16x16xf32>
    %c19_98 = arith.constant 19 : index
    %701 = memref.load %arg4[%c19_98] : memref<72xf32, #tpu.memory_space<smem>>
    %702 = vector.extract_strided_slice %649 {offsets = [0, 0], sizes = [16, 16], strides = [1, 1]} : vector<18x16xf32> to vector<16x16xf32>
    %703 = vector.broadcast %701 : f32 to vector<16x16xf32>
    %704 = arith.mulf %703, %702 : vector<16x16xf32>
    %705 = arith.addf %700, %704 : vector<16x16xf32>
    %c20_99 = arith.constant 20 : index
    %706 = memref.load %arg4[%c20_99] : memref<72xf32, #tpu.memory_space<smem>>
    %707 = vector.extract_strided_slice %650 {offsets = [0, 0], sizes = [16, 16], strides = [1, 1]} : vector<18x16xf32> to vector<16x16xf32>
    %708 = vector.broadcast %706 : f32 to vector<16x16xf32>
    %709 = arith.mulf %708, %707 : vector<16x16xf32>
    %710 = arith.addf %705, %709 : vector<16x16xf32>
    %c21_100 = arith.constant 21 : index
    %711 = memref.load %arg4[%c21_100] : memref<72xf32, #tpu.memory_space<smem>>
    %712 = vector.extract_strided_slice %648 {offsets = [1, 0], sizes = [16, 16], strides = [1, 1]} : vector<18x16xf32> to vector<16x16xf32>
    %713 = vector.broadcast %711 : f32 to vector<16x16xf32>
    %714 = arith.mulf %713, %712 : vector<16x16xf32>
    %715 = arith.addf %638, %714 : vector<16x16xf32>
    %c22_101 = arith.constant 22 : index
    %716 = memref.load %arg4[%c22_101] : memref<72xf32, #tpu.memory_space<smem>>
    %717 = vector.extract_strided_slice %649 {offsets = [1, 0], sizes = [16, 16], strides = [1, 1]} : vector<18x16xf32> to vector<16x16xf32>
    %718 = vector.broadcast %716 : f32 to vector<16x16xf32>
    %719 = arith.mulf %718, %717 : vector<16x16xf32>
    %720 = arith.addf %715, %719 : vector<16x16xf32>
    %c23_102 = arith.constant 23 : index
    %721 = memref.load %arg4[%c23_102] : memref<72xf32, #tpu.memory_space<smem>>
    %722 = vector.extract_strided_slice %650 {offsets = [1, 0], sizes = [16, 16], strides = [1, 1]} : vector<18x16xf32> to vector<16x16xf32>
    %723 = vector.broadcast %721 : f32 to vector<16x16xf32>
    %724 = arith.mulf %723, %722 : vector<16x16xf32>
    %725 = arith.addf %720, %724 : vector<16x16xf32>
    %c24_103 = arith.constant 24 : index
    %726 = memref.load %arg4[%c24_103] : memref<72xf32, #tpu.memory_space<smem>>
    %727 = vector.extract_strided_slice %648 {offsets = [2, 0], sizes = [16, 16], strides = [1, 1]} : vector<18x16xf32> to vector<16x16xf32>
    %728 = vector.broadcast %726 : f32 to vector<16x16xf32>
    %729 = arith.mulf %728, %727 : vector<16x16xf32>
    %730 = arith.addf %639, %729 : vector<16x16xf32>
    %c25_104 = arith.constant 25 : index
    %731 = memref.load %arg4[%c25_104] : memref<72xf32, #tpu.memory_space<smem>>
    %732 = vector.extract_strided_slice %649 {offsets = [2, 0], sizes = [16, 16], strides = [1, 1]} : vector<18x16xf32> to vector<16x16xf32>
    %733 = vector.broadcast %731 : f32 to vector<16x16xf32>
    %734 = arith.mulf %733, %732 : vector<16x16xf32>
    %735 = arith.addf %730, %734 : vector<16x16xf32>
    %c26_105 = arith.constant 26 : index
    %736 = memref.load %arg4[%c26_105] : memref<72xf32, #tpu.memory_space<smem>>
    %737 = vector.extract_strided_slice %650 {offsets = [2, 0], sizes = [16, 16], strides = [1, 1]} : vector<18x16xf32> to vector<16x16xf32>
    %738 = vector.broadcast %736 : f32 to vector<16x16xf32>
    %739 = arith.mulf %738, %737 : vector<16x16xf32>
    %740 = arith.addf %735, %739 : vector<16x16xf32>
    %c36_106 = arith.constant 36 : index
    %741 = memref.load %arg4[%c36_106] : memref<72xf32, #tpu.memory_space<smem>>
    %742 = vector.extract_strided_slice %648 {offsets = [0, 0], sizes = [16, 16], strides = [1, 1]} : vector<18x16xf32> to vector<16x16xf32>
    %743 = vector.broadcast %741 : f32 to vector<16x16xf32>
    %744 = arith.mulf %743, %742 : vector<16x16xf32>
    %745 = arith.addf %640, %744 : vector<16x16xf32>
    %c37_107 = arith.constant 37 : index
    %746 = memref.load %arg4[%c37_107] : memref<72xf32, #tpu.memory_space<smem>>
    %747 = vector.extract_strided_slice %649 {offsets = [0, 0], sizes = [16, 16], strides = [1, 1]} : vector<18x16xf32> to vector<16x16xf32>
    %748 = vector.broadcast %746 : f32 to vector<16x16xf32>
    %749 = arith.mulf %748, %747 : vector<16x16xf32>
    %750 = arith.addf %745, %749 : vector<16x16xf32>
    %c38_108 = arith.constant 38 : index
    %751 = memref.load %arg4[%c38_108] : memref<72xf32, #tpu.memory_space<smem>>
    %752 = vector.extract_strided_slice %650 {offsets = [0, 0], sizes = [16, 16], strides = [1, 1]} : vector<18x16xf32> to vector<16x16xf32>
    %753 = vector.broadcast %751 : f32 to vector<16x16xf32>
    %754 = arith.mulf %753, %752 : vector<16x16xf32>
    %755 = arith.addf %750, %754 : vector<16x16xf32>
    %c39_109 = arith.constant 39 : index
    %756 = memref.load %arg4[%c39_109] : memref<72xf32, #tpu.memory_space<smem>>
    %757 = vector.extract_strided_slice %648 {offsets = [1, 0], sizes = [16, 16], strides = [1, 1]} : vector<18x16xf32> to vector<16x16xf32>
    %758 = vector.broadcast %756 : f32 to vector<16x16xf32>
    %759 = arith.mulf %758, %757 : vector<16x16xf32>
    %760 = arith.addf %641, %759 : vector<16x16xf32>
    %c40_110 = arith.constant 40 : index
    %761 = memref.load %arg4[%c40_110] : memref<72xf32, #tpu.memory_space<smem>>
    %762 = vector.extract_strided_slice %649 {offsets = [1, 0], sizes = [16, 16], strides = [1, 1]} : vector<18x16xf32> to vector<16x16xf32>
    %763 = vector.broadcast %761 : f32 to vector<16x16xf32>
    %764 = arith.mulf %763, %762 : vector<16x16xf32>
    %765 = arith.addf %760, %764 : vector<16x16xf32>
    %c41_111 = arith.constant 41 : index
    %766 = memref.load %arg4[%c41_111] : memref<72xf32, #tpu.memory_space<smem>>
    %767 = vector.extract_strided_slice %650 {offsets = [1, 0], sizes = [16, 16], strides = [1, 1]} : vector<18x16xf32> to vector<16x16xf32>
    %768 = vector.broadcast %766 : f32 to vector<16x16xf32>
    %769 = arith.mulf %768, %767 : vector<16x16xf32>
    %770 = arith.addf %765, %769 : vector<16x16xf32>
    %c42_112 = arith.constant 42 : index
    %771 = memref.load %arg4[%c42_112] : memref<72xf32, #tpu.memory_space<smem>>
    %772 = vector.extract_strided_slice %648 {offsets = [2, 0], sizes = [16, 16], strides = [1, 1]} : vector<18x16xf32> to vector<16x16xf32>
    %773 = vector.broadcast %771 : f32 to vector<16x16xf32>
    %774 = arith.mulf %773, %772 : vector<16x16xf32>
    %775 = arith.addf %642, %774 : vector<16x16xf32>
    %c43_113 = arith.constant 43 : index
    %776 = memref.load %arg4[%c43_113] : memref<72xf32, #tpu.memory_space<smem>>
    %777 = vector.extract_strided_slice %649 {offsets = [2, 0], sizes = [16, 16], strides = [1, 1]} : vector<18x16xf32> to vector<16x16xf32>
    %778 = vector.broadcast %776 : f32 to vector<16x16xf32>
    %779 = arith.mulf %778, %777 : vector<16x16xf32>
    %780 = arith.addf %775, %779 : vector<16x16xf32>
    %c44_114 = arith.constant 44 : index
    %781 = memref.load %arg4[%c44_114] : memref<72xf32, #tpu.memory_space<smem>>
    %782 = vector.extract_strided_slice %650 {offsets = [2, 0], sizes = [16, 16], strides = [1, 1]} : vector<18x16xf32> to vector<16x16xf32>
    %783 = vector.broadcast %781 : f32 to vector<16x16xf32>
    %784 = arith.mulf %783, %782 : vector<16x16xf32>
    %785 = arith.addf %780, %784 : vector<16x16xf32>
    %c54_115 = arith.constant 54 : index
    %786 = memref.load %arg4[%c54_115] : memref<72xf32, #tpu.memory_space<smem>>
    %787 = vector.extract_strided_slice %648 {offsets = [0, 0], sizes = [16, 16], strides = [1, 1]} : vector<18x16xf32> to vector<16x16xf32>
    %788 = vector.broadcast %786 : f32 to vector<16x16xf32>
    %789 = arith.mulf %788, %787 : vector<16x16xf32>
    %790 = arith.addf %643, %789 : vector<16x16xf32>
    %c55_116 = arith.constant 55 : index
    %791 = memref.load %arg4[%c55_116] : memref<72xf32, #tpu.memory_space<smem>>
    %792 = vector.extract_strided_slice %649 {offsets = [0, 0], sizes = [16, 16], strides = [1, 1]} : vector<18x16xf32> to vector<16x16xf32>
    %793 = vector.broadcast %791 : f32 to vector<16x16xf32>
    %794 = arith.mulf %793, %792 : vector<16x16xf32>
    %795 = arith.addf %790, %794 : vector<16x16xf32>
    %c56_117 = arith.constant 56 : index
    %796 = memref.load %arg4[%c56_117] : memref<72xf32, #tpu.memory_space<smem>>
    %797 = vector.extract_strided_slice %650 {offsets = [0, 0], sizes = [16, 16], strides = [1, 1]} : vector<18x16xf32> to vector<16x16xf32>
    %798 = vector.broadcast %796 : f32 to vector<16x16xf32>
    %799 = arith.mulf %798, %797 : vector<16x16xf32>
    %800 = arith.addf %795, %799 : vector<16x16xf32>
    %c57_118 = arith.constant 57 : index
    %801 = memref.load %arg4[%c57_118] : memref<72xf32, #tpu.memory_space<smem>>
    %802 = vector.extract_strided_slice %648 {offsets = [1, 0], sizes = [16, 16], strides = [1, 1]} : vector<18x16xf32> to vector<16x16xf32>
    %803 = vector.broadcast %801 : f32 to vector<16x16xf32>
    %804 = arith.mulf %803, %802 : vector<16x16xf32>
    %805 = arith.addf %644, %804 : vector<16x16xf32>
    %c58_119 = arith.constant 58 : index
    %806 = memref.load %arg4[%c58_119] : memref<72xf32, #tpu.memory_space<smem>>
    %807 = vector.extract_strided_slice %649 {offsets = [1, 0], sizes = [16, 16], strides = [1, 1]} : vector<18x16xf32> to vector<16x16xf32>
    %808 = vector.broadcast %806 : f32 to vector<16x16xf32>
    %809 = arith.mulf %808, %807 : vector<16x16xf32>
    %810 = arith.addf %805, %809 : vector<16x16xf32>
    %c59_120 = arith.constant 59 : index
    %811 = memref.load %arg4[%c59_120] : memref<72xf32, #tpu.memory_space<smem>>
    %812 = vector.extract_strided_slice %650 {offsets = [1, 0], sizes = [16, 16], strides = [1, 1]} : vector<18x16xf32> to vector<16x16xf32>
    %813 = vector.broadcast %811 : f32 to vector<16x16xf32>
    %814 = arith.mulf %813, %812 : vector<16x16xf32>
    %815 = arith.addf %810, %814 : vector<16x16xf32>
    %c60_121 = arith.constant 60 : index
    %816 = memref.load %arg4[%c60_121] : memref<72xf32, #tpu.memory_space<smem>>
    %817 = vector.extract_strided_slice %648 {offsets = [2, 0], sizes = [16, 16], strides = [1, 1]} : vector<18x16xf32> to vector<16x16xf32>
    %818 = vector.broadcast %816 : f32 to vector<16x16xf32>
    %819 = arith.mulf %818, %817 : vector<16x16xf32>
    %820 = arith.addf %645, %819 : vector<16x16xf32>
    %c61_122 = arith.constant 61 : index
    %821 = memref.load %arg4[%c61_122] : memref<72xf32, #tpu.memory_space<smem>>
    %822 = vector.extract_strided_slice %649 {offsets = [2, 0], sizes = [16, 16], strides = [1, 1]} : vector<18x16xf32> to vector<16x16xf32>
    %823 = vector.broadcast %821 : f32 to vector<16x16xf32>
    %824 = arith.mulf %823, %822 : vector<16x16xf32>
    %825 = arith.addf %820, %824 : vector<16x16xf32>
    %c62_123 = arith.constant 62 : index
    %826 = memref.load %arg4[%c62_123] : memref<72xf32, #tpu.memory_space<smem>>
    %827 = vector.extract_strided_slice %650 {offsets = [2, 0], sizes = [16, 16], strides = [1, 1]} : vector<18x16xf32> to vector<16x16xf32>
    %828 = vector.broadcast %826 : f32 to vector<16x16xf32>
    %829 = arith.mulf %828, %827 : vector<16x16xf32>
    %830 = arith.addf %825, %829 : vector<16x16xf32>
    %c1_124 = arith.constant 1 : index
    %c0_125 = arith.constant 0 : index
    %c0_126 = arith.constant 0 : index
    %831 = vector.load %arg13[%c1_124, %c0_125, %c0_126] : memref<2x18x18xf32, #tpu.memory_space<vmem>>, vector<1x18x18xf32>
    %832 = vector.shape_cast %831 : vector<1x18x18xf32> to vector<18x18xf32>
    %833 = vector.extract_strided_slice %832 {offsets = [0, 0], sizes = [18, 16], strides = [1, 1]} : vector<18x18xf32> to vector<18x16xf32>
    %834 = vector.extract_strided_slice %832 {offsets = [0, 1], sizes = [18, 16], strides = [1, 1]} : vector<18x18xf32> to vector<18x16xf32>
    %835 = vector.extract_strided_slice %832 {offsets = [0, 2], sizes = [18, 16], strides = [1, 1]} : vector<18x18xf32> to vector<18x16xf32>
    %c9_127 = arith.constant 9 : index
    %836 = memref.load %arg4[%c9_127] : memref<72xf32, #tpu.memory_space<smem>>
    %837 = vector.extract_strided_slice %833 {offsets = [0, 0], sizes = [16, 16], strides = [1, 1]} : vector<18x16xf32> to vector<16x16xf32>
    %838 = vector.broadcast %836 : f32 to vector<16x16xf32>
    %839 = arith.mulf %838, %837 : vector<16x16xf32>
    %840 = arith.addf %665, %839 : vector<16x16xf32>
    %c10_128 = arith.constant 10 : index
    %841 = memref.load %arg4[%c10_128] : memref<72xf32, #tpu.memory_space<smem>>
    %842 = vector.extract_strided_slice %834 {offsets = [0, 0], sizes = [16, 16], strides = [1, 1]} : vector<18x16xf32> to vector<16x16xf32>
    %843 = vector.broadcast %841 : f32 to vector<16x16xf32>
    %844 = arith.mulf %843, %842 : vector<16x16xf32>
    %845 = arith.addf %840, %844 : vector<16x16xf32>
    %c11_129 = arith.constant 11 : index
    %846 = memref.load %arg4[%c11_129] : memref<72xf32, #tpu.memory_space<smem>>
    %847 = vector.extract_strided_slice %835 {offsets = [0, 0], sizes = [16, 16], strides = [1, 1]} : vector<18x16xf32> to vector<16x16xf32>
    %848 = vector.broadcast %846 : f32 to vector<16x16xf32>
    %849 = arith.mulf %848, %847 : vector<16x16xf32>
    %850 = arith.addf %845, %849 : vector<16x16xf32>
    %c12_130 = arith.constant 12 : index
    %851 = memref.load %arg4[%c12_130] : memref<72xf32, #tpu.memory_space<smem>>
    %852 = vector.extract_strided_slice %833 {offsets = [1, 0], sizes = [16, 16], strides = [1, 1]} : vector<18x16xf32> to vector<16x16xf32>
    %853 = vector.broadcast %851 : f32 to vector<16x16xf32>
    %854 = arith.mulf %853, %852 : vector<16x16xf32>
    %855 = arith.addf %680, %854 : vector<16x16xf32>
    %c13_131 = arith.constant 13 : index
    %856 = memref.load %arg4[%c13_131] : memref<72xf32, #tpu.memory_space<smem>>
    %857 = vector.extract_strided_slice %834 {offsets = [1, 0], sizes = [16, 16], strides = [1, 1]} : vector<18x16xf32> to vector<16x16xf32>
    %858 = vector.broadcast %856 : f32 to vector<16x16xf32>
    %859 = arith.mulf %858, %857 : vector<16x16xf32>
    %860 = arith.addf %855, %859 : vector<16x16xf32>
    %c14_132 = arith.constant 14 : index
    %861 = memref.load %arg4[%c14_132] : memref<72xf32, #tpu.memory_space<smem>>
    %862 = vector.extract_strided_slice %835 {offsets = [1, 0], sizes = [16, 16], strides = [1, 1]} : vector<18x16xf32> to vector<16x16xf32>
    %863 = vector.broadcast %861 : f32 to vector<16x16xf32>
    %864 = arith.mulf %863, %862 : vector<16x16xf32>
    %865 = arith.addf %860, %864 : vector<16x16xf32>
    %c15_133 = arith.constant 15 : index
    %866 = memref.load %arg4[%c15_133] : memref<72xf32, #tpu.memory_space<smem>>
    %867 = vector.extract_strided_slice %833 {offsets = [2, 0], sizes = [16, 16], strides = [1, 1]} : vector<18x16xf32> to vector<16x16xf32>
    %868 = vector.broadcast %866 : f32 to vector<16x16xf32>
    %869 = arith.mulf %868, %867 : vector<16x16xf32>
    %870 = arith.addf %695, %869 : vector<16x16xf32>
    %c16_134 = arith.constant 16 : index
    %871 = memref.load %arg4[%c16_134] : memref<72xf32, #tpu.memory_space<smem>>
    %872 = vector.extract_strided_slice %834 {offsets = [2, 0], sizes = [16, 16], strides = [1, 1]} : vector<18x16xf32> to vector<16x16xf32>
    %873 = vector.broadcast %871 : f32 to vector<16x16xf32>
    %874 = arith.mulf %873, %872 : vector<16x16xf32>
    %875 = arith.addf %870, %874 : vector<16x16xf32>
    %c17_135 = arith.constant 17 : index
    %876 = memref.load %arg4[%c17_135] : memref<72xf32, #tpu.memory_space<smem>>
    %877 = vector.extract_strided_slice %835 {offsets = [2, 0], sizes = [16, 16], strides = [1, 1]} : vector<18x16xf32> to vector<16x16xf32>
    %878 = vector.broadcast %876 : f32 to vector<16x16xf32>
    %879 = arith.mulf %878, %877 : vector<16x16xf32>
    %880 = arith.addf %875, %879 : vector<16x16xf32>
    %c27_136 = arith.constant 27 : index
    %881 = memref.load %arg4[%c27_136] : memref<72xf32, #tpu.memory_space<smem>>
    %882 = vector.extract_strided_slice %833 {offsets = [0, 0], sizes = [16, 16], strides = [1, 1]} : vector<18x16xf32> to vector<16x16xf32>
    %883 = vector.broadcast %881 : f32 to vector<16x16xf32>
    %884 = arith.mulf %883, %882 : vector<16x16xf32>
    %885 = arith.addf %710, %884 : vector<16x16xf32>
    %c28_137 = arith.constant 28 : index
    %886 = memref.load %arg4[%c28_137] : memref<72xf32, #tpu.memory_space<smem>>
    %887 = vector.extract_strided_slice %834 {offsets = [0, 0], sizes = [16, 16], strides = [1, 1]} : vector<18x16xf32> to vector<16x16xf32>
    %888 = vector.broadcast %886 : f32 to vector<16x16xf32>
    %889 = arith.mulf %888, %887 : vector<16x16xf32>
    %890 = arith.addf %885, %889 : vector<16x16xf32>
    %c29_138 = arith.constant 29 : index
    %891 = memref.load %arg4[%c29_138] : memref<72xf32, #tpu.memory_space<smem>>
    %892 = vector.extract_strided_slice %835 {offsets = [0, 0], sizes = [16, 16], strides = [1, 1]} : vector<18x16xf32> to vector<16x16xf32>
    %893 = vector.broadcast %891 : f32 to vector<16x16xf32>
    %894 = arith.mulf %893, %892 : vector<16x16xf32>
    %895 = arith.addf %890, %894 : vector<16x16xf32>
    %c30_139 = arith.constant 30 : index
    %896 = memref.load %arg4[%c30_139] : memref<72xf32, #tpu.memory_space<smem>>
    %897 = vector.extract_strided_slice %833 {offsets = [1, 0], sizes = [16, 16], strides = [1, 1]} : vector<18x16xf32> to vector<16x16xf32>
    %898 = vector.broadcast %896 : f32 to vector<16x16xf32>
    %899 = arith.mulf %898, %897 : vector<16x16xf32>
    %900 = arith.addf %725, %899 : vector<16x16xf32>
    %c31_140 = arith.constant 31 : index
    %901 = memref.load %arg4[%c31_140] : memref<72xf32, #tpu.memory_space<smem>>
    %902 = vector.extract_strided_slice %834 {offsets = [1, 0], sizes = [16, 16], strides = [1, 1]} : vector<18x16xf32> to vector<16x16xf32>
    %903 = vector.broadcast %901 : f32 to vector<16x16xf32>
    %904 = arith.mulf %903, %902 : vector<16x16xf32>
    %905 = arith.addf %900, %904 : vector<16x16xf32>
    %c32_141 = arith.constant 32 : index
    %906 = memref.load %arg4[%c32_141] : memref<72xf32, #tpu.memory_space<smem>>
    %907 = vector.extract_strided_slice %835 {offsets = [1, 0], sizes = [16, 16], strides = [1, 1]} : vector<18x16xf32> to vector<16x16xf32>
    %908 = vector.broadcast %906 : f32 to vector<16x16xf32>
    %909 = arith.mulf %908, %907 : vector<16x16xf32>
    %910 = arith.addf %905, %909 : vector<16x16xf32>
    %c33_142 = arith.constant 33 : index
    %911 = memref.load %arg4[%c33_142] : memref<72xf32, #tpu.memory_space<smem>>
    %912 = vector.extract_strided_slice %833 {offsets = [2, 0], sizes = [16, 16], strides = [1, 1]} : vector<18x16xf32> to vector<16x16xf32>
    %913 = vector.broadcast %911 : f32 to vector<16x16xf32>
    %914 = arith.mulf %913, %912 : vector<16x16xf32>
    %915 = arith.addf %740, %914 : vector<16x16xf32>
    %c34_143 = arith.constant 34 : index
    %916 = memref.load %arg4[%c34_143] : memref<72xf32, #tpu.memory_space<smem>>
    %917 = vector.extract_strided_slice %834 {offsets = [2, 0], sizes = [16, 16], strides = [1, 1]} : vector<18x16xf32> to vector<16x16xf32>
    %918 = vector.broadcast %916 : f32 to vector<16x16xf32>
    %919 = arith.mulf %918, %917 : vector<16x16xf32>
    %920 = arith.addf %915, %919 : vector<16x16xf32>
    %c35_144 = arith.constant 35 : index
    %921 = memref.load %arg4[%c35_144] : memref<72xf32, #tpu.memory_space<smem>>
    %922 = vector.extract_strided_slice %835 {offsets = [2, 0], sizes = [16, 16], strides = [1, 1]} : vector<18x16xf32> to vector<16x16xf32>
    %923 = vector.broadcast %921 : f32 to vector<16x16xf32>
    %924 = arith.mulf %923, %922 : vector<16x16xf32>
    %925 = arith.addf %920, %924 : vector<16x16xf32>
    %c45_145 = arith.constant 45 : index
    %926 = memref.load %arg4[%c45_145] : memref<72xf32, #tpu.memory_space<smem>>
    %927 = vector.extract_strided_slice %833 {offsets = [0, 0], sizes = [16, 16], strides = [1, 1]} : vector<18x16xf32> to vector<16x16xf32>
    %928 = vector.broadcast %926 : f32 to vector<16x16xf32>
    %929 = arith.mulf %928, %927 : vector<16x16xf32>
    %930 = arith.addf %755, %929 : vector<16x16xf32>
    %c46_146 = arith.constant 46 : index
    %931 = memref.load %arg4[%c46_146] : memref<72xf32, #tpu.memory_space<smem>>
    %932 = vector.extract_strided_slice %834 {offsets = [0, 0], sizes = [16, 16], strides = [1, 1]} : vector<18x16xf32> to vector<16x16xf32>
    %933 = vector.broadcast %931 : f32 to vector<16x16xf32>
    %934 = arith.mulf %933, %932 : vector<16x16xf32>
    %935 = arith.addf %930, %934 : vector<16x16xf32>
    %c47_147 = arith.constant 47 : index
    %936 = memref.load %arg4[%c47_147] : memref<72xf32, #tpu.memory_space<smem>>
    %937 = vector.extract_strided_slice %835 {offsets = [0, 0], sizes = [16, 16], strides = [1, 1]} : vector<18x16xf32> to vector<16x16xf32>
    %938 = vector.broadcast %936 : f32 to vector<16x16xf32>
    %939 = arith.mulf %938, %937 : vector<16x16xf32>
    %940 = arith.addf %935, %939 : vector<16x16xf32>
    %c48_148 = arith.constant 48 : index
    %941 = memref.load %arg4[%c48_148] : memref<72xf32, #tpu.memory_space<smem>>
    %942 = vector.extract_strided_slice %833 {offsets = [1, 0], sizes = [16, 16], strides = [1, 1]} : vector<18x16xf32> to vector<16x16xf32>
    %943 = vector.broadcast %941 : f32 to vector<16x16xf32>
    %944 = arith.mulf %943, %942 : vector<16x16xf32>
    %945 = arith.addf %770, %944 : vector<16x16xf32>
    %c49_149 = arith.constant 49 : index
    %946 = memref.load %arg4[%c49_149] : memref<72xf32, #tpu.memory_space<smem>>
    %947 = vector.extract_strided_slice %834 {offsets = [1, 0], sizes = [16, 16], strides = [1, 1]} : vector<18x16xf32> to vector<16x16xf32>
    %948 = vector.broadcast %946 : f32 to vector<16x16xf32>
    %949 = arith.mulf %948, %947 : vector<16x16xf32>
    %950 = arith.addf %945, %949 : vector<16x16xf32>
    %c50_150 = arith.constant 50 : index
    %951 = memref.load %arg4[%c50_150] : memref<72xf32, #tpu.memory_space<smem>>
    %952 = vector.extract_strided_slice %835 {offsets = [1, 0], sizes = [16, 16], strides = [1, 1]} : vector<18x16xf32> to vector<16x16xf32>
    %953 = vector.broadcast %951 : f32 to vector<16x16xf32>
    %954 = arith.mulf %953, %952 : vector<16x16xf32>
    %955 = arith.addf %950, %954 : vector<16x16xf32>
    %c51_151 = arith.constant 51 : index
    %956 = memref.load %arg4[%c51_151] : memref<72xf32, #tpu.memory_space<smem>>
    %957 = vector.extract_strided_slice %833 {offsets = [2, 0], sizes = [16, 16], strides = [1, 1]} : vector<18x16xf32> to vector<16x16xf32>
    %958 = vector.broadcast %956 : f32 to vector<16x16xf32>
    %959 = arith.mulf %958, %957 : vector<16x16xf32>
    %960 = arith.addf %785, %959 : vector<16x16xf32>
    %c52_152 = arith.constant 52 : index
    %961 = memref.load %arg4[%c52_152] : memref<72xf32, #tpu.memory_space<smem>>
    %962 = vector.extract_strided_slice %834 {offsets = [2, 0], sizes = [16, 16], strides = [1, 1]} : vector<18x16xf32> to vector<16x16xf32>
    %963 = vector.broadcast %961 : f32 to vector<16x16xf32>
    %964 = arith.mulf %963, %962 : vector<16x16xf32>
    %965 = arith.addf %960, %964 : vector<16x16xf32>
    %c53_153 = arith.constant 53 : index
    %966 = memref.load %arg4[%c53_153] : memref<72xf32, #tpu.memory_space<smem>>
    %967 = vector.extract_strided_slice %835 {offsets = [2, 0], sizes = [16, 16], strides = [1, 1]} : vector<18x16xf32> to vector<16x16xf32>
    %968 = vector.broadcast %966 : f32 to vector<16x16xf32>
    %969 = arith.mulf %968, %967 : vector<16x16xf32>
    %970 = arith.addf %965, %969 : vector<16x16xf32>
    %c63_154 = arith.constant 63 : index
    %971 = memref.load %arg4[%c63_154] : memref<72xf32, #tpu.memory_space<smem>>
    %972 = vector.extract_strided_slice %833 {offsets = [0, 0], sizes = [16, 16], strides = [1, 1]} : vector<18x16xf32> to vector<16x16xf32>
    %973 = vector.broadcast %971 : f32 to vector<16x16xf32>
    %974 = arith.mulf %973, %972 : vector<16x16xf32>
    %975 = arith.addf %800, %974 : vector<16x16xf32>
    %c64_155 = arith.constant 64 : index
    %976 = memref.load %arg4[%c64_155] : memref<72xf32, #tpu.memory_space<smem>>
    %977 = vector.extract_strided_slice %834 {offsets = [0, 0], sizes = [16, 16], strides = [1, 1]} : vector<18x16xf32> to vector<16x16xf32>
    %978 = vector.broadcast %976 : f32 to vector<16x16xf32>
    %979 = arith.mulf %978, %977 : vector<16x16xf32>
    %980 = arith.addf %975, %979 : vector<16x16xf32>
    %c65_156 = arith.constant 65 : index
    %981 = memref.load %arg4[%c65_156] : memref<72xf32, #tpu.memory_space<smem>>
    %982 = vector.extract_strided_slice %835 {offsets = [0, 0], sizes = [16, 16], strides = [1, 1]} : vector<18x16xf32> to vector<16x16xf32>
    %983 = vector.broadcast %981 : f32 to vector<16x16xf32>
    %984 = arith.mulf %983, %982 : vector<16x16xf32>
    %985 = arith.addf %980, %984 : vector<16x16xf32>
    %c66_157 = arith.constant 66 : index
    %986 = memref.load %arg4[%c66_157] : memref<72xf32, #tpu.memory_space<smem>>
    %987 = vector.extract_strided_slice %833 {offsets = [1, 0], sizes = [16, 16], strides = [1, 1]} : vector<18x16xf32> to vector<16x16xf32>
    %988 = vector.broadcast %986 : f32 to vector<16x16xf32>
    %989 = arith.mulf %988, %987 : vector<16x16xf32>
    %990 = arith.addf %815, %989 : vector<16x16xf32>
    %c67_158 = arith.constant 67 : index
    %991 = memref.load %arg4[%c67_158] : memref<72xf32, #tpu.memory_space<smem>>
    %992 = vector.extract_strided_slice %834 {offsets = [1, 0], sizes = [16, 16], strides = [1, 1]} : vector<18x16xf32> to vector<16x16xf32>
    %993 = vector.broadcast %991 : f32 to vector<16x16xf32>
    %994 = arith.mulf %993, %992 : vector<16x16xf32>
    %995 = arith.addf %990, %994 : vector<16x16xf32>
    %c68_159 = arith.constant 68 : index
    %996 = memref.load %arg4[%c68_159] : memref<72xf32, #tpu.memory_space<smem>>
    %997 = vector.extract_strided_slice %835 {offsets = [1, 0], sizes = [16, 16], strides = [1, 1]} : vector<18x16xf32> to vector<16x16xf32>
    %998 = vector.broadcast %996 : f32 to vector<16x16xf32>
    %999 = arith.mulf %998, %997 : vector<16x16xf32>
    %1000 = arith.addf %995, %999 : vector<16x16xf32>
    %c69_160 = arith.constant 69 : index
    %1001 = memref.load %arg4[%c69_160] : memref<72xf32, #tpu.memory_space<smem>>
    %1002 = vector.extract_strided_slice %833 {offsets = [2, 0], sizes = [16, 16], strides = [1, 1]} : vector<18x16xf32> to vector<16x16xf32>
    %1003 = vector.broadcast %1001 : f32 to vector<16x16xf32>
    %1004 = arith.mulf %1003, %1002 : vector<16x16xf32>
    %1005 = arith.addf %830, %1004 : vector<16x16xf32>
    %c70_161 = arith.constant 70 : index
    %1006 = memref.load %arg4[%c70_161] : memref<72xf32, #tpu.memory_space<smem>>
    %1007 = vector.extract_strided_slice %834 {offsets = [2, 0], sizes = [16, 16], strides = [1, 1]} : vector<18x16xf32> to vector<16x16xf32>
    %1008 = vector.broadcast %1006 : f32 to vector<16x16xf32>
    %1009 = arith.mulf %1008, %1007 : vector<16x16xf32>
    %1010 = arith.addf %1005, %1009 : vector<16x16xf32>
    %c71_162 = arith.constant 71 : index
    %1011 = memref.load %arg4[%c71_162] : memref<72xf32, #tpu.memory_space<smem>>
    %1012 = vector.extract_strided_slice %835 {offsets = [2, 0], sizes = [16, 16], strides = [1, 1]} : vector<18x16xf32> to vector<16x16xf32>
    %1013 = vector.broadcast %1011 : f32 to vector<16x16xf32>
    %1014 = arith.mulf %1013, %1012 : vector<16x16xf32>
    %1015 = arith.addf %1010, %1014 : vector<16x16xf32>
    %1016 = arith.addf %850, %865 : vector<16x16xf32>
    %1017 = arith.addf %1016, %880 : vector<16x16xf32>
    %c0_163 = arith.constant 0 : index
    %1018 = memref.load %arg5[%c0_163] : memref<4xf32, #tpu.memory_space<smem>>
    %1019 = vector.broadcast %1018 : f32 to vector<16x16xf32>
    %1020 = arith.mulf %1017, %1019 : vector<16x16xf32>
    %c0_164 = arith.constant 0 : index
    %1021 = memref.load %arg6[%c0_164] : memref<4xf32, #tpu.memory_space<smem>>
    %1022 = vector.broadcast %1021 : f32 to vector<16x16xf32>
    %1023 = arith.addf %1020, %1022 : vector<16x16xf32>
    %cst_165 = arith.constant 0.000000e+00 : f32
    %1024 = vector.broadcast %cst_165 : f32 to vector<16x16xf32>
    %1025 = arith.maximumf %1023, %1024 : vector<16x16xf32>
    %c0_166 = arith.constant 0 : index
    %c0_167 = arith.constant 0 : index
    %c0_168 = arith.constant 0 : index
    %c0_169 = arith.constant 0 : index
    %1026 = vector.load %arg11[%c0_166, %c0_167, %c0_168, %c0_169] : memref<1x4x16x16xf32, #tpu.memory_space<vmem>>, vector<1x1x16x16xf32>
    %1027 = vector.shape_cast %1026 : vector<1x1x16x16xf32> to vector<16x16xf32>
    %1028 = vector.shape_cast %1025 : vector<16x16xf32> to vector<1x1x16x16xf32>
    tpu.vector_store %arg11[%c0_166, %c0_167, %c0_168, %c0_169], %1028 {strides = array<i32>} : memref<1x4x16x16xf32, #tpu.memory_space<vmem>>, vector<1x1x16x16xf32>,
    %1029 = arith.addf %895, %910 : vector<16x16xf32>
    %1030 = arith.addf %1029, %925 : vector<16x16xf32>
    %c1_170 = arith.constant 1 : index
    %1031 = memref.load %arg5[%c1_170] : memref<4xf32, #tpu.memory_space<smem>>
    %1032 = vector.broadcast %1031 : f32 to vector<16x16xf32>
    %1033 = arith.mulf %1030, %1032 : vector<16x16xf32>
    %c1_171 = arith.constant 1 : index
    %1034 = memref.load %arg6[%c1_171] : memref<4xf32, #tpu.memory_space<smem>>
    %1035 = vector.broadcast %1034 : f32 to vector<16x16xf32>
    %1036 = arith.addf %1033, %1035 : vector<16x16xf32>
    %cst_172 = arith.constant 0.000000e+00 : f32
    %1037 = vector.broadcast %cst_172 : f32 to vector<16x16xf32>
    %1038 = arith.maximumf %1036, %1037 : vector<16x16xf32>
    %c0_173 = arith.constant 0 : index
    %c1_174 = arith.constant 1 : index
    %c0_175 = arith.constant 0 : index
    %c0_176 = arith.constant 0 : index
    %1039 = vector.load %arg11[%c0_173, %c1_174, %c0_175, %c0_176] : memref<1x4x16x16xf32, #tpu.memory_space<vmem>>, vector<1x1x16x16xf32>
    %1040 = vector.shape_cast %1039 : vector<1x1x16x16xf32> to vector<16x16xf32>
    %1041 = vector.shape_cast %1038 : vector<16x16xf32> to vector<1x1x16x16xf32>
    tpu.vector_store %arg11[%c0_173, %c1_174, %c0_175, %c0_176], %1041 {strides = array<i32>} : memref<1x4x16x16xf32, #tpu.memory_space<vmem>>, vector<1x1x16x16xf32>,
    %1042 = arith.addf %940, %955 : vector<16x16xf32>
    %1043 = arith.addf %1042, %970 : vector<16x16xf32>
    %c2_177 = arith.constant 2 : index
    %1044 = memref.load %arg5[%c2_177] : memref<4xf32, #tpu.memory_space<smem>>
    %1045 = vector.broadcast %1044 : f32 to vector<16x16xf32>
    %1046 = arith.mulf %1043, %1045 : vector<16x16xf32>
    %c2_178 = arith.constant 2 : index
    %1047 = memref.load %arg6[%c2_178] : memref<4xf32, #tpu.memory_space<smem>>
    %1048 = vector.broadcast %1047 : f32 to vector<16x16xf32>
    %1049 = arith.addf %1046, %1048 : vector<16x16xf32>
    %cst_179 = arith.constant 0.000000e+00 : f32
    %1050 = vector.broadcast %cst_179 : f32 to vector<16x16xf32>
    %1051 = arith.maximumf %1049, %1050 : vector<16x16xf32>
    %c0_180 = arith.constant 0 : index
    %c2_181 = arith.constant 2 : index
    %c0_182 = arith.constant 0 : index
    %c0_183 = arith.constant 0 : index
    %1052 = vector.load %arg11[%c0_180, %c2_181, %c0_182, %c0_183] : memref<1x4x16x16xf32, #tpu.memory_space<vmem>>, vector<1x1x16x16xf32>
    %1053 = vector.shape_cast %1052 : vector<1x1x16x16xf32> to vector<16x16xf32>
    %1054 = vector.shape_cast %1051 : vector<16x16xf32> to vector<1x1x16x16xf32>
    tpu.vector_store %arg11[%c0_180, %c2_181, %c0_182, %c0_183], %1054 {strides = array<i32>} : memref<1x4x16x16xf32, #tpu.memory_space<vmem>>, vector<1x1x16x16xf32>,
    %1055 = arith.addf %985, %1000 : vector<16x16xf32>
    %1056 = arith.addf %1055, %1015 : vector<16x16xf32>
    %c3_184 = arith.constant 3 : index
    %1057 = memref.load %arg5[%c3_184] : memref<4xf32, #tpu.memory_space<smem>>
    %1058 = vector.broadcast %1057 : f32 to vector<16x16xf32>
    %1059 = arith.mulf %1056, %1058 : vector<16x16xf32>
    %c3_185 = arith.constant 3 : index
    %1060 = memref.load %arg6[%c3_185] : memref<4xf32, #tpu.memory_space<smem>>
    %1061 = vector.broadcast %1060 : f32 to vector<16x16xf32>
    %1062 = arith.addf %1059, %1061 : vector<16x16xf32>
    %cst_186 = arith.constant 0.000000e+00 : f32
    %1063 = vector.broadcast %cst_186 : f32 to vector<16x16xf32>
    %1064 = arith.maximumf %1062, %1063 : vector<16x16xf32>
    %c0_187 = arith.constant 0 : index
    %c3_188 = arith.constant 3 : index
    %c0_189 = arith.constant 0 : index
    %c0_190 = arith.constant 0 : index
    %1065 = vector.load %arg11[%c0_187, %c3_188, %c0_189, %c0_190] : memref<1x4x16x16xf32, #tpu.memory_space<vmem>>, vector<1x1x16x16xf32>
    %1066 = vector.shape_cast %1065 : vector<1x1x16x16xf32> to vector<16x16xf32>
    %1067 = vector.shape_cast %1064 : vector<16x16xf32> to vector<1x1x16x16xf32>
    tpu.vector_store %arg11[%c0_187, %c3_188, %c0_189, %c0_190], %1067 {strides = array<i32>} : memref<1x4x16x16xf32, #tpu.memory_space<vmem>>, vector<1x1x16x16xf32>,
    return
  }
  func.func @transform_0(%arg0: i32) -> i32 {
    %c0_i32 = arith.constant 0 : i32
    %c0_i32_0 = arith.constant 0 : i32
    return %c0_i32 : i32
  }
  func.func @transform_1(%arg0: i32) -> i32 {
    %c0_i32 = arith.constant 0 : i32
    %c0_i32_0 = arith.constant 0 : i32
    return %c0_i32 : i32
  }
  func.func @transform_2(%arg0: i32) -> i32 {
    %c0_i32 = arith.constant 0 : i32
    %c0_i32_0 = arith.constant 0 : i32
    return %c0_i32 : i32
  }
  func.func @transform_3(%arg0: i32) -> i32 {
    %c0_i32 = arith.constant 0 : i32
    %c0_i32_0 = arith.constant 0 : i32
    return %c0_i32 : i32
  }
  func.func @transform_4(%arg0: i32) -> i32 {
    %c0_i32 = arith.constant 0 : i32
    %c0_i32_0 = arith.constant 0 : i32
    return %c0_i32 : i32
  }
  func.func @transform_5(%arg0: i32) -> i32 {
    %c0_i32 = arith.constant 0 : i32
    %c0_i32_0 = arith.constant 0 : i32
    return %c0_i32 : i32
  }
  func.func @transform_6(%arg0: i32) -> (i32, i32) {
    %c0_i32 = arith.constant 0 : i32
    %c0_i32_0 = arith.constant 0 : i32
    %c0_i32_1 = arith.constant 0 : i32
    return %c0_i32, %c0_i32_0 : i32, i32
  }
  func.func @transform_7(%arg0: i32) -> (i32, i32) {
    %c0_i32 = arith.constant 0 : i32
    %c0_i32_0 = arith.constant 0 : i32
    %c0_i32_1 = arith.constant 0 : i32
    return %c0_i32, %c0_i32_0 : i32, i32
  }
  func.func @transform_8(%arg0: i32) -> (i32, i32, i32, i32) {
    %c0_i32 = arith.constant 0 : i32
    %c0_i32_0 = arith.constant 0 : i32
    %c0_i32_1 = arith.constant 0 : i32
    %c0_i32_2 = arith.constant 0 : i32
    return %arg0, %c0_i32, %c0_i32_0, %c0_i32_1 : i32, i32, i32, i32
  }
  func.func @transform_9(%arg0: i32) -> (i32, i32, i32, i32) {
    %c0_i32 = arith.constant 0 : i32
    %c0_i32_0 = arith.constant 0 : i32
    %c0_i32_1 = arith.constant 0 : i32
    %c0_i32_2 = arith.constant 0 : i32
    return %arg0, %c0_i32, %c0_i32_0, %c0_i32_1 : i32, i32, i32, i32
  }
  func.func @transform_10(%arg0: i32) -> (i32, i32, i32, i32) {
    %c0_i32 = arith.constant 0 : i32
    %c0_i32_0 = arith.constant 0 : i32
    %c0_i32_1 = arith.constant 0 : i32
    %c0_i32_2 = arith.constant 0 : i32
    return %arg0, %c0_i32, %c0_i32_0, %c0_i32_1 : i32, i32, i32, i32
  }
}

</mosaic_0001>

<llo_original>
// kernel: tpu_custom_call.1
$region0: #{tpu_custom_call.1}
  #allocation0 [shape = 'u32[]', space=smem, size = 0x4, offset = 0x4, fixed_abs, tag = 'smem constant byte address 0x4 - core index']
  #allocation1 [shape = 'u32[144,128]{1,0:T(1,128)}', space=vmem, size = 0x12000, scoped, tag = 'internal scratch']
  #allocation2 [shape = 'f32[4,18,18]{2,1,0:T(8,128)}', space=vmem, size = 0xc000, scoped, tag = 'scratch operand']
  #allocation3 [shape = 'f32[2,18,18]{2,1,0:T(8,128)}', space=vmem, size = 0x6000, scoped, tag = 'scratch operand']
  %s0 = inlined_call_operand.vmem [shape: f32[72], index: 0, kind: input, shape index: {}]
  %s1 = inlined_call_operand.vmem [shape: f32[2], index: 1, kind: input, shape index: {}]
  %s2 = inlined_call_operand.vmem [shape: f32[2], index: 2, kind: input, shape index: {}]
  %s3 = inlined_call_operand.vmem [shape: f32[72], index: 3, kind: input, shape index: {}]
  %s4 = inlined_call_operand.vmem [shape: f32[4], index: 4, kind: input, shape index: {}]
  %s5 = inlined_call_operand.vmem [shape: f32[4], index: 5, kind: input, shape index: {}]
  %s6 = inlined_call_operand.vmem [shape: f32[16,8], index: 6, kind: input, shape index: {}]
  %s7 = inlined_call_operand.vmem [shape: f32[8,16], index: 7, kind: input, shape index: {}]
  %s8 = inlined_call_operand.vmem [shape: f32[2,2,8,8], index: 8, kind: input, shape index: {}]
  %s9 = inlined_call_operand.hbm [shape: f32[2,2,16,16], index: 9, kind: input, shape index: {}]
  %s10 = inlined_call_operand.hbm [shape: f32[2,4,16,16], index: 10, kind: output, shape index: {}]
  %s11 = sld [smem:[#allocation0]]
  $region101: #{tpu_custom_call.1} parent=0
    _
  %s13 = ssub.s32 1, %s11
  %s14 = scalar_select 0, %s13, %s11
  $region1: #{tpu_custom_call.1} parent=0
    #allocation4 [shape = 'u8[512]{0}', space=smem, size = 0x200, scoped, tag = 'input window, operand 0, single buffered']
    #allocation5 [shape = 's32[2]{0}', space=sflag, size = 0x8, scoped, tag = 'scoped memory for tpu_custom_call.1']
    #allocation6 [shape = 's32[2]{0}', space=sflag, size = 0x8, scoped, tag = 'scoped memory for tpu_custom_call.1']
    #allocation7 [shape = 's32[2]{0}', space=sflag, size = 0x8, scoped, tag = 'scoped memory for tpu_custom_call.1']
    #allocation8 [shape = 'u8[512]{0}', space=smem, size = 0x200, scoped, tag = 'input window, operand 1, single buffered']
    #allocation9 [shape = 's32[1]{0}', space=sflag, size = 0x4, scoped, tag = 'scoped memory for tpu_custom_call.1']
    #allocation10 [shape = 'u8[512]{0}', space=smem, size = 0x200, scoped, tag = 'input window, operand 2, single buffered']
    #allocation11 [shape = 'u8[512]{0}', space=smem, size = 0x200, scoped, tag = 'input window, operand 3, single buffered']
    #allocation12 [shape = 's32[1]{0}', space=sflag, size = 0x4, scoped, tag = 'scoped memory for tpu_custom_call.1']
    #allocation13 [shape = 'u8[512]{0}', space=smem, size = 0x200, scoped, tag = 'input window, operand 4, single buffered']
    #allocation14 [shape = 'u8[512]{0}', space=smem, size = 0x200, scoped, tag = 'input window, operand 5, single buffered']
    #allocation15 [shape = 's32[1]{0}', space=sflag, size = 0x4, scoped, tag = 'scoped memory for tpu_custom_call.1']
    #allocation16 [shape = 'u8[32768]{0}', space=vmem, size = 0x8000, scoped, tag = 'input window, operand 9']
    #allocation17 [shape = 'u8[65536]{0}', space=vmem, size = 0x10000, scoped, tag = 'output window, operand 0']
    %15 = vsyncpa [#allocation7], 0
    %16 = vsyncpa [#allocation9], 0
    %17 = vsyncpa [#allocation12], 0
    %18 = vsyncpa [#allocation15], 0
    %19 = vsyncpa [#allocation5], 0
    %s20 = scalar_lea.sflag [#allocation5], 1
    %21 = vsyncpa %s20, 0
    %22 = vsyncpa [#allocation6], 0
    %s23 = scalar_lea.sflag [#allocation6], 1
    %24 = vsyncpa %s23, 0
    loop: start=0, step=1, limit=4
    $region2: #{tpu_custom_call.1} parent=1 // loop_pre_header
      _
    $region3: #{tpu_custom_call.1} parent=1 // loop_header
      %s26 = sphi 0, %s30
      %p27 = scmp.ge.s32.totalorder %s26, 4
      %s34 = sphi 0, %s34
      %s36 = sphi 0, %s34
      %s37 = sphi 0, %s36
      %s51 = sphi 0, %s37
      %s55 = sphi 0, %s55
      %s57 = sphi 0, %s55
      %s58 = sphi 0, %s57
      %s72 = sphi 0, %s58
      %s76 = sphi 0, %s76
      %s78 = sphi 0, %s76
      %s79 = sphi 0, %s78
      %s93 = sphi 0, %s79
      %s97 = sphi 0, %s97
      %s99 = sphi 0, %s97
      %s100 = sphi 0, %s99
      %s114 = sphi 0, %s100
      %s118 = sphi 0, %s118
      %s120 = sphi 0, %s118
      %s121 = sphi 0, %s120
      %s135 = sphi 0, %s121
      %s139 = sphi 0, %s139
      %s141 = sphi 0, %s139
      %s142 = sphi 0, %s141
      %s156 = sphi 0, %s142
      %s160 = sphi 0, %s160
      %s162 = sphi 0, %s160
      %s163 = sphi 0, %s162
      %s177 = sphi 0, %s163
      %s181 = sphi 0, %s181
      %s183 = sphi 0, %s181
      %s184 = sphi 0, %s183
      %s198 = sphi 0, %s184
      %s204 = sphi 0, %s206
      %s207 = sphi 0, %s204
      %s208 = sphi 0, %s207
      %s224 = sphi 0, %s208
      %s230 = sphi 0, %s232
      %s233 = sphi 0, %s230
      %s234 = sphi 0, %s233
      %s250 = sphi 0, %s234
      %s256 = sphi 0, %s258
      %s259 = sphi 0, %s256
      %s260 = sphi 0, %s259
      %s276 = sphi 0, %s260
    $region4: #{tpu_custom_call.1} parent=1 // loop_header_branch
      %29 = sbr.rel (%p27) target = $region8
    $region5: #{tpu_custom_call.1} parent=1 // loop_body
      %s31 = ssub.s32 %s26, 1
      %s32 = ssub.s32 %s26, 2
      %s33 = sadd.s32 %s26, 1
      %s35 = sadd.s32 %s34, 1
      %p38 = scmp.eq.s32.totalorder %s26, 1
      %p39 = scmp.ne.s32.totalorder %s34, %s36
      %p40 = scmp.eq.s32.totalorder %s26, 0
      %p41 = por %p39, %p40
      %p42 = scmp.ne.s32.totalorder %s34, %s36
      %p43 = scmp.eq.s32.totalorder %s31, 1
      %p44 = por %p42, %p43
      %p45 = scmp.ne.s32.totalorder %s36, %s37
      %p46 = scmp.eq.s32.totalorder %s31, 0
      %p47 = por %p45, %p46
      %p48 = scmp.ne.s32.totalorder %s36, %s37
      %p49 = scmp.eq.s32.totalorder %s32, 1
      %p50 = por %p48, %p49
      %p52 = scmp.ne.s32.totalorder %s37, %s51
      %p53 = scmp.eq.s32.totalorder %s32, 0
      %p54 = por %p52, %p53
      %s56 = sadd.s32 %s55, 1
      %p59 = scmp.eq.s32.totalorder %s26, 1
      %p60 = scmp.ne.s32.totalorder %s55, %s57
      %p61 = scmp.eq.s32.totalorder %s26, 0
      %p62 = por %p60, %p61
      %p63 = scmp.ne.s32.totalorder %s55, %s57
      %p64 = scmp.eq.s32.totalorder %s31, 1
      %p65 = por %p63, %p64
      %p66 = scmp.ne.s32.totalorder %s57, %s58
      %p67 = scmp.eq.s32.totalorder %s31, 0
      %p68 = por %p66, %p67
      %p69 = scmp.ne.s32.totalorder %s57, %s58
      %p70 = scmp.eq.s32.totalorder %s32, 1
      %p71 = por %p69, %p70
      %p73 = scmp.ne.s32.totalorder %s58, %s72
      %p74 = scmp.eq.s32.totalorder %s32, 0
      %p75 = por %p73, %p74
      %s77 = sadd.s32 %s76, 1
      %p80 = scmp.eq.s32.totalorder %s26, 1
      %p81 = scmp.ne.s32.totalorder %s76, %s78
      %p82 = scmp.eq.s32.totalorder %s26, 0
      %p83 = por %p81, %p82
      %p84 = scmp.ne.s32.totalorder %s76, %s78
      %p85 = scmp.eq.s32.totalorder %s31, 1
      %p86 = por %p84, %p85
      %p87 = scmp.ne.s32.totalorder %s78, %s79
      %p88 = scmp.eq.s32.totalorder %s31, 0
      %p89 = por %p87, %p88
      %p90 = scmp.ne.s32.totalorder %s78, %s79
      %p91 = scmp.eq.s32.totalorder %s32, 1
      %p92 = por %p90, %p91
      %p94 = scmp.ne.s32.totalorder %s79, %s93
      %p95 = scmp.eq.s32.totalorder %s32, 0
      %p96 = por %p94, %p95
      %s98 = sadd.s32 %s97, 1
      %p101 = scmp.eq.s32.totalorder %s26, 1
      %p102 = scmp.ne.s32.totalorder %s97, %s99
      %p103 = scmp.eq.s32.totalorder %s26, 0
      %p104 = por %p102, %p103
      %p105 = scmp.ne.s32.totalorder %s97, %s99
      %p106 = scmp.eq.s32.totalorder %s31, 1
      %p107 = por %p105, %p106
      %p108 = scmp.ne.s32.totalorder %s99, %s100
      %p109 = scmp.eq.s32.totalorder %s31, 0
      %p110 = por %p108, %p109
      %p111 = scmp.ne.s32.totalorder %s99, %s100
      %p112 = scmp.eq.s32.totalorder %s32, 1
      %p113 = por %p111, %p112
      %p115 = scmp.ne.s32.totalorder %s100, %s114
      %p116 = scmp.eq.s32.totalorder %s32, 0
      %p117 = por %p115, %p116
      %s119 = sadd.s32 %s118, 1
      %p122 = scmp.eq.s32.totalorder %s26, 1
      %p123 = scmp.ne.s32.totalorder %s118, %s120
      %p124 = scmp.eq.s32.totalorder %s26, 0
      %p125 = por %p123, %p124
      %p126 = scmp.ne.s32.totalorder %s118, %s120
      %p127 = scmp.eq.s32.totalorder %s31, 1
      %p128 = por %p126, %p127
      %p129 = scmp.ne.s32.totalorder %s120, %s121
      %p130 = scmp.eq.s32.totalorder %s31, 0
      %p131 = por %p129, %p130
      %p132 = scmp.ne.s32.totalorder %s120, %s121
      %p133 = scmp.eq.s32.totalorder %s32, 1
      %p134 = por %p132, %p133
      %p136 = scmp.ne.s32.totalorder %s121, %s135
      %p137 = scmp.eq.s32.totalorder %s32, 0
      %p138 = por %p136, %p137
      %s140 = sadd.s32 %s139, 1
      %p143 = scmp.eq.s32.totalorder %s26, 1
      %p144 = scmp.ne.s32.totalorder %s139, %s141
      %p145 = scmp.eq.s32.totalorder %s26, 0
      %p146 = por %p144, %p145
      %p147 = scmp.ne.s32.totalorder %s139, %s141
      %p148 = scmp.eq.s32.totalorder %s31, 1
      %p149 = por %p147, %p148
      %p150 = scmp.ne.s32.totalorder %s141, %s142
      %p151 = scmp.eq.s32.totalorder %s31, 0
      %p152 = por %p150, %p151
      %p153 = scmp.ne.s32.totalorder %s141, %s142
      %p154 = scmp.eq.s32.totalorder %s32, 1
      %p155 = por %p153, %p154
      %p157 = scmp.ne.s32.totalorder %s142, %s156
      %p158 = scmp.eq.s32.totalorder %s32, 0
      %p159 = por %p157, %p158
      %s161 = sadd.s32 %s160, 1
      %p164 = scmp.eq.s32.totalorder %s26, 1
      %p165 = scmp.ne.s32.totalorder %s160, %s162
      %p166 = scmp.eq.s32.totalorder %s26, 0
      %p167 = por %p165, %p166
      %p168 = scmp.ne.s32.totalorder %s160, %s162
      %p169 = scmp.eq.s32.totalorder %s31, 1
      %p170 = por %p168, %p169
      %p171 = scmp.ne.s32.totalorder %s162, %s163
      %p172 = scmp.eq.s32.totalorder %s31, 0
      %p173 = por %p171, %p172
      %p174 = scmp.ne.s32.totalorder %s162, %s163
      %p175 = scmp.eq.s32.totalorder %s32, 1
      %p176 = por %p174, %p175
      %p178 = scmp.ne.s32.totalorder %s163, %s177
      %p179 = scmp.eq.s32.totalorder %s32, 0
      %p180 = por %p178, %p179
      %s182 = sadd.s32 %s181, 1
      %p185 = scmp.eq.s32.totalorder %s26, 1
      %p186 = scmp.ne.s32.totalorder %s181, %s183
      %p187 = scmp.eq.s32.totalorder %s26, 0
      %p188 = por %p186, %p187
      %p189 = scmp.ne.s32.totalorder %s181, %s183
      %p190 = scmp.eq.s32.totalorder %s31, 1
      %p191 = por %p189, %p190
      %p192 = scmp.ne.s32.totalorder %s183, %s184
      %p193 = scmp.eq.s32.totalorder %s31, 0
      %p194 = por %p192, %p193
      %p195 = scmp.ne.s32.totalorder %s183, %s184
      %p196 = scmp.eq.s32.totalorder %s32, 1
      %p197 = por %p195, %p196
      %p199 = scmp.ne.s32.totalorder %s184, %s198
      %p200 = scmp.eq.s32.totalorder %s32, 0
      %p201 = por %p199, %p200
      %s202 = ssub.s32 %s26, %s33
      %p203 = scmp.eq.s32.totalorder %s202, 0
      %s205 = sadd.s32 %s204, 1
      %s206 = scalar_select %p203, %s204, %s205
      %p209 = pneg %p203
      %p210 = scmp.eq.s32.totalorder %s26, 1
      %p211 = por %p209, %p210
      %p212 = scmp.ne.s32.totalorder %s204, %s207
      %p213 = scmp.eq.s32.totalorder %s26, 0
      %p214 = por %p212, %p213
      %p215 = scmp.ne.s32.totalorder %s204, %s207
      %p216 = scmp.eq.s32.totalorder %s31, 1
      %p217 = por %p215, %p216
      %p218 = scmp.ne.s32.totalorder %s207, %s208
      %p219 = scmp.eq.s32.totalorder %s31, 0
      %p220 = por %p218, %p219
      %p221 = scmp.ne.s32.totalorder %s207, %s208
      %p222 = scmp.eq.s32.totalorder %s32, 1
      %p223 = por %p221, %p222
      %p225 = scmp.ne.s32.totalorder %s208, %s224
      %p226 = scmp.eq.s32.totalorder %s32, 0
      %p227 = por %p225, %p226
      %s228 = ssub.s32 %s26, %s33
      %p229 = scmp.eq.s32.totalorder %s228, 0
      %s231 = sadd.s32 %s230, 1
      %s232 = scalar_select %p229, %s230, %s231
      %p235 = pneg %p229
      %p236 = scmp.eq.s32.totalorder %s26, 1
      %p237 = por %p235, %p236
      %p238 = scmp.ne.s32.totalorder %s230, %s233
      %p239 = scmp.eq.s32.totalorder %s26, 0
      %p240 = por %p238, %p239
      %p241 = scmp.ne.s32.totalorder %s230, %s233
      %p242 = scmp.eq.s32.totalorder %s31, 1
      %p243 = por %p241, %p242
      %p244 = scmp.ne.s32.totalorder %s233, %s234
      %p245 = scmp.eq.s32.totalorder %s31, 0
      %p246 = por %p244, %p245
      %p247 = scmp.ne.s32.totalorder %s233, %s234
      %p248 = scmp.eq.s32.totalorder %s32, 1
      %p249 = por %p247, %p248
      %p251 = scmp.ne.s32.totalorder %s234, %s250
      %p252 = scmp.eq.s32.totalorder %s32, 0
      %p253 = por %p251, %p252
      %s254 = ssub.s32 %s26, %s33
      %p255 = scmp.eq.s32.totalorder %s254, 0
      %s257 = sadd.s32 %s256, 1
      %s258 = scalar_select %p255, %s256, %s257
      %p261 = pneg %p255
      %p262 = scmp.eq.s32.totalorder %s26, 1
      %p263 = por %p261, %p262
      %p264 = scmp.ne.s32.totalorder %s256, %s259
      %p265 = scmp.eq.s32.totalorder %s26, 0
      %p266 = por %p264, %p265
      %p267 = scmp.ne.s32.totalorder %s256, %s259
      %p268 = scmp.eq.s32.totalorder %s31, 1
      %p269 = por %p267, %p268
      %p270 = scmp.ne.s32.totalorder %s259, %s260
      %p271 = scmp.eq.s32.totalorder %s31, 0
      %p272 = por %p270, %p271
      %p273 = scmp.ne.s32.totalorder %s259, %s260
      %p274 = scmp.eq.s32.totalorder %s32, 1
      %p275 = por %p273, %p274
      %p277 = scmp.ne.s32.totalorder %s260, %s276
      %p278 = scmp.eq.s32.totalorder %s32, 0
      %p279 = por %p277, %p278
      %p280 = scmp.le.s32.totalorder 1, %s26
      %p281 = scmp.lt.s32.totalorder %s26, 3
      %p282 = pnand %p280, %p281
      %p283 = pneg %p282
      // Predicated region
      $region9: #{tpu_custom_call.1} parent=5 // pred_check
        _
      $region10: #{tpu_custom_call.1} parent=5 // pred_check_branch
        %285 = sbr.rel (%p282) target = $region12
      $region11: #{tpu_custom_call.1} parent=5 // pred_region
        %s286 = ssub.s32 %s26, 1
        // Predicated region
        $region13: #{tpu_custom_call.1} parent=11 // pred_check
          %p287 = pneg %p47
        $region14: #{tpu_custom_call.1} parent=11 // pred_check_branch
          %289 = sbr.rel (%p287) target = $region16
        $region15: #{tpu_custom_call.1} parent=11 // pred_region
          %s291 = ssub.s32 16, 16
          %292 = vsyncadd [#allocation7], %s291
          %s294 = sshll.u32 %s0, 4
          %s295 = int_to_ptr.vmem [resolvable:$true] %s294
          %297 = dma.vmem_to_smem %s295, 16, [#allocation4], [#allocation7]
        $region16: #{tpu_custom_call.1} parent=11 // pred_fallthru
          _
        // Predicated region
        $region17: #{tpu_custom_call.1} parent=11 // pred_check
          %p298 = pneg %p68
        $region18: #{tpu_custom_call.1} parent=11 // pred_check_branch
          %300 = sbr.rel (%p298) target = $region20
        $region19: #{tpu_custom_call.1} parent=11 // pred_region
          %s302 = ssub.s32 16, 16
          %303 = vsyncadd [#allocation9], %s302
          %s305 = sshll.u32 %s1, 4
          %s306 = int_to_ptr.vmem [resolvable:$true] %s305
          %308 = dma.vmem_to_smem %s306, 16, [#allocation8], [#allocation9]
        $region20: #{tpu_custom_call.1} parent=11 // pred_fallthru
          _
        // Predicated region
        $region21: #{tpu_custom_call.1} parent=11 // pred_check
          %p309 = pneg %p89
        $region22: #{tpu_custom_call.1} parent=11 // pred_check_branch
          %311 = sbr.rel (%p309) target = $region24
        $region23: #{tpu_custom_call.1} parent=11 // pred_region
          %s313 = ssub.s32 16, 16
          %314 = vsyncadd [#allocation9], %s313
          %s316 = sshll.u32 %s2, 4
          %s317 = int_to_ptr.vmem [resolvable:$true] %s316
          %319 = dma.vmem_to_smem %s317, 16, [#allocation10], [#allocation9]
        $region24: #{tpu_custom_call.1} parent=11 // pred_fallthru
          _
        // Predicated region
        $region25: #{tpu_custom_call.1} parent=11 // pred_check
          %p320 = pneg %p110
        $region26: #{tpu_custom_call.1} parent=11 // pred_check_branch
          %322 = sbr.rel (%p320) target = $region28
        $region27: #{tpu_custom_call.1} parent=11 // pred_region
          %s324 = ssub.s32 16, 16
          %325 = vsyncadd [#allocation12], %s324
          %s327 = sshll.u32 %s3, 4
          %s328 = int_to_ptr.vmem [resolvable:$true] %s327
          %330 = dma.vmem_to_smem %s328, 16, [#allocation11], [#allocation12]
        $region28: #{tpu_custom_call.1} parent=11 // pred_fallthru
          _
        // Predicated region
        $region29: #{tpu_custom_call.1} parent=11 // pred_check
          %p331 = pneg %p131
        $region30: #{tpu_custom_call.1} parent=11 // pred_check_branch
          %333 = sbr.rel (%p331) target = $region32
        $region31: #{tpu_custom_call.1} parent=11 // pred_region
          %s335 = ssub.s32 16, 16
          %336 = vsyncadd [#allocation12], %s335
          %s338 = sshll.u32 %s4, 4
          %s339 = int_to_ptr.vmem [resolvable:$true] %s338
          %341 = dma.vmem_to_smem %s339, 16, [#allocation13], [#allocation12]
        $region32: #{tpu_custom_call.1} parent=11 // pred_fallthru
          _
        // Predicated region
        $region33: #{tpu_custom_call.1} parent=11 // pred_check
          %p342 = pneg %p152
        $region34: #{tpu_custom_call.1} parent=11 // pred_check_branch
          %344 = sbr.rel (%p342) target = $region36
        $region35: #{tpu_custom_call.1} parent=11 // pred_region
          %s346 = ssub.s32 16, 16
          %347 = vsyncadd [#allocation15], %s346
          %s349 = sshll.u32 %s5, 4
          %s350 = int_to_ptr.vmem [resolvable:$true] %s349
          %352 = dma.vmem_to_smem %s350, 16, [#allocation14], [#allocation15]
        $region36: #{tpu_custom_call.1} parent=11 // pred_fallthru
          _
        // Predicated region
        $region37: #{tpu_custom_call.1} parent=11 // pred_check
          %p353 = pneg %p173
        $region38: #{tpu_custom_call.1} parent=11 // pred_check_branch
          %355 = sbr.rel (%p353) target = $region40
        $region39: #{tpu_custom_call.1} parent=11 // pred_region
          _
        $region40: #{tpu_custom_call.1} parent=11 // pred_fallthru
          _
        // Predicated region
        $region41: #{tpu_custom_call.1} parent=11 // pred_check
          %p356 = pneg %p194
        $region42: #{tpu_custom_call.1} parent=11 // pred_check_branch
          %358 = sbr.rel (%p356) target = $region44
        $region43: #{tpu_custom_call.1} parent=11 // pred_region
          _
        $region44: #{tpu_custom_call.1} parent=11 // pred_fallthru
          _
      $region12: #{tpu_custom_call.1} parent=5 // pred_fallthru
        _
      %p359 = scmp.lt.s32.totalorder %s26, 2
      // Predicated region
      $region45: #{tpu_custom_call.1} parent=5 // pred_check
        %p360 = pneg %p359
      $region46: #{tpu_custom_call.1} parent=5 // pred_check_branch
        %362 = sbr.rel (%p360) target = $region48
      $region47: #{tpu_custom_call.1} parent=5 // pred_region
        // Predicated region
        $region49: #{tpu_custom_call.1} parent=47 // pred_check
          %p363 = pneg %p214
        $region50: #{tpu_custom_call.1} parent=47 // pred_check_branch
          %365 = sbr.rel (%p363) target = $region52
        $region51: #{tpu_custom_call.1} parent=47 // pred_region
          %p366 = scmp.lt.s32.totalorder %s26, 1
          %s367 = scalar_select %p366, %s26, 1
          %s368 = smul.addr %s367, 2
          %s369 = smul.addr %s368, 8
          %s370 = scalar_lea.vmem %s8, %s369
        $region52: #{tpu_custom_call.1} parent=47 // pred_fallthru
          _
        // Predicated region
        $region53: #{tpu_custom_call.1} parent=47 // pred_check
          %p371 = pneg %p240
        $region54: #{tpu_custom_call.1} parent=47 // pred_check_branch
          %373 = sbr.rel (%p371) target = $region56
        $region55: #{tpu_custom_call.1} parent=47 // pred_region
          %s374 = sand.u32 %s230, 1
          %s375 = scalar_lea.sflag [#allocation5], %s374
          %s376 = sand.u32 %s230, 1
          %s377 = smul.addr %s376, 32
          %s378 = scalar_lea.vmem [#allocation16], %s377
          %s380 = ssub.s32 512, 512
          %381 = vsyncadd %s375, %s380
          %s382 = smul.addr %s26, 4
          %s383 = smul.addr %s382, 128
          %s384 = scalar_lea.hbm %s9, %s383
          %s385 = sshll.u32 %s378, 4
          %s386 = int_to_ptr.vmem [resolvable:$true] %s385
          %391 = dma.hbm_to_vmem [thread:$0]  %s384, 512, %s386, %s375, 128, 128, 8
        $region56: #{tpu_custom_call.1} parent=47 // pred_fallthru
          _
      $region48: #{tpu_custom_call.1} parent=5 // pred_fallthru
        _
      %p392 = scmp.le.s32.totalorder 1, %s26
      %p393 = scmp.lt.s32.totalorder %s26, 3
      %p394 = pnand %p392, %p393
      %p395 = pneg %p394
      // Predicated region
      $region57: #{tpu_custom_call.1} parent=5 // pred_check
        _
      $region58: #{tpu_custom_call.1} parent=5 // pred_check_branch
        %397 = sbr.rel (%p394) target = $region60
      $region59: #{tpu_custom_call.1} parent=5 // pred_region
        %s398 = ssub.s32 %s26, 1
        // Predicated region
        $region61: #{tpu_custom_call.1} parent=59 // pred_check
          %p399 = pneg %p47
        $region62: #{tpu_custom_call.1} parent=59 // pred_check_branch
          %401 = sbr.rel (%p399) target = $region64
        $region63: #{tpu_custom_call.1} parent=59 // pred_region
          %402 = dma.done [#allocation7], 16
        $region64: #{tpu_custom_call.1} parent=59 // pred_fallthru
          _
        // Predicated region
        $region65: #{tpu_custom_call.1} parent=59 // pred_check
          %p403 = pneg %p68
        $region66: #{tpu_custom_call.1} parent=59 // pred_check_branch
          %405 = sbr.rel (%p403) target = $region68
        $region67: #{tpu_custom_call.1} parent=59 // pred_region
          %406 = dma.done [#allocation9], 16
        $region68: #{tpu_custom_call.1} parent=59 // pred_fallthru
          _
        // Predicated region
        $region69: #{tpu_custom_call.1} parent=59 // pred_check
          %p407 = pneg %p89
        $region70: #{tpu_custom_call.1} parent=59 // pred_check_branch
          %409 = sbr.rel (%p407) target = $region72
        $region71: #{tpu_custom_call.1} parent=59 // pred_region
          %410 = dma.done [#allocation9], 16
        $region72: #{tpu_custom_call.1} parent=59 // pred_fallthru
          _
        // Predicated region
        $region73: #{tpu_custom_call.1} parent=59 // pred_check
          %p411 = pneg %p110
        $region74: #{tpu_custom_call.1} parent=59 // pred_check_branch
          %413 = sbr.rel (%p411) target = $region76
        $region75: #{tpu_custom_call.1} parent=59 // pred_region
          %414 = dma.done [#allocation12], 16
        $region76: #{tpu_custom_call.1} parent=59 // pred_fallthru
          _
        // Predicated region
        $region77: #{tpu_custom_call.1} parent=59 // pred_check
          %p415 = pneg %p131
        $region78: #{tpu_custom_call.1} parent=59 // pred_check_branch
          %417 = sbr.rel (%p415) target = $region80
        $region79: #{tpu_custom_call.1} parent=59 // pred_region
          %418 = dma.done [#allocation12], 16
        $region80: #{tpu_custom_call.1} parent=59 // pred_fallthru
          _
        // Predicated region
        $region81: #{tpu_custom_call.1} parent=59 // pred_check
          %p419 = pneg %p152
        $region82: #{tpu_custom_call.1} parent=59 // pred_check_branch
          %421 = sbr.rel (%p419) target = $region84
        $region83: #{tpu_custom_call.1} parent=59 // pred_region
          %422 = dma.done [#allocation15], 16
        $region84: #{tpu_custom_call.1} parent=59 // pred_fallthru
          _
        %s423 = sand.u32 %s233, 1
        %s424 = scalar_lea.sflag [#allocation5], %s423
        %s425 = sand.u32 %s233, 1
        %s426 = smul.addr %s425, 32
        %s427 = scalar_lea.vmem [#allocation16], %s426
        // Predicated region
        $region85: #{tpu_custom_call.1} parent=59 // pred_check
          %p428 = pneg %p246
        $region86: #{tpu_custom_call.1} parent=59 // pred_check_branch
          %430 = sbr.rel (%p428) target = $region88
        $region87: #{tpu_custom_call.1} parent=59 // pred_region
          %431 = dma.done %s424, 512
        $region88: #{tpu_custom_call.1} parent=59 // pred_fallthru
          _
        %432 = sfence
        %p433 = pneg %p47
        %p434 = pneg %p44
        %p435 = pneg %p68
        %p436 = pneg %p65
        %p437 = pneg %p89
        %p438 = pneg %p86
        %p439 = pneg %p110
        %p440 = pneg %p107
        %p441 = pneg %p131
        %p442 = pneg %p128
        %p443 = pneg %p152
        %p444 = pneg %p149
        %p445 = pneg %p173
        %p446 = pneg %p170
        %p447 = pneg %p194
        %p448 = pneg %p191
        %p449 = scmp.lt.s32.totalorder %s31, 1
        %s450 = scalar_select %p449, %s31, 1
        %s451 = smul.addr %s450, 2
        %s452 = smul.addr %s451, 8
        %s453 = scalar_lea.vmem %s8, %s452
        %p454 = pneg %p220
        %p455 = pneg %p217
        %s456 = sand.u32 %s233, 1
        %s457 = scalar_lea.sflag [#allocation5], %s456
        %s458 = sand.u32 %s233, 1
        %s459 = smul.addr %s458, 32
        %s460 = scalar_lea.vmem [#allocation16], %s459
        %p461 = pneg %p246
        %p462 = pneg %p243
        %p463 = pneg %p272
        %p464 = pneg %p269
        %s465 = sand.u32 %s259, 1
        %s466 = scalar_lea.sflag [#allocation6], %s465
        %s467 = sand.u32 %s259, 1
        %s468 = smul.addr %s467, 64
        %s469 = scalar_lea.vmem [#allocation17], %s468
        %p470 = scmp.lt.s32.totalorder %s31, 1
        %s471 = scalar_select %p470, %s31, 1
        %s472 = smul.addr %s471, 2
        %s473 = smul.addr %s472, 8
        %s474 = scalar_lea.vmem %s8, %s473
        %vm475 = vcmask 146432
        %476 = vst.msk [vmem:[#allocation2] sm:$0xff] %vm475, 0.0
        %477 = vst.msk [vmem:[#allocation2 + $0x8] sm:$0xff] %vm475, 0.0
        %vm478 = vcmask 140288
        %479 = vst.msk [vmem:[#allocation2 + $0x10] sm:$0x3] %vm478, 0.0
        %480 = vst.msk [vmem:[#allocation2 + $0x18] sm:$0xff] %vm475, 0.0
        %481 = vst.msk [vmem:[#allocation2 + $0x20] sm:$0xff] %vm475, 0.0
        %482 = vst.msk [vmem:[#allocation2 + $0x28] sm:$0x3] %vm478, 0.0
        %483 = vst.msk [vmem:[#allocation2 + $0x30] sm:$0xff] %vm475, 0.0
        %484 = vst.msk [vmem:[#allocation2 + $0x38] sm:$0xff] %vm475, 0.0
        %485 = vst.msk [vmem:[#allocation2 + $0x40] sm:$0x3] %vm478, 0.0
        %486 = vst.msk [vmem:[#allocation2 + $0x48] sm:$0xff] %vm475, 0.0
        %487 = vst.msk [vmem:[#allocation2 + $0x50] sm:$0xff] %vm475, 0.0
        %488 = vst.msk [vmem:[#allocation2 + $0x58] sm:$0x3] %vm478, 0.0
        %489 = vst.msk [vmem:[#allocation3] sm:$0xff] %vm475, 0.0
        %490 = vst.msk [vmem:[#allocation3 + $0x8] sm:$0xff] %vm475, 0.0
        %491 = vst.msk [vmem:[#allocation3 + $0x10] sm:$0x3] %vm478, 0.0
        %492 = vst.msk [vmem:[#allocation3 + $0x18] sm:$0xff] %vm475, 0.0
        %493 = vst.msk [vmem:[#allocation3 + $0x20] sm:$0xff] %vm475, 0.0
        %494 = vst.msk [vmem:[#allocation3 + $0x28] sm:$0x3] %vm478, 0.0
        %v495 = vld [vmem:[%s427] sm:$0xff]
        %v496 = vld [vmem:[%s427 + $0x8] sm:$0xff]
        %499 = vrot.lane.b32.xlu0 %v495, 1
        %v500 = vpop.permute.xlu0 %499
        %501 = vrot.lane.b32.xlu0 %v496, 1
        %v502 = vpop.permute.xlu0 %501
        %vm505 = vcmask 138248
        %506 = vst.msk [vmem:[#allocation2 + $0x1] sm:$0xff] %vm505, %v500
        %507 = vst.msk [vmem:[#allocation2 + $0x9] sm:$0xff] %vm505, %v502
        %s508 = scalar_lea.vmem %s427, 16 [#allocation16]
        %v509 = vld [vmem:[%s508] sm:$0xff]
        %v510 = vld [vmem:[%s508 + $0x8] sm:$0xff]
        %513 = vrot.lane.b32.xlu0 %v509, 1
        %v514 = vpop.permute.xlu0 %513
        %515 = vrot.lane.b32.xlu0 %v510, 1
        %v516 = vpop.permute.xlu0 %515
        %s519 = scalar_lea.vmem [#allocation2], 24
        %520 = vst.msk [vmem:[%s519 + $0x1] sm:$0xff] %vm505, %v514
        %521 = vst.msk [vmem:[%s519 + $0x9] sm:$0xff] %vm505, %v516
        %v522 = vld [vmem:[%s6] sm:$0xff]
        %v523 = vld [vmem:[%s6 + $0x8] sm:$0xff]
        %v524 = vld [vmem:[%s7] sm:$0xff]
        %v525 = vld [vmem:[%s474] sm:$0xff]
        %527 = vset.pattern.permute.xlu0 0
        %528 = vperm.xlu0 %527, %v522
        %v529 = vpop.permute.xlu0 %528
        %532 = vset.pattern.permute.xlu0 0
        %533 = vperm.xlu0 %532, %v523
        %v534 = vpop.permute.xlu0 %533
        %v536 = vlaneseq
        %v537 = vshrl.u32 %v536, 7
        %v538 = vsub.s32 0, %v537
        %v539 = vrot.slane %v525, %v538
        %v540 = vmul.f32 %v529, %v539
        %v541 = vmul.f32 %v534, %v539
        %v542 = vadd.f32 %v540, 0.0
        %v543 = vadd.f32 %v541, 0.0
        %544 = vset.pattern.permute.xlu0 1
        %545 = vperm.xlu0 %544, %v522
        %v546 = vpop.permute.xlu0 %545
        %548 = vset.pattern.permute.xlu0 1
        %549 = vperm.xlu0 %548, %v523
        %v550 = vpop.permute.xlu0 %549
        %v552 = vlaneseq
        %v553 = vshrl.u32 %v552, 7
        %v554 = vsub.s32 1, %v553
        %v555 = vrot.slane %v525, %v554
        %v556 = vmul.f32 %v546, %v555
        %v557 = vmul.f32 %v550, %v555
        %v558 = vadd.f32 %v542, %v556
        %v559 = vadd.f32 %v543, %v557
        %560 = vset.pattern.permute.xlu0 2
        %561 = vperm.xlu0 %560, %v522
        %v562 = vpop.permute.xlu0 %561
        %564 = vset.pattern.permute.xlu0 2
        %565 = vperm.xlu0 %564, %v523
        %v566 = vpop.permute.xlu0 %565
        %v568 = vlaneseq
        %v569 = vshrl.u32 %v568, 7
        %v570 = vsub.s32 2, %v569
        %v571 = vrot.slane %v525, %v570
        %v572 = vmul.f32 %v562, %v571
        %v573 = vmul.f32 %v566, %v571
        %v574 = vadd.f32 %v558, %v572
        %v575 = vadd.f32 %v559, %v573
        %576 = vset.pattern.permute.xlu0 3
        %577 = vperm.xlu0 %576, %v522
        %v578 = vpop.permute.xlu0 %577
        %580 = vset.pattern.permute.xlu0 3
        %581 = vperm.xlu0 %580, %v523
        %v582 = vpop.permute.xlu0 %581
        %v584 = vlaneseq
        %v585 = vshrl.u32 %v584, 7
        %v586 = vsub.s32 3, %v585
        %v587 = vrot.slane %v525, %v586
        %v588 = vmul.f32 %v578, %v587
        %v589 = vmul.f32 %v582, %v587
        %v590 = vadd.f32 %v574, %v588
        %v591 = vadd.f32 %v575, %v589
        %592 = vset.pattern.permute.xlu0 4
        %593 = vperm.xlu0 %592, %v522
        %v594 = vpop.permute.xlu0 %593
        %596 = vset.pattern.permute.xlu0 4
        %597 = vperm.xlu0 %596, %v523
        %v598 = vpop.permute.xlu0 %597
        %v600 = vlaneseq
        %v601 = vshrl.u32 %v600, 7
        %v602 = vsub.s32 4, %v601
        %v603 = vrot.slane %v525, %v602
        %v604 = vmul.f32 %v594, %v603
        %v605 = vmul.f32 %v598, %v603
        %v606 = vadd.f32 %v590, %v604
        %v607 = vadd.f32 %v591, %v605
        %608 = vset.pattern.permute.xlu0 5
        %609 = vperm.xlu0 %608, %v522
        %v610 = vpop.permute.xlu0 %609
        %612 = vset.pattern.permute.xlu0 5
        %613 = vperm.xlu0 %612, %v523
        %v614 = vpop.permute.xlu0 %613
        %v616 = vlaneseq
        %v617 = vshrl.u32 %v616, 7
        %v618 = vsub.s32 5, %v617
        %v619 = vrot.slane %v525, %v618
        %v620 = vmul.f32 %v610, %v619
        %v621 = vmul.f32 %v614, %v619
        %v622 = vadd.f32 %v606, %v620
        %v623 = vadd.f32 %v607, %v621
        %624 = vset.pattern.permute.xlu0 6
        %625 = vperm.xlu0 %624, %v522
        %v626 = vpop.permute.xlu0 %625
        %628 = vset.pattern.permute.xlu0 6
        %629 = vperm.xlu0 %628, %v523
        %v630 = vpop.permute.xlu0 %629
        %v632 = vlaneseq
        %v633 = vshrl.u32 %v632, 7
        %v634 = vsub.s32 6, %v633
        %v635 = vrot.slane %v525, %v634
        %v636 = vmul.f32 %v626, %v635
        %v637 = vmul.f32 %v630, %v635
        %v638 = vadd.f32 %v622, %v636
        %v639 = vadd.f32 %v623, %v637
        %640 = vset.pattern.permute.xlu0 7
        %641 = vperm.xlu0 %640, %v522
        %v642 = vpop.permute.xlu0 %641
        %644 = vset.pattern.permute.xlu0 7
        %645 = vperm.xlu0 %644, %v523
        %v646 = vpop.permute.xlu0 %645
        %v648 = vlaneseq
        %v649 = vshrl.u32 %v648, 7
        %v650 = vsub.s32 7, %v649
        %v651 = vrot.slane %v525, %v650
        %v652 = vmul.f32 %v642, %v651
        %v653 = vmul.f32 %v646, %v651
        %v654 = vadd.f32 %v638, %v652
        %v655 = vadd.f32 %v639, %v653
        %657 = vset.pattern.permute.xlu0 0
        %658 = vperm.xlu0 %657, %v654
        %v659 = vpop.permute.xlu0 %658
        %662 = vset.pattern.permute.xlu0 0
        %663 = vperm.xlu0 %662, %v655
        %v664 = vpop.permute.xlu0 %663
        %v666 = vlaneseq
        %v667 = vshrl.u32 %v666, 7
        %v668 = vsub.s32 0, %v667
        %v669 = vrot.slane %v524, %v668
        %v670 = vmul.f32 %v659, %v669
        %v671 = vmul.f32 %v664, %v669
        %v672 = vadd.f32 %v670, 0.0
        %v673 = vadd.f32 %v671, 0.0
        %674 = vset.pattern.permute.xlu0 1
        %675 = vperm.xlu0 %674, %v654
        %v676 = vpop.permute.xlu0 %675
        %678 = vset.pattern.permute.xlu0 1
        %679 = vperm.xlu0 %678, %v655
        %v680 = vpop.permute.xlu0 %679
        %v682 = vlaneseq
        %v683 = vshrl.u32 %v682, 7
        %v684 = vsub.s32 1, %v683
        %v685 = vrot.slane %v524, %v684
        %v686 = vmul.f32 %v676, %v685
        %v687 = vmul.f32 %v680, %v685
        %v688 = vadd.f32 %v672, %v686
        %v689 = vadd.f32 %v673, %v687
        %690 = vset.pattern.permute.xlu0 2
        %691 = vperm.xlu0 %690, %v654
        %v692 = vpop.permute.xlu0 %691
        %694 = vset.pattern.permute.xlu0 2
        %695 = vperm.xlu0 %694, %v655
        %v696 = vpop.permute.xlu0 %695
        %v698 = vlaneseq
        %v699 = vshrl.u32 %v698, 7
        %v700 = vsub.s32 2, %v699
        %v701 = vrot.slane %v524, %v700
        %v702 = vmul.f32 %v692, %v701
        %v703 = vmul.f32 %v696, %v701
        %v704 = vadd.f32 %v688, %v702
        %v705 = vadd.f32 %v689, %v703
        %706 = vset.pattern.permute.xlu0 3
        %707 = vperm.xlu0 %706, %v654
        %v708 = vpop.permute.xlu0 %707
        %710 = vset.pattern.permute.xlu0 3
        %711 = vperm.xlu0 %710, %v655
        %v712 = vpop.permute.xlu0 %711
        %v714 = vlaneseq
        %v715 = vshrl.u32 %v714, 7
        %v716 = vsub.s32 3, %v715
        %v717 = vrot.slane %v524, %v716
        %v718 = vmul.f32 %v708, %v717
        %v719 = vmul.f32 %v712, %v717
        %v720 = vadd.f32 %v704, %v718
        %v721 = vadd.f32 %v705, %v719
        %722 = vset.pattern.permute.xlu0 4
        %723 = vperm.xlu0 %722, %v654
        %v724 = vpop.permute.xlu0 %723
        %726 = vset.pattern.permute.xlu0 4
        %727 = vperm.xlu0 %726, %v655
        %v728 = vpop.permute.xlu0 %727
        %v730 = vlaneseq
        %v731 = vshrl.u32 %v730, 7
        %v732 = vsub.s32 4, %v731
        %v733 = vrot.slane %v524, %v732
        %v734 = vmul.f32 %v724, %v733
        %v735 = vmul.f32 %v728, %v733
        %v736 = vadd.f32 %v720, %v734
        %v737 = vadd.f32 %v721, %v735
        %738 = vset.pattern.permute.xlu0 5
        %739 = vperm.xlu0 %738, %v654
        %v740 = vpop.permute.xlu0 %739
        %742 = vset.pattern.permute.xlu0 5
        %743 = vperm.xlu0 %742, %v655
        %v744 = vpop.permute.xlu0 %743
        %v746 = vlaneseq
        %v747 = vshrl.u32 %v746, 7
        %v748 = vsub.s32 5, %v747
        %v749 = vrot.slane %v524, %v748
        %v750 = vmul.f32 %v740, %v749
        %v751 = vmul.f32 %v744, %v749
        %v752 = vadd.f32 %v736, %v750
        %v753 = vadd.f32 %v737, %v751
        %754 = vset.pattern.permute.xlu0 6
        %755 = vperm.xlu0 %754, %v654
        %v756 = vpop.permute.xlu0 %755
        %758 = vset.pattern.permute.xlu0 6
        %759 = vperm.xlu0 %758, %v655
        %v760 = vpop.permute.xlu0 %759
        %v762 = vlaneseq
        %v763 = vshrl.u32 %v762, 7
        %v764 = vsub.s32 6, %v763
        %v765 = vrot.slane %v524, %v764
        %v766 = vmul.f32 %v756, %v765
        %v767 = vmul.f32 %v760, %v765
        %v768 = vadd.f32 %v752, %v766
        %v769 = vadd.f32 %v753, %v767
        %770 = vset.pattern.permute.xlu0 7
        %771 = vperm.xlu0 %770, %v654
        %v772 = vpop.permute.xlu0 %771
        %774 = vset.pattern.permute.xlu0 7
        %775 = vperm.xlu0 %774, %v655
        %v776 = vpop.permute.xlu0 %775
        %v778 = vlaneseq
        %v779 = vshrl.u32 %v778, 7
        %v780 = vsub.s32 7, %v779
        %v781 = vrot.slane %v524, %v780
        %v782 = vmul.f32 %v772, %v781
        %v783 = vmul.f32 %v776, %v781
        %v784 = vadd.f32 %v768, %v782
        %v785 = vadd.f32 %v769, %v783
        %788 = vrot.lane.b32.xlu0 %v784, 1
        %v789 = vpop.permute.xlu0 %788
        %790 = vrot.lane.b32.xlu0 %v785, 1
        %v791 = vpop.permute.xlu0 %790
        %s794 = scalar_lea.vmem [#allocation2], 48
        %795 = vst.msk [vmem:[%s794 + $0x1] sm:$0xff] %vm505, %v789
        %796 = vst.msk [vmem:[%s794 + $0x9] sm:$0xff] %vm505, %v791
        %s797 = scalar_lea.vmem %s474, 8
        %v798 = vld [vmem:[%s797] sm:$0xff]
        %v799 = vlaneseq
        %v800 = vshrl.u32 %v799, 7
        %v801 = vsub.s32 0, %v800
        %v802 = vrot.slane %v798, %v801
        %v803 = vmul.f32 %v529, %v802
        %v804 = vmul.f32 %v534, %v802
        %v805 = vadd.f32 %v803, 0.0
        %v806 = vadd.f32 %v804, 0.0
        %v807 = vlaneseq
        %v808 = vshrl.u32 %v807, 7
        %v809 = vsub.s32 1, %v808
        %v810 = vrot.slane %v798, %v809
        %v811 = vmul.f32 %v546, %v810
        %v812 = vmul.f32 %v550, %v810
        %v813 = vadd.f32 %v805, %v811
        %v814 = vadd.f32 %v806, %v812
        %v815 = vlaneseq
        %v816 = vshrl.u32 %v815, 7
        %v817 = vsub.s32 2, %v816
        %v818 = vrot.slane %v798, %v817
        %v819 = vmul.f32 %v562, %v818
        %v820 = vmul.f32 %v566, %v818
        %v821 = vadd.f32 %v813, %v819
        %v822 = vadd.f32 %v814, %v820
        %v823 = vlaneseq
        %v824 = vshrl.u32 %v823, 7
        %v825 = vsub.s32 3, %v824
        %v826 = vrot.slane %v798, %v825
        %v827 = vmul.f32 %v578, %v826
        %v828 = vmul.f32 %v582, %v826
        %v829 = vadd.f32 %v821, %v827
        %v830 = vadd.f32 %v822, %v828
        %v831 = vlaneseq
        %v832 = vshrl.u32 %v831, 7
        %v833 = vsub.s32 4, %v832
        %v834 = vrot.slane %v798, %v833
        %v835 = vmul.f32 %v594, %v834
        %v836 = vmul.f32 %v598, %v834
        %v837 = vadd.f32 %v829, %v835
        %v838 = vadd.f32 %v830, %v836
        %v839 = vlaneseq
        %v840 = vshrl.u32 %v839, 7
        %v841 = vsub.s32 5, %v840
        %v842 = vrot.slane %v798, %v841
        %v843 = vmul.f32 %v610, %v842
        %v844 = vmul.f32 %v614, %v842
        %v845 = vadd.f32 %v837, %v843
        %v846 = vadd.f32 %v838, %v844
        %v847 = vlaneseq
        %v848 = vshrl.u32 %v847, 7
        %v849 = vsub.s32 6, %v848
        %v850 = vrot.slane %v798, %v849
        %v851 = vmul.f32 %v626, %v850
        %v852 = vmul.f32 %v630, %v850
        %v853 = vadd.f32 %v845, %v851
        %v854 = vadd.f32 %v846, %v852
        %v855 = vlaneseq
        %v856 = vshrl.u32 %v855, 7
        %v857 = vsub.s32 7, %v856
        %v858 = vrot.slane %v798, %v857
        %v859 = vmul.f32 %v642, %v858
        %v860 = vmul.f32 %v646, %v858
        %v861 = vadd.f32 %v853, %v859
        %v862 = vadd.f32 %v854, %v860
        %864 = vset.pattern.permute.xlu0 0
        %865 = vperm.xlu0 %864, %v861
        %v866 = vpop.permute.xlu0 %865
        %869 = vset.pattern.permute.xlu0 0
        %870 = vperm.xlu0 %869, %v862
        %v871 = vpop.permute.xlu0 %870
        %v873 = vmul.f32 %v866, %v669
        %v874 = vmul.f32 %v871, %v669
        %v875 = vadd.f32 %v873, 0.0
        %v876 = vadd.f32 %v874, 0.0
        %877 = vset.pattern.permute.xlu0 1
        %878 = vperm.xlu0 %877, %v861
        %v879 = vpop.permute.xlu0 %878
        %881 = vset.pattern.permute.xlu0 1
        %882 = vperm.xlu0 %881, %v862
        %v883 = vpop.permute.xlu0 %882
        %v885 = vmul.f32 %v879, %v685
        %v886 = vmul.f32 %v883, %v685
        %v887 = vadd.f32 %v875, %v885
        %v888 = vadd.f32 %v876, %v886
        %889 = vset.pattern.permute.xlu0 2
        %890 = vperm.xlu0 %889, %v861
        %v891 = vpop.permute.xlu0 %890
        %893 = vset.pattern.permute.xlu0 2
        %894 = vperm.xlu0 %893, %v862
        %v895 = vpop.permute.xlu0 %894
        %v897 = vmul.f32 %v891, %v701
        %v898 = vmul.f32 %v895, %v701
        %v899 = vadd.f32 %v887, %v897
        %v900 = vadd.f32 %v888, %v898
        %901 = vset.pattern.permute.xlu0 3
        %902 = vperm.xlu0 %901, %v861
        %v903 = vpop.permute.xlu0 %902
        %905 = vset.pattern.permute.xlu0 3
        %906 = vperm.xlu0 %905, %v862
        %v907 = vpop.permute.xlu0 %906
        %v909 = vmul.f32 %v903, %v717
        %v910 = vmul.f32 %v907, %v717
        %v911 = vadd.f32 %v899, %v909
        %v912 = vadd.f32 %v900, %v910
        %913 = vset.pattern.permute.xlu0 4
        %914 = vperm.xlu0 %913, %v861
        %v915 = vpop.permute.xlu0 %914
        %917 = vset.pattern.permute.xlu0 4
        %918 = vperm.xlu0 %917, %v862
        %v919 = vpop.permute.xlu0 %918
        %v921 = vmul.f32 %v915, %v733
        %v922 = vmul.f32 %v919, %v733
        %v923 = vadd.f32 %v911, %v921
        %v924 = vadd.f32 %v912, %v922
        %925 = vset.pattern.permute.xlu0 5
        %926 = vperm.xlu0 %925, %v861
        %v927 = vpop.permute.xlu0 %926
        %929 = vset.pattern.permute.xlu0 5
        %930 = vperm.xlu0 %929, %v862
        %v931 = vpop.permute.xlu0 %930
        %v933 = vmul.f32 %v927, %v749
        %v934 = vmul.f32 %v931, %v749
        %v935 = vadd.f32 %v923, %v933
        %v936 = vadd.f32 %v924, %v934
        %937 = vset.pattern.permute.xlu0 6
        %938 = vperm.xlu0 %937, %v861
        %v939 = vpop.permute.xlu0 %938
        %941 = vset.pattern.permute.xlu0 6
        %942 = vperm.xlu0 %941, %v862
        %v943 = vpop.permute.xlu0 %942
        %v945 = vmul.f32 %v939, %v765
        %v946 = vmul.f32 %v943, %v765
        %v947 = vadd.f32 %v935, %v945
        %v948 = vadd.f32 %v936, %v946
        %949 = vset.pattern.permute.xlu0 7
        %950 = vperm.xlu0 %949, %v861
        %v951 = vpop.permute.xlu0 %950
        %953 = vset.pattern.permute.xlu0 7
        %954 = vperm.xlu0 %953, %v862
        %v955 = vpop.permute.xlu0 %954
        %v957 = vmul.f32 %v951, %v781
        %v958 = vmul.f32 %v955, %v781
        %v959 = vadd.f32 %v947, %v957
        %v960 = vadd.f32 %v948, %v958
        %963 = vrot.lane.b32.xlu0 %v959, 1
        %v964 = vpop.permute.xlu0 %963
        %965 = vrot.lane.b32.xlu0 %v960, 1
        %v966 = vpop.permute.xlu0 %965
        %s969 = scalar_lea.vmem [#allocation2], 72
        %970 = vst.msk [vmem:[%s969 + $0x1] sm:$0xff] %vm505, %v964
        %971 = vst.msk [vmem:[%s969 + $0x9] sm:$0xff] %vm505, %v966
        %v972 = vld [vmem:[#allocation2] sm:$0xff]
        %v973 = vld [vmem:[#allocation2 + $0x8] sm:$0xff]
        %v974 = vld [vmem:[#allocation2 + $0x10] sm:$0x3]
        %s975 = sld [smem:[#allocation4]]
        %v976 = vstv %s975
        %v977 = vmul.f32 %v976, %v972
        %v978 = vmul.f32 %v976, %v973
        %v979 = vadd.f32 %v977, 0.0
        %v980 = vadd.f32 %v978, 0.0
        %s981 = sld [smem:[#allocation4 + $0x1]]
        %v982 = vstv %s981
        %v983 = vmul.f32 %v982, %v972
        %v984 = vmul.f32 %v982, %v973
        %987 = vrot.lane.b32.xlu0 %v983, 127
        %v988 = vpop.permute.xlu0 %987
        %989 = vrot.lane.b32.xlu0 %v984, 127
        %v990 = vpop.permute.xlu0 %989
        %v993 = vadd.f32 %v979, %v988
        %v994 = vadd.f32 %v980, %v990
        %s995 = sld [smem:[#allocation4 + $0x2]]
        %v996 = vstv %s995
        %v997 = vmul.f32 %v996, %v972
        %v998 = vmul.f32 %v996, %v973
        %1001 = vrot.lane.b32.xlu0 %v997, 126
        %v1002 = vpop.permute.xlu0 %1001
        %1003 = vrot.lane.b32.xlu0 %v998, 126
        %v1004 = vpop.permute.xlu0 %1003
        %v1007 = vadd.f32 %v993, %v1002
        %v1008 = vadd.f32 %v994, %v1004
        %s1009 = sld [smem:[#allocation4 + $0x3]]
        %v1010 = vstv %s1009
        %v1011 = vmul.f32 %v1010, %v972
        %v1012 = vmul.f32 %v1010, %v973
        %v1013 = vmul.f32 %v1010, %v974
        %v1014 = vadd.f32 %v1011, 0.0
        %v1015 = vadd.f32 %v1012, 0.0
        %v1016 = vadd.f32 %v1013, 0.0
        %s1017 = sld [smem:[#allocation4 + $0x4]]
        %v1018 = vstv %s1017
        %v1019 = vmul.f32 %v1018, %v972
        %v1020 = vmul.f32 %v1018, %v973
        %v1021 = vmul.f32 %v1018, %v974
        %1025 = vrot.lane.b32.xlu0 %v1019, 127
        %v1026 = vpop.permute.xlu0 %1025
        %1027 = vrot.lane.b32.xlu0 %v1020, 127
        %v1028 = vpop.permute.xlu0 %1027
        %1029 = vrot.lane.b32.xlu0 %v1021, 127
        %v1030 = vpop.permute.xlu0 %1029
        %v1034 = vadd.f32 %v1014, %v1026
        %v1035 = vadd.f32 %v1015, %v1028
        %v1036 = vadd.f32 %v1016, %v1030
        %s1037 = sld [smem:[#allocation4 + $0x5]]
        %v1038 = vstv %s1037
        %v1039 = vmul.f32 %v1038, %v972
        %v1040 = vmul.f32 %v1038, %v973
        %v1041 = vmul.f32 %v1038, %v974
        %1045 = vrot.lane.b32.xlu0 %v1039, 126
        %v1046 = vpop.permute.xlu0 %1045
        %1047 = vrot.lane.b32.xlu0 %v1040, 126
        %v1048 = vpop.permute.xlu0 %1047
        %1049 = vrot.lane.b32.xlu0 %v1041, 126
        %v1050 = vpop.permute.xlu0 %1049
        %v1054 = vadd.f32 %v1034, %v1046
        %v1055 = vadd.f32 %v1035, %v1048
        %v1056 = vadd.f32 %v1036, %v1050
        %s1057 = sld [smem:[#allocation4 + $0x6]]
        %v1058 = vstv %s1057
        %v1059 = vmul.f32 %v1058, %v972
        %v1060 = vmul.f32 %v1058, %v973
        %v1061 = vmul.f32 %v1058, %v974
        %v1062 = vadd.f32 %v1059, 0.0
        %v1063 = vadd.f32 %v1060, 0.0
        %v1064 = vadd.f32 %v1061, 0.0
        %s1065 = sld [smem:[#allocation4 + $0x7]]
        %v1066 = vstv %s1065
        %v1067 = vmul.f32 %v1066, %v972
        %v1068 = vmul.f32 %v1066, %v973
        %v1069 = vmul.f32 %v1066, %v974
        %1073 = vrot.lane.b32.xlu0 %v1067, 127
        %v1074 = vpop.permute.xlu0 %1073
        %1075 = vrot.lane.b32.xlu0 %v1068, 127
        %v1076 = vpop.permute.xlu0 %1075
        %1077 = vrot.lane.b32.xlu0 %v1069, 127
        %v1078 = vpop.permute.xlu0 %1077
        %v1082 = vadd.f32 %v1062, %v1074
        %v1083 = vadd.f32 %v1063, %v1076
        %v1084 = vadd.f32 %v1064, %v1078
        %s1085 = sld [smem:[#allocation4 + $0x8]]
        %v1086 = vstv %s1085
        %v1087 = vmul.f32 %v1086, %v972
        %v1088 = vmul.f32 %v1086, %v973
        %v1089 = vmul.f32 %v1086, %v974
        %1093 = vrot.lane.b32.xlu0 %v1087, 126
        %v1094 = vpop.permute.xlu0 %1093
        %1095 = vrot.lane.b32.xlu0 %v1088, 126
        %v1096 = vpop.permute.xlu0 %1095
        %1097 = vrot.lane.b32.xlu0 %v1089, 126
        %v1098 = vpop.permute.xlu0 %1097
        %v1102 = vadd.f32 %v1082, %v1094
        %v1103 = vadd.f32 %v1083, %v1096
        %v1104 = vadd.f32 %v1084, %v1098
        %s1105 = sld [smem:[#allocation4 + $0x24]]
        %v1106 = vstv %s1105
        %v1107 = vmul.f32 %v1106, %v972
        %v1108 = vmul.f32 %v1106, %v973
        %v1109 = vadd.f32 %v1107, 0.0
        %v1110 = vadd.f32 %v1108, 0.0
        %s1111 = sld [smem:[#allocation4 + $0x25]]
        %v1112 = vstv %s1111
        %v1113 = vmul.f32 %v1112, %v972
        %v1114 = vmul.f32 %v1112, %v973
        %1117 = vrot.lane.b32.xlu0 %v1113, 127
        %v1118 = vpop.permute.xlu0 %1117
        %1119 = vrot.lane.b32.xlu0 %v1114, 127
        %v1120 = vpop.permute.xlu0 %1119
        %v1123 = vadd.f32 %v1109, %v1118
        %v1124 = vadd.f32 %v1110, %v1120
        %s1125 = sld [smem:[#allocation4 + $0x26]]
        %v1126 = vstv %s1125
        %v1127 = vmul.f32 %v1126, %v972
        %v1128 = vmul.f32 %v1126, %v973
        %1131 = vrot.lane.b32.xlu0 %v1127, 126
        %v1132 = vpop.permute.xlu0 %1131
        %1133 = vrot.lane.b32.xlu0 %v1128, 126
        %v1134 = vpop.permute.xlu0 %1133
        %v1137 = vadd.f32 %v1123, %v1132
        %v1138 = vadd.f32 %v1124, %v1134
        %s1139 = sld [smem:[#allocation4 + $0x27]]
        %v1140 = vstv %s1139
        %v1141 = vmul.f32 %v1140, %v972
        %v1142 = vmul.f32 %v1140, %v973
        %v1143 = vmul.f32 %v1140, %v974
        %v1144 = vadd.f32 %v1141, 0.0
        %v1145 = vadd.f32 %v1142, 0.0
        %v1146 = vadd.f32 %v1143, 0.0
        %s1147 = sld [smem:[#allocation4 + $0x28]]
        %v1148 = vstv %s1147
        %v1149 = vmul.f32 %v1148, %v972
        %v1150 = vmul.f32 %v1148, %v973
        %v1151 = vmul.f32 %v1148, %v974
        %1155 = vrot.lane.b32.xlu0 %v1149, 127
        %v1156 = vpop.permute.xlu0 %1155
        %1157 = vrot.lane.b32.xlu0 %v1150, 127
        %v1158 = vpop.permute.xlu0 %1157
        %1159 = vrot.lane.b32.xlu0 %v1151, 127
        %v1160 = vpop.permute.xlu0 %1159
        %v1164 = vadd.f32 %v1144, %v1156
        %v1165 = vadd.f32 %v1145, %v1158
        %v1166 = vadd.f32 %v1146, %v1160
        %s1167 = sld [smem:[#allocation4 + $0x29]]
        %v1168 = vstv %s1167
        %v1169 = vmul.f32 %v1168, %v972
        %v1170 = vmul.f32 %v1168, %v973
        %v1171 = vmul.f32 %v1168, %v974
        %1175 = vrot.lane.b32.xlu0 %v1169, 126
        %v1176 = vpop.permute.xlu0 %1175
        %1177 = vrot.lane.b32.xlu0 %v1170, 126
        %v1178 = vpop.permute.xlu0 %1177
        %1179 = vrot.lane.b32.xlu0 %v1171, 126
        %v1180 = vpop.permute.xlu0 %1179
        %v1184 = vadd.f32 %v1164, %v1176
        %v1185 = vadd.f32 %v1165, %v1178
        %v1186 = vadd.f32 %v1166, %v1180
        %s1187 = sld [smem:[#allocation4 + $0x2a]]
        %v1188 = vstv %s1187
        %v1189 = vmul.f32 %v1188, %v972
        %v1190 = vmul.f32 %v1188, %v973
        %v1191 = vmul.f32 %v1188, %v974
        %v1192 = vadd.f32 %v1189, 0.0
        %v1193 = vadd.f32 %v1190, 0.0
        %v1194 = vadd.f32 %v1191, 0.0
        %s1195 = sld [smem:[#allocation4 + $0x2b]]
        %v1196 = vstv %s1195
        %v1197 = vmul.f32 %v1196, %v972
        %v1198 = vmul.f32 %v1196, %v973
        %v1199 = vmul.f32 %v1196, %v974
        %1203 = vrot.lane.b32.xlu0 %v1197, 127
        %v1204 = vpop.permute.xlu0 %1203
        %1205 = vrot.lane.b32.xlu0 %v1198, 127
        %v1206 = vpop.permute.xlu0 %1205
        %1207 = vrot.lane.b32.xlu0 %v1199, 127
        %v1208 = vpop.permute.xlu0 %1207
        %v1212 = vadd.f32 %v1192, %v1204
        %v1213 = vadd.f32 %v1193, %v1206
        %v1214 = vadd.f32 %v1194, %v1208
        %s1215 = sld [smem:[#allocation4 + $0x2c]]
        %v1216 = vstv %s1215
        %v1217 = vmul.f32 %v1216, %v972
        %v1218 = vmul.f32 %v1216, %v973
        %v1219 = vmul.f32 %v1216, %v974
        %1223 = vrot.lane.b32.xlu0 %v1217, 126
        %v1224 = vpop.permute.xlu0 %1223
        %1225 = vrot.lane.b32.xlu0 %v1218, 126
        %v1226 = vpop.permute.xlu0 %1225
        %1227 = vrot.lane.b32.xlu0 %v1219, 126
        %v1228 = vpop.permute.xlu0 %1227
        %v1232 = vadd.f32 %v1212, %v1224
        %v1233 = vadd.f32 %v1213, %v1226
        %v1234 = vadd.f32 %v1214, %v1228
        %v1235 = vld [vmem:[%s519] sm:$0xff]
        %v1236 = vld [vmem:[%s519 + $0x8] sm:$0xff]
        %v1237 = vld [vmem:[%s519 + $0x10] sm:$0x3]
        %s1238 = sld [smem:[#allocation4 + $0x9]]
        %v1239 = vstv %s1238
        %v1240 = vmul.f32 %v1239, %v1235
        %v1241 = vmul.f32 %v1239, %v1236
        %v1242 = vadd.f32 %v1007, %v1240
        %v1243 = vadd.f32 %v1008, %v1241
        %s1244 = sld [smem:[#allocation4 + $0xa]]
        %v1245 = vstv %s1244
        %v1246 = vmul.f32 %v1245, %v1235
        %v1247 = vmul.f32 %v1245, %v1236
        %1250 = vrot.lane.b32.xlu0 %v1246, 127
        %v1251 = vpop.permute.xlu0 %1250
        %1252 = vrot.lane.b32.xlu0 %v1247, 127
        %v1253 = vpop.permute.xlu0 %1252
        %v1256 = vadd.f32 %v1242, %v1251
        %v1257 = vadd.f32 %v1243, %v1253
        %s1258 = sld [smem:[#allocation4 + $0xb]]
        %v1259 = vstv %s1258
        %v1260 = vmul.f32 %v1259, %v1235
        %v1261 = vmul.f32 %v1259, %v1236
        %1264 = vrot.lane.b32.xlu0 %v1260, 126
        %v1265 = vpop.permute.xlu0 %1264
        %1266 = vrot.lane.b32.xlu0 %v1261, 126
        %v1267 = vpop.permute.xlu0 %1266
        %v1270 = vadd.f32 %v1256, %v1265
        %v1271 = vadd.f32 %v1257, %v1267
        %s1272 = sld [smem:[#allocation4 + $0xc]]
        %v1273 = vstv %s1272
        %v1274 = vmul.f32 %v1273, %v1235
        %v1275 = vmul.f32 %v1273, %v1236
        %v1276 = vmul.f32 %v1273, %v1237
        %v1277 = vadd.f32 %v1054, %v1274
        %v1278 = vadd.f32 %v1055, %v1275
        %v1279 = vadd.f32 %v1056, %v1276
        %s1280 = sld [smem:[#allocation4 + $0xd]]
        %v1281 = vstv %s1280
        %v1282 = vmul.f32 %v1281, %v1235
        %v1283 = vmul.f32 %v1281, %v1236
        %v1284 = vmul.f32 %v1281, %v1237
        %1288 = vrot.lane.b32.xlu0 %v1282, 127
        %v1289 = vpop.permute.xlu0 %1288
        %1290 = vrot.lane.b32.xlu0 %v1283, 127
        %v1291 = vpop.permute.xlu0 %1290
        %1292 = vrot.lane.b32.xlu0 %v1284, 127
        %v1293 = vpop.permute.xlu0 %1292
        %v1297 = vadd.f32 %v1277, %v1289
        %v1298 = vadd.f32 %v1278, %v1291
        %v1299 = vadd.f32 %v1279, %v1293
        %s1300 = sld [smem:[#allocation4 + $0xe]]
        %v1301 = vstv %s1300
        %v1302 = vmul.f32 %v1301, %v1235
        %v1303 = vmul.f32 %v1301, %v1236
        %v1304 = vmul.f32 %v1301, %v1237
        %1308 = vrot.lane.b32.xlu0 %v1302, 126
        %v1309 = vpop.permute.xlu0 %1308
        %1310 = vrot.lane.b32.xlu0 %v1303, 126
        %v1311 = vpop.permute.xlu0 %1310
        %1312 = vrot.lane.b32.xlu0 %v1304, 126
        %v1313 = vpop.permute.xlu0 %1312
        %v1317 = vadd.f32 %v1297, %v1309
        %v1318 = vadd.f32 %v1298, %v1311
        %v1319 = vadd.f32 %v1299, %v1313
        %s1320 = sld [smem:[#allocation4 + $0xf]]
        %v1321 = vstv %s1320
        %v1322 = vmul.f32 %v1321, %v1235
        %v1323 = vmul.f32 %v1321, %v1236
        %v1324 = vmul.f32 %v1321, %v1237
        %v1325 = vadd.f32 %v1102, %v1322
        %v1326 = vadd.f32 %v1103, %v1323
        %v1327 = vadd.f32 %v1104, %v1324
        %s1328 = sld [smem:[#allocation4 + $0x10]]
        %v1329 = vstv %s1328
        %v1330 = vmul.f32 %v1329, %v1235
        %v1331 = vmul.f32 %v1329, %v1236
        %v1332 = vmul.f32 %v1329, %v1237
        %1336 = vrot.lane.b32.xlu0 %v1330, 127
        %v1337 = vpop.permute.xlu0 %1336
        %1338 = vrot.lane.b32.xlu0 %v1331, 127
        %v1339 = vpop.permute.xlu0 %1338
        %1340 = vrot.lane.b32.xlu0 %v1332, 127
        %v1341 = vpop.permute.xlu0 %1340
        %v1345 = vadd.f32 %v1325, %v1337
        %v1346 = vadd.f32 %v1326, %v1339
        %v1347 = vadd.f32 %v1327, %v1341
        %s1348 = sld [smem:[#allocation4 + $0x11]]
        %v1349 = vstv %s1348
        %v1350 = vmul.f32 %v1349, %v1235
        %v1351 = vmul.f32 %v1349, %v1236
        %v1352 = vmul.f32 %v1349, %v1237
        %1356 = vrot.lane.b32.xlu0 %v1350, 126
        %v1357 = vpop.permute.xlu0 %1356
        %1358 = vrot.lane.b32.xlu0 %v1351, 126
        %v1359 = vpop.permute.xlu0 %1358
        %1360 = vrot.lane.b32.xlu0 %v1352, 126
        %v1361 = vpop.permute.xlu0 %1360
        %v1365 = vadd.f32 %v1345, %v1357
        %v1366 = vadd.f32 %v1346, %v1359
        %v1367 = vadd.f32 %v1347, %v1361
        %s1368 = sld [smem:[#allocation4 + $0x2d]]
        %v1369 = vstv %s1368
        %v1370 = vmul.f32 %v1369, %v1235
        %v1371 = vmul.f32 %v1369, %v1236
        %v1372 = vadd.f32 %v1137, %v1370
        %v1373 = vadd.f32 %v1138, %v1371
        %s1374 = sld [smem:[#allocation4 + $0x2e]]
        %v1375 = vstv %s1374
        %v1376 = vmul.f32 %v1375, %v1235
        %v1377 = vmul.f32 %v1375, %v1236
        %1380 = vrot.lane.b32.xlu0 %v1376, 127
        %v1381 = vpop.permute.xlu0 %1380
        %1382 = vrot.lane.b32.xlu0 %v1377, 127
        %v1383 = vpop.permute.xlu0 %1382
        %v1386 = vadd.f32 %v1372, %v1381
        %v1387 = vadd.f32 %v1373, %v1383
        %s1388 = sld [smem:[#allocation4 + $0x2f]]
        %v1389 = vstv %s1388
        %v1390 = vmul.f32 %v1389, %v1235
        %v1391 = vmul.f32 %v1389, %v1236
        %1394 = vrot.lane.b32.xlu0 %v1390, 126
        %v1395 = vpop.permute.xlu0 %1394
        %1396 = vrot.lane.b32.xlu0 %v1391, 126
        %v1397 = vpop.permute.xlu0 %1396
        %v1400 = vadd.f32 %v1386, %v1395
        %v1401 = vadd.f32 %v1387, %v1397
        %s1402 = sld [smem:[#allocation4 + $0x30]]
        %v1403 = vstv %s1402
        %v1404 = vmul.f32 %v1403, %v1235
        %v1405 = vmul.f32 %v1403, %v1236
        %v1406 = vmul.f32 %v1403, %v1237
        %v1407 = vadd.f32 %v1184, %v1404
        %v1408 = vadd.f32 %v1185, %v1405
        %v1409 = vadd.f32 %v1186, %v1406
        %s1410 = sld [smem:[#allocation4 + $0x31]]
        %v1411 = vstv %s1410
        %v1412 = vmul.f32 %v1411, %v1235
        %v1413 = vmul.f32 %v1411, %v1236
        %v1414 = vmul.f32 %v1411, %v1237
        %1418 = vrot.lane.b32.xlu0 %v1412, 127
        %v1419 = vpop.permute.xlu0 %1418
        %1420 = vrot.lane.b32.xlu0 %v1413, 127
        %v1421 = vpop.permute.xlu0 %1420
        %1422 = vrot.lane.b32.xlu0 %v1414, 127
        %v1423 = vpop.permute.xlu0 %1422
        %v1427 = vadd.f32 %v1407, %v1419
        %v1428 = vadd.f32 %v1408, %v1421
        %v1429 = vadd.f32 %v1409, %v1423
        %s1430 = sld [smem:[#allocation4 + $0x32]]
        %v1431 = vstv %s1430
        %v1432 = vmul.f32 %v1431, %v1235
        %v1433 = vmul.f32 %v1431, %v1236
        %v1434 = vmul.f32 %v1431, %v1237
        %1438 = vrot.lane.b32.xlu0 %v1432, 126
        %v1439 = vpop.permute.xlu0 %1438
        %1440 = vrot.lane.b32.xlu0 %v1433, 126
        %v1441 = vpop.permute.xlu0 %1440
        %1442 = vrot.lane.b32.xlu0 %v1434, 126
        %v1443 = vpop.permute.xlu0 %1442
        %v1447 = vadd.f32 %v1427, %v1439
        %v1448 = vadd.f32 %v1428, %v1441
        %v1449 = vadd.f32 %v1429, %v1443
        %s1450 = sld [smem:[#allocation4 + $0x33]]
        %v1451 = vstv %s1450
        %v1452 = vmul.f32 %v1451, %v1235
        %v1453 = vmul.f32 %v1451, %v1236
        %v1454 = vmul.f32 %v1451, %v1237
        %v1455 = vadd.f32 %v1232, %v1452
        %v1456 = vadd.f32 %v1233, %v1453
        %v1457 = vadd.f32 %v1234, %v1454
        %s1458 = sld [smem:[#allocation4 + $0x34]]
        %v1459 = vstv %s1458
        %v1460 = vmul.f32 %v1459, %v1235
        %v1461 = vmul.f32 %v1459, %v1236
        %v1462 = vmul.f32 %v1459, %v1237
        %1466 = vrot.lane.b32.xlu0 %v1460, 127
        %v1467 = vpop.permute.xlu0 %1466
        %1468 = vrot.lane.b32.xlu0 %v1461, 127
        %v1469 = vpop.permute.xlu0 %1468
        %1470 = vrot.lane.b32.xlu0 %v1462, 127
        %v1471 = vpop.permute.xlu0 %1470
        %v1475 = vadd.f32 %v1455, %v1467
        %v1476 = vadd.f32 %v1456, %v1469
        %v1477 = vadd.f32 %v1457, %v1471
        %s1478 = sld [smem:[#allocation4 + $0x35]]
        %v1479 = vstv %s1478
        %v1480 = vmul.f32 %v1479, %v1235
        %v1481 = vmul.f32 %v1479, %v1236
        %v1482 = vmul.f32 %v1479, %v1237
        %1486 = vrot.lane.b32.xlu0 %v1480, 126
        %v1487 = vpop.permute.xlu0 %1486
        %1488 = vrot.lane.b32.xlu0 %v1481, 126
        %v1489 = vpop.permute.xlu0 %1488
        %1490 = vrot.lane.b32.xlu0 %v1482, 126
        %v1491 = vpop.permute.xlu0 %1490
        %v1495 = vadd.f32 %v1475, %v1487
        %v1496 = vadd.f32 %v1476, %v1489
        %v1497 = vadd.f32 %v1477, %v1491
        %v1498 = vld [vmem:[%s794] sm:$0xff]
        %v1499 = vld [vmem:[%s794 + $0x8] sm:$0xff]
        %v1500 = vld [vmem:[%s794 + $0x10] sm:$0x3]
        %s1501 = sld [smem:[#allocation4 + $0x12]]
        %v1502 = vstv %s1501
        %v1503 = vmul.f32 %v1502, %v1498
        %v1504 = vmul.f32 %v1502, %v1499
        %v1505 = vadd.f32 %v1270, %v1503
        %v1506 = vadd.f32 %v1271, %v1504
        %s1507 = sld [smem:[#allocation4 + $0x13]]
        %v1508 = vstv %s1507
        %v1509 = vmul.f32 %v1508, %v1498
        %v1510 = vmul.f32 %v1508, %v1499
        %1513 = vrot.lane.b32.xlu0 %v1509, 127
        %v1514 = vpop.permute.xlu0 %1513
        %1515 = vrot.lane.b32.xlu0 %v1510, 127
        %v1516 = vpop.permute.xlu0 %1515
        %v1519 = vadd.f32 %v1505, %v1514
        %v1520 = vadd.f32 %v1506, %v1516
        %s1521 = sld [smem:[#allocation4 + $0x14]]
        %v1522 = vstv %s1521
        %v1523 = vmul.f32 %v1522, %v1498
        %v1524 = vmul.f32 %v1522, %v1499
        %1527 = vrot.lane.b32.xlu0 %v1523, 126
        %v1528 = vpop.permute.xlu0 %1527
        %1529 = vrot.lane.b32.xlu0 %v1524, 126
        %v1530 = vpop.permute.xlu0 %1529
        %v1533 = vadd.f32 %v1519, %v1528
        %v1534 = vadd.f32 %v1520, %v1530
        %s1535 = sld [smem:[#allocation4 + $0x15]]
        %v1536 = vstv %s1535
        %v1537 = vmul.f32 %v1536, %v1498
        %v1538 = vmul.f32 %v1536, %v1499
        %v1539 = vmul.f32 %v1536, %v1500
        %v1540 = vadd.f32 %v1317, %v1537
        %v1541 = vadd.f32 %v1318, %v1538
        %v1542 = vadd.f32 %v1319, %v1539
        %s1543 = sld [smem:[#allocation4 + $0x16]]
        %v1544 = vstv %s1543
        %v1545 = vmul.f32 %v1544, %v1498
        %v1546 = vmul.f32 %v1544, %v1499
        %v1547 = vmul.f32 %v1544, %v1500
        %1551 = vrot.lane.b32.xlu0 %v1545, 127
        %v1552 = vpop.permute.xlu0 %1551
        %1553 = vrot.lane.b32.xlu0 %v1546, 127
        %v1554 = vpop.permute.xlu0 %1553
        %1555 = vrot.lane.b32.xlu0 %v1547, 127
        %v1556 = vpop.permute.xlu0 %1555
        %v1560 = vadd.f32 %v1540, %v1552
        %v1561 = vadd.f32 %v1541, %v1554
        %v1562 = vadd.f32 %v1542, %v1556
        %s1563 = sld [smem:[#allocation4 + $0x17]]
        %v1564 = vstv %s1563
        %v1565 = vmul.f32 %v1564, %v1498
        %v1566 = vmul.f32 %v1564, %v1499
        %v1567 = vmul.f32 %v1564, %v1500
        %1571 = vrot.lane.b32.xlu0 %v1565, 126
        %v1572 = vpop.permute.xlu0 %1571
        %1573 = vrot.lane.b32.xlu0 %v1566, 126
        %v1574 = vpop.permute.xlu0 %1573
        %1575 = vrot.lane.b32.xlu0 %v1567, 126
        %v1576 = vpop.permute.xlu0 %1575
        %v1580 = vadd.f32 %v1560, %v1572
        %v1581 = vadd.f32 %v1561, %v1574
        %v1582 = vadd.f32 %v1562, %v1576
        %s1583 = sld [smem:[#allocation4 + $0x18]]
        %v1584 = vstv %s1583
        %v1585 = vmul.f32 %v1584, %v1498
        %v1586 = vmul.f32 %v1584, %v1499
        %v1587 = vmul.f32 %v1584, %v1500
        %v1588 = vadd.f32 %v1365, %v1585
        %v1589 = vadd.f32 %v1366, %v1586
        %v1590 = vadd.f32 %v1367, %v1587
        %s1591 = sld [smem:[#allocation4 + $0x19]]
        %v1592 = vstv %s1591
        %v1593 = vmul.f32 %v1592, %v1498
        %v1594 = vmul.f32 %v1592, %v1499
        %v1595 = vmul.f32 %v1592, %v1500
        %1599 = vrot.lane.b32.xlu0 %v1593, 127
        %v1600 = vpop.permute.xlu0 %1599
        %1601 = vrot.lane.b32.xlu0 %v1594, 127
        %v1602 = vpop.permute.xlu0 %1601
        %1603 = vrot.lane.b32.xlu0 %v1595, 127
        %v1604 = vpop.permute.xlu0 %1603
        %v1608 = vadd.f32 %v1588, %v1600
        %v1609 = vadd.f32 %v1589, %v1602
        %v1610 = vadd.f32 %v1590, %v1604
        %s1611 = sld [smem:[#allocation4 + $0x1a]]
        %v1612 = vstv %s1611
        %v1613 = vmul.f32 %v1612, %v1498
        %v1614 = vmul.f32 %v1612, %v1499
        %v1615 = vmul.f32 %v1612, %v1500
        %1619 = vrot.lane.b32.xlu0 %v1613, 126
        %v1620 = vpop.permute.xlu0 %1619
        %1621 = vrot.lane.b32.xlu0 %v1614, 126
        %v1622 = vpop.permute.xlu0 %1621
        %1623 = vrot.lane.b32.xlu0 %v1615, 126
        %v1624 = vpop.permute.xlu0 %1623
        %v1628 = vadd.f32 %v1608, %v1620
        %v1629 = vadd.f32 %v1609, %v1622
        %v1630 = vadd.f32 %v1610, %v1624
        %s1631 = sld [smem:[#allocation4 + $0x36]]
        %v1632 = vstv %s1631
        %v1633 = vmul.f32 %v1632, %v1498
        %v1634 = vmul.f32 %v1632, %v1499
        %v1635 = vadd.f32 %v1400, %v1633
        %v1636 = vadd.f32 %v1401, %v1634
        %s1637 = sld [smem:[#allocation4 + $0x37]]
        %v1638 = vstv %s1637
        %v1639 = vmul.f32 %v1638, %v1498
        %v1640 = vmul.f32 %v1638, %v1499
        %1643 = vrot.lane.b32.xlu0 %v1639, 127
        %v1644 = vpop.permute.xlu0 %1643
        %1645 = vrot.lane.b32.xlu0 %v1640, 127
        %v1646 = vpop.permute.xlu0 %1645
        %v1649 = vadd.f32 %v1635, %v1644
        %v1650 = vadd.f32 %v1636, %v1646
        %s1651 = sld [smem:[#allocation4 + $0x38]]
        %v1652 = vstv %s1651
        %v1653 = vmul.f32 %v1652, %v1498
        %v1654 = vmul.f32 %v1652, %v1499
        %1657 = vrot.lane.b32.xlu0 %v1653, 126
        %v1658 = vpop.permute.xlu0 %1657
        %1659 = vrot.lane.b32.xlu0 %v1654, 126
        %v1660 = vpop.permute.xlu0 %1659
        %v1663 = vadd.f32 %v1649, %v1658
        %v1664 = vadd.f32 %v1650, %v1660
        %s1665 = sld [smem:[#allocation4 + $0x39]]
        %v1666 = vstv %s1665
        %v1667 = vmul.f32 %v1666, %v1498
        %v1668 = vmul.f32 %v1666, %v1499
        %v1669 = vmul.f32 %v1666, %v1500
        %v1670 = vadd.f32 %v1447, %v1667
        %v1671 = vadd.f32 %v1448, %v1668
        %v1672 = vadd.f32 %v1449, %v1669
        %s1673 = sld [smem:[#allocation4 + $0x3a]]
        %v1674 = vstv %s1673
        %v1675 = vmul.f32 %v1674, %v1498
        %v1676 = vmul.f32 %v1674, %v1499
        %v1677 = vmul.f32 %v1674, %v1500
        %1681 = vrot.lane.b32.xlu0 %v1675, 127
        %v1682 = vpop.permute.xlu0 %1681
        %1683 = vrot.lane.b32.xlu0 %v1676, 127
        %v1684 = vpop.permute.xlu0 %1683
        %1685 = vrot.lane.b32.xlu0 %v1677, 127
        %v1686 = vpop.permute.xlu0 %1685
        %v1690 = vadd.f32 %v1670, %v1682
        %v1691 = vadd.f32 %v1671, %v1684
        %v1692 = vadd.f32 %v1672, %v1686
        %s1693 = sld [smem:[#allocation4 + $0x3b]]
        %v1694 = vstv %s1693
        %v1695 = vmul.f32 %v1694, %v1498
        %v1696 = vmul.f32 %v1694, %v1499
        %v1697 = vmul.f32 %v1694, %v1500
        %1701 = vrot.lane.b32.xlu0 %v1695, 126
        %v1702 = vpop.permute.xlu0 %1701
        %1703 = vrot.lane.b32.xlu0 %v1696, 126
        %v1704 = vpop.permute.xlu0 %1703
        %1705 = vrot.lane.b32.xlu0 %v1697, 126
        %v1706 = vpop.permute.xlu0 %1705
        %v1710 = vadd.f32 %v1690, %v1702
        %v1711 = vadd.f32 %v1691, %v1704
        %v1712 = vadd.f32 %v1692, %v1706
        %s1713 = sld [smem:[#allocation4 + $0x3c]]
        %v1714 = vstv %s1713
        %v1715 = vmul.f32 %v1714, %v1498
        %v1716 = vmul.f32 %v1714, %v1499
        %v1717 = vmul.f32 %v1714, %v1500
        %v1718 = vadd.f32 %v1495, %v1715
        %v1719 = vadd.f32 %v1496, %v1716
        %v1720 = vadd.f32 %v1497, %v1717
        %s1721 = sld [smem:[#allocation4 + $0x3d]]
        %v1722 = vstv %s1721
        %v1723 = vmul.f32 %v1722, %v1498
        %v1724 = vmul.f32 %v1722, %v1499
        %v1725 = vmul.f32 %v1722, %v1500
        %1729 = vrot.lane.b32.xlu0 %v1723, 127
        %v1730 = vpop.permute.xlu0 %1729
        %1731 = vrot.lane.b32.xlu0 %v1724, 127
        %v1732 = vpop.permute.xlu0 %1731
        %1733 = vrot.lane.b32.xlu0 %v1725, 127
        %v1734 = vpop.permute.xlu0 %1733
        %v1738 = vadd.f32 %v1718, %v1730
        %v1739 = vadd.f32 %v1719, %v1732
        %v1740 = vadd.f32 %v1720, %v1734
        %s1741 = sld [smem:[#allocation4 + $0x3e]]
        %v1742 = vstv %s1741
        %v1743 = vmul.f32 %v1742, %v1498
        %v1744 = vmul.f32 %v1742, %v1499
        %v1745 = vmul.f32 %v1742, %v1500
        %1749 = vrot.lane.b32.xlu0 %v1743, 126
        %v1750 = vpop.permute.xlu0 %1749
        %1751 = vrot.lane.b32.xlu0 %v1744, 126
        %v1752 = vpop.permute.xlu0 %1751
        %1753 = vrot.lane.b32.xlu0 %v1745, 126
        %v1754 = vpop.permute.xlu0 %1753
        %v1758 = vadd.f32 %v1738, %v1750
        %v1759 = vadd.f32 %v1739, %v1752
        %v1760 = vadd.f32 %v1740, %v1754
        %v1761 = vld [vmem:[%s969] sm:$0xff]
        %v1762 = vld [vmem:[%s969 + $0x8] sm:$0xff]
        %v1763 = vld [vmem:[%s969 + $0x10] sm:$0x3]
        %s1764 = sld [smem:[#allocation4 + $0x1b]]
        %v1765 = vstv %s1764
        %v1766 = vmul.f32 %v1765, %v1761
        %v1767 = vmul.f32 %v1765, %v1762
        %v1768 = vadd.f32 %v1533, %v1766
        %v1769 = vadd.f32 %v1534, %v1767
        %s1770 = sld [smem:[#allocation4 + $0x1c]]
        %v1771 = vstv %s1770
        %v1772 = vmul.f32 %v1771, %v1761
        %v1773 = vmul.f32 %v1771, %v1762
        %1776 = vrot.lane.b32.xlu0 %v1772, 127
        %v1777 = vpop.permute.xlu0 %1776
        %1778 = vrot.lane.b32.xlu0 %v1773, 127
        %v1779 = vpop.permute.xlu0 %1778
        %v1782 = vadd.f32 %v1768, %v1777
        %v1783 = vadd.f32 %v1769, %v1779
        %s1784 = sld [smem:[#allocation4 + $0x1d]]
        %v1785 = vstv %s1784
        %v1786 = vmul.f32 %v1785, %v1761
        %v1787 = vmul.f32 %v1785, %v1762
        %1790 = vrot.lane.b32.xlu0 %v1786, 126
        %v1791 = vpop.permute.xlu0 %1790
        %1792 = vrot.lane.b32.xlu0 %v1787, 126
        %v1793 = vpop.permute.xlu0 %1792
        %v1796 = vadd.f32 %v1782, %v1791
        %v1797 = vadd.f32 %v1783, %v1793
        %s1798 = sld [smem:[#allocation4 + $0x1e]]
        %v1799 = vstv %s1798
        %v1800 = vmul.f32 %v1799, %v1761
        %v1801 = vmul.f32 %v1799, %v1762
        %v1802 = vmul.f32 %v1799, %v1763
        %v1803 = vadd.f32 %v1580, %v1800
        %v1804 = vadd.f32 %v1581, %v1801
        %v1805 = vadd.f32 %v1582, %v1802
        %s1806 = sld [smem:[#allocation4 + $0x1f]]
        %v1807 = vstv %s1806
        %v1808 = vmul.f32 %v1807, %v1761
        %v1809 = vmul.f32 %v1807, %v1762
        %v1810 = vmul.f32 %v1807, %v1763
        %1814 = vrot.lane.b32.xlu0 %v1808, 127
        %v1815 = vpop.permute.xlu0 %1814
        %1816 = vrot.lane.b32.xlu0 %v1809, 127
        %v1817 = vpop.permute.xlu0 %1816
        %1818 = vrot.lane.b32.xlu0 %v1810, 127
        %v1819 = vpop.permute.xlu0 %1818
        %v1823 = vadd.f32 %v1803, %v1815
        %v1824 = vadd.f32 %v1804, %v1817
        %v1825 = vadd.f32 %v1805, %v1819
        %s1826 = sld [smem:[#allocation4 + $0x20]]
        %v1827 = vstv %s1826
        %v1828 = vmul.f32 %v1827, %v1761
        %v1829 = vmul.f32 %v1827, %v1762
        %v1830 = vmul.f32 %v1827, %v1763
        %1834 = vrot.lane.b32.xlu0 %v1828, 126
        %v1835 = vpop.permute.xlu0 %1834
        %1836 = vrot.lane.b32.xlu0 %v1829, 126
        %v1837 = vpop.permute.xlu0 %1836
        %1838 = vrot.lane.b32.xlu0 %v1830, 126
        %v1839 = vpop.permute.xlu0 %1838
        %v1843 = vadd.f32 %v1823, %v1835
        %v1844 = vadd.f32 %v1824, %v1837
        %v1845 = vadd.f32 %v1825, %v1839
        %s1846 = sld [smem:[#allocation4 + $0x21]]
        %v1847 = vstv %s1846
        %v1848 = vmul.f32 %v1847, %v1761
        %v1849 = vmul.f32 %v1847, %v1762
        %v1850 = vmul.f32 %v1847, %v1763
        %v1851 = vadd.f32 %v1628, %v1848
        %v1852 = vadd.f32 %v1629, %v1849
        %v1853 = vadd.f32 %v1630, %v1850
        %s1854 = sld [smem:[#allocation4 + $0x22]]
        %v1855 = vstv %s1854
        %v1856 = vmul.f32 %v1855, %v1761
        %v1857 = vmul.f32 %v1855, %v1762
        %v1858 = vmul.f32 %v1855, %v1763
        %1862 = vrot.lane.b32.xlu0 %v1856, 127
        %v1863 = vpop.permute.xlu0 %1862
        %1864 = vrot.lane.b32.xlu0 %v1857, 127
        %v1865 = vpop.permute.xlu0 %1864
        %1866 = vrot.lane.b32.xlu0 %v1858, 127
        %v1867 = vpop.permute.xlu0 %1866
        %v1871 = vadd.f32 %v1851, %v1863
        %v1872 = vadd.f32 %v1852, %v1865
        %v1873 = vadd.f32 %v1853, %v1867
        %s1874 = sld [smem:[#allocation4 + $0x23]]
        %v1875 = vstv %s1874
        %v1876 = vmul.f32 %v1875, %v1761
        %v1877 = vmul.f32 %v1875, %v1762
        %v1878 = vmul.f32 %v1875, %v1763
        %1882 = vrot.lane.b32.xlu0 %v1876, 126
        %v1883 = vpop.permute.xlu0 %1882
        %1884 = vrot.lane.b32.xlu0 %v1877, 126
        %v1885 = vpop.permute.xlu0 %1884
        %1886 = vrot.lane.b32.xlu0 %v1878, 126
        %v1887 = vpop.permute.xlu0 %1886
        %v1891 = vadd.f32 %v1871, %v1883
        %v1892 = vadd.f32 %v1872, %v1885
        %v1893 = vadd.f32 %v1873, %v1887
        %s1894 = sld [smem:[#allocation4 + $0x3f]]
        %v1895 = vstv %s1894
        %v1896 = vmul.f32 %v1895, %v1761
        %v1897 = vmul.f32 %v1895, %v1762
        %v1898 = vadd.f32 %v1663, %v1896
        %v1899 = vadd.f32 %v1664, %v1897
        %s1900 = sld [smem:[#allocation4 + $0x40]]
        %v1901 = vstv %s1900
        %v1902 = vmul.f32 %v1901, %v1761
        %v1903 = vmul.f32 %v1901, %v1762
        %1906 = vrot.lane.b32.xlu0 %v1902, 127
        %v1907 = vpop.permute.xlu0 %1906
        %1908 = vrot.lane.b32.xlu0 %v1903, 127
        %v1909 = vpop.permute.xlu0 %1908
        %v1912 = vadd.f32 %v1898, %v1907
        %v1913 = vadd.f32 %v1899, %v1909
        %s1914 = sld [smem:[#allocation4 + $0x41]]
        %v1915 = vstv %s1914
        %v1916 = vmul.f32 %v1915, %v1761
        %v1917 = vmul.f32 %v1915, %v1762
        %1920 = vrot.lane.b32.xlu0 %v1916, 126
        %v1921 = vpop.permute.xlu0 %1920
        %1922 = vrot.lane.b32.xlu0 %v1917, 126
        %v1923 = vpop.permute.xlu0 %1922
        %v1926 = vadd.f32 %v1912, %v1921
        %v1927 = vadd.f32 %v1913, %v1923
        %s1928 = sld [smem:[#allocation4 + $0x42]]
        %v1929 = vstv %s1928
        %v1930 = vmul.f32 %v1929, %v1761
        %v1931 = vmul.f32 %v1929, %v1762
        %v1932 = vmul.f32 %v1929, %v1763
        %v1933 = vadd.f32 %v1710, %v1930
        %v1934 = vadd.f32 %v1711, %v1931
        %v1935 = vadd.f32 %v1712, %v1932
        %s1936 = sld [smem:[#allocation4 + $0x43]]
        %v1937 = vstv %s1936
        %v1938 = vmul.f32 %v1937, %v1761
        %v1939 = vmul.f32 %v1937, %v1762
        %v1940 = vmul.f32 %v1937, %v1763
        %1944 = vrot.lane.b32.xlu0 %v1938, 127
        %v1945 = vpop.permute.xlu0 %1944
        %1946 = vrot.lane.b32.xlu0 %v1939, 127
        %v1947 = vpop.permute.xlu0 %1946
        %1948 = vrot.lane.b32.xlu0 %v1940, 127
        %v1949 = vpop.permute.xlu0 %1948
        %v1953 = vadd.f32 %v1933, %v1945
        %v1954 = vadd.f32 %v1934, %v1947
        %v1955 = vadd.f32 %v1935, %v1949
        %s1956 = sld [smem:[#allocation4 + $0x44]]
        %v1957 = vstv %s1956
        %v1958 = vmul.f32 %v1957, %v1761
        %v1959 = vmul.f32 %v1957, %v1762
        %v1960 = vmul.f32 %v1957, %v1763
        %1964 = vrot.lane.b32.xlu0 %v1958, 126
        %v1965 = vpop.permute.xlu0 %1964
        %1966 = vrot.lane.b32.xlu0 %v1959, 126
        %v1967 = vpop.permute.xlu0 %1966
        %1968 = vrot.lane.b32.xlu0 %v1960, 126
        %v1969 = vpop.permute.xlu0 %1968
        %v1973 = vadd.f32 %v1953, %v1965
        %v1974 = vadd.f32 %v1954, %v1967
        %v1975 = vadd.f32 %v1955, %v1969
        %s1976 = sld [smem:[#allocation4 + $0x45]]
        %v1977 = vstv %s1976
        %v1978 = vmul.f32 %v1977, %v1761
        %v1979 = vmul.f32 %v1977, %v1762
        %v1980 = vmul.f32 %v1977, %v1763
        %v1981 = vadd.f32 %v1758, %v1978
        %v1982 = vadd.f32 %v1759, %v1979
        %v1983 = vadd.f32 %v1760, %v1980
        %s1984 = sld [smem:[#allocation4 + $0x46]]
        %v1985 = vstv %s1984
        %v1986 = vmul.f32 %v1985, %v1761
        %v1987 = vmul.f32 %v1985, %v1762
        %v1988 = vmul.f32 %v1985, %v1763
        %1992 = vrot.lane.b32.xlu0 %v1986, 127
        %v1993 = vpop.permute.xlu0 %1992
        %1994 = vrot.lane.b32.xlu0 %v1987, 127
        %v1995 = vpop.permute.xlu0 %1994
        %1996 = vrot.lane.b32.xlu0 %v1988, 127
        %v1997 = vpop.permute.xlu0 %1996
        %v2001 = vadd.f32 %v1981, %v1993
        %v2002 = vadd.f32 %v1982, %v1995
        %v2003 = vadd.f32 %v1983, %v1997
        %s2004 = sld [smem:[#allocation4 + $0x47]]
        %v2005 = vstv %s2004
        %v2006 = vmul.f32 %v2005, %v1761
        %v2007 = vmul.f32 %v2005, %v1762
        %v2008 = vmul.f32 %v2005, %v1763
        %2012 = vrot.lane.b32.xlu0 %v2006, 126
        %v2013 = vpop.permute.xlu0 %2012
        %2014 = vrot.lane.b32.xlu0 %v2007, 126
        %v2015 = vpop.permute.xlu0 %2014
        %2016 = vrot.lane.b32.xlu0 %v2008, 126
        %v2017 = vpop.permute.xlu0 %2016
        %v2021 = vadd.f32 %v2001, %v2013
        %v2022 = vadd.f32 %v2002, %v2015
        %v2023 = vadd.f32 %v2003, %v2017
        %vm2027 = vcmask 1046528
        %v2028 = vrot.slane %v1843, 1
        %v2029 = vrot.slane %v1844, 1
        %v2030 = vsel %vm2027, %v2028, %v2029
        %v2031 = vrot.slane %v1845, 1
        %v2032 = vsel %vm2027, %v2029, %v2031
        %v2035 = vadd.f32 %v1796, %v2030
        %v2036 = vadd.f32 %v1797, %v2032
        %vm2040 = vcmask 1045504
        %v2041 = vrot.slane %v1891, 2
        %v2042 = vrot.slane %v1892, 2
        %v2043 = vsel %vm2040, %v2041, %v2042
        %v2044 = vrot.slane %v1893, 2
        %v2045 = vsel %vm2040, %v2042, %v2044
        %v2048 = vadd.f32 %v2035, %v2043
        %v2049 = vadd.f32 %v2036, %v2045
        %s2050 = sld [smem:[#allocation8]]
        %v2051 = vstv %s2050
        %v2052 = vmul.f32 %v2048, %v2051
        %v2053 = vmul.f32 %v2049, %v2051
        %s2054 = sld [smem:[#allocation10]]
        %v2055 = vstv %s2054
        %v2056 = vadd.f32 %v2052, %v2055
        %v2057 = vadd.f32 %v2053, %v2055
        %v2058 = vmax.f32 %v2056, 0.0
        %v2059 = vmax.f32 %v2057, 0.0
        %2062 = vrot.lane.b32.xlu0 %v2058, 1
        %v2063 = vpop.permute.xlu0 %2062
        %2064 = vrot.lane.b32.xlu0 %v2059, 1
        %v2065 = vpop.permute.xlu0 %2064
        %2068 = vst.msk [vmem:[#allocation3 + $0x1] sm:$0xff] %vm505, %v2063
        %2069 = vst.msk [vmem:[#allocation3 + $0x9] sm:$0xff] %vm505, %v2065
        %v2073 = vrot.slane %v1973, 1
        %v2074 = vrot.slane %v1974, 1
        %v2075 = vsel %vm2027, %v2073, %v2074
        %v2076 = vrot.slane %v1975, 1
        %v2077 = vsel %vm2027, %v2074, %v2076
        %v2080 = vadd.f32 %v1926, %v2075
        %v2081 = vadd.f32 %v1927, %v2077
        %v2085 = vrot.slane %v2021, 2
        %v2086 = vrot.slane %v2022, 2
        %v2087 = vsel %vm2040, %v2085, %v2086
        %v2088 = vrot.slane %v2023, 2
        %v2089 = vsel %vm2040, %v2086, %v2088
        %v2092 = vadd.f32 %v2080, %v2087
        %v2093 = vadd.f32 %v2081, %v2089
        %s2094 = sld [smem:[#allocation8 + $0x1]]
        %v2095 = vstv %s2094
        %v2096 = vmul.f32 %v2092, %v2095
        %v2097 = vmul.f32 %v2093, %v2095
        %s2098 = sld [smem:[#allocation10 + $0x1]]
        %v2099 = vstv %s2098
        %v2100 = vadd.f32 %v2096, %v2099
        %v2101 = vadd.f32 %v2097, %v2099
        %v2102 = vmax.f32 %v2100, 0.0
        %v2103 = vmax.f32 %v2101, 0.0
        %2106 = vrot.lane.b32.xlu0 %v2102, 1
        %v2107 = vpop.permute.xlu0 %2106
        %2108 = vrot.lane.b32.xlu0 %v2103, 1
        %v2109 = vpop.permute.xlu0 %2108
        %s2112 = scalar_lea.vmem [#allocation3], 24
        %2113 = vst.msk [vmem:[%s2112 + $0x1] sm:$0xff] %vm505, %v2107
        %2114 = vst.msk [vmem:[%s2112 + $0x9] sm:$0xff] %vm505, %v2109
        %v2115 = vld [vmem:[#allocation3] sm:$0xff]
        %v2116 = vld [vmem:[#allocation3 + $0x8] sm:$0xff]
        %v2117 = vld [vmem:[#allocation3 + $0x10] sm:$0x3]
        %s2118 = sld [smem:[#allocation11]]
        %v2119 = vstv %s2118
        %v2120 = vmul.f32 %v2119, %v2115
        %v2121 = vmul.f32 %v2119, %v2116
        %v2122 = vadd.f32 %v2120, 0.0
        %v2123 = vadd.f32 %v2121, 0.0
        %s2124 = sld [smem:[#allocation11 + $0x1]]
        %v2125 = vstv %s2124
        %v2126 = vmul.f32 %v2125, %v2115
        %v2127 = vmul.f32 %v2125, %v2116
        %2130 = vrot.lane.b32.xlu0 %v2126, 127
        %v2131 = vpop.permute.xlu0 %2130
        %2132 = vrot.lane.b32.xlu0 %v2127, 127
        %v2133 = vpop.permute.xlu0 %2132
        %v2136 = vadd.f32 %v2122, %v2131
        %v2137 = vadd.f32 %v2123, %v2133
        %s2138 = sld [smem:[#allocation11 + $0x2]]
        %v2139 = vstv %s2138
        %v2140 = vmul.f32 %v2139, %v2115
        %v2141 = vmul.f32 %v2139, %v2116
        %2144 = vrot.lane.b32.xlu0 %v2140, 126
        %v2145 = vpop.permute.xlu0 %2144
        %2146 = vrot.lane.b32.xlu0 %v2141, 126
        %v2147 = vpop.permute.xlu0 %2146
        %v2150 = vadd.f32 %v2136, %v2145
        %v2151 = vadd.f32 %v2137, %v2147
        %s2152 = sld [smem:[#allocation11 + $0x3]]
        %v2153 = vstv %s2152
        %v2154 = vmul.f32 %v2153, %v2115
        %v2155 = vmul.f32 %v2153, %v2116
        %v2156 = vmul.f32 %v2153, %v2117
        %v2157 = vadd.f32 %v2154, 0.0
        %v2158 = vadd.f32 %v2155, 0.0
        %v2159 = vadd.f32 %v2156, 0.0
        %s2160 = sld [smem:[#allocation11 + $0x4]]
        %v2161 = vstv %s2160
        %v2162 = vmul.f32 %v2161, %v2115
        %v2163 = vmul.f32 %v2161, %v2116
        %v2164 = vmul.f32 %v2161, %v2117
        %2168 = vrot.lane.b32.xlu0 %v2162, 127
        %v2169 = vpop.permute.xlu0 %2168
        %2170 = vrot.lane.b32.xlu0 %v2163, 127
        %v2171 = vpop.permute.xlu0 %2170
        %2172 = vrot.lane.b32.xlu0 %v2164, 127
        %v2173 = vpop.permute.xlu0 %2172
        %v2177 = vadd.f32 %v2157, %v2169
        %v2178 = vadd.f32 %v2158, %v2171
        %v2179 = vadd.f32 %v2159, %v2173
        %s2180 = sld [smem:[#allocation11 + $0x5]]
        %v2181 = vstv %s2180
        %v2182 = vmul.f32 %v2181, %v2115
        %v2183 = vmul.f32 %v2181, %v2116
        %v2184 = vmul.f32 %v2181, %v2117
        %2188 = vrot.lane.b32.xlu0 %v2182, 126
        %v2189 = vpop.permute.xlu0 %2188
        %2190 = vrot.lane.b32.xlu0 %v2183, 126
        %v2191 = vpop.permute.xlu0 %2190
        %2192 = vrot.lane.b32.xlu0 %v2184, 126
        %v2193 = vpop.permute.xlu0 %2192
        %v2197 = vadd.f32 %v2177, %v2189
        %v2198 = vadd.f32 %v2178, %v2191
        %v2199 = vadd.f32 %v2179, %v2193
        %s2200 = sld [smem:[#allocation11 + $0x6]]
        %v2201 = vstv %s2200
        %v2202 = vmul.f32 %v2201, %v2115
        %v2203 = vmul.f32 %v2201, %v2116
        %v2204 = vmul.f32 %v2201, %v2117
        %v2205 = vadd.f32 %v2202, 0.0
        %v2206 = vadd.f32 %v2203, 0.0
        %v2207 = vadd.f32 %v2204, 0.0
        %s2208 = sld [smem:[#allocation11 + $0x7]]
        %v2209 = vstv %s2208
        %v2210 = vmul.f32 %v2209, %v2115
        %v2211 = vmul.f32 %v2209, %v2116
        %v2212 = vmul.f32 %v2209, %v2117
        %2216 = vrot.lane.b32.xlu0 %v2210, 127
        %v2217 = vpop.permute.xlu0 %2216
        %2218 = vrot.lane.b32.xlu0 %v2211, 127
        %v2219 = vpop.permute.xlu0 %2218
        %2220 = vrot.lane.b32.xlu0 %v2212, 127
        %v2221 = vpop.permute.xlu0 %2220
        %v2225 = vadd.f32 %v2205, %v2217
        %v2226 = vadd.f32 %v2206, %v2219
        %v2227 = vadd.f32 %v2207, %v2221
        %s2228 = sld [smem:[#allocation11 + $0x8]]
        %v2229 = vstv %s2228
        %v2230 = vmul.f32 %v2229, %v2115
        %v2231 = vmul.f32 %v2229, %v2116
        %v2232 = vmul.f32 %v2229, %v2117
        %2236 = vrot.lane.b32.xlu0 %v2230, 126
        %v2237 = vpop.permute.xlu0 %2236
        %2238 = vrot.lane.b32.xlu0 %v2231, 126
        %v2239 = vpop.permute.xlu0 %2238
        %2240 = vrot.lane.b32.xlu0 %v2232, 126
        %v2241 = vpop.permute.xlu0 %2240
        %v2245 = vadd.f32 %v2225, %v2237
        %v2246 = vadd.f32 %v2226, %v2239
        %v2247 = vadd.f32 %v2227, %v2241
        %s2248 = sld [smem:[#allocation11 + $0x12]]
        %v2249 = vstv %s2248
        %v2250 = vmul.f32 %v2249, %v2115
        %v2251 = vmul.f32 %v2249, %v2116
        %v2252 = vadd.f32 %v2250, 0.0
        %v2253 = vadd.f32 %v2251, 0.0
        %s2254 = sld [smem:[#allocation11 + $0x13]]
        %v2255 = vstv %s2254
        %v2256 = vmul.f32 %v2255, %v2115
        %v2257 = vmul.f32 %v2255, %v2116
        %2260 = vrot.lane.b32.xlu0 %v2256, 127
        %v2261 = vpop.permute.xlu0 %2260
        %2262 = vrot.lane.b32.xlu0 %v2257, 127
        %v2263 = vpop.permute.xlu0 %2262
        %v2266 = vadd.f32 %v2252, %v2261
        %v2267 = vadd.f32 %v2253, %v2263
        %s2268 = sld [smem:[#allocation11 + $0x14]]
        %v2269 = vstv %s2268
        %v2270 = vmul.f32 %v2269, %v2115
        %v2271 = vmul.f32 %v2269, %v2116
        %2274 = vrot.lane.b32.xlu0 %v2270, 126
        %v2275 = vpop.permute.xlu0 %2274
        %2276 = vrot.lane.b32.xlu0 %v2271, 126
        %v2277 = vpop.permute.xlu0 %2276
        %v2280 = vadd.f32 %v2266, %v2275
        %v2281 = vadd.f32 %v2267, %v2277
        %s2282 = sld [smem:[#allocation11 + $0x15]]
        %v2283 = vstv %s2282
        %v2284 = vmul.f32 %v2283, %v2115
        %v2285 = vmul.f32 %v2283, %v2116
        %v2286 = vmul.f32 %v2283, %v2117
        %v2287 = vadd.f32 %v2284, 0.0
        %v2288 = vadd.f32 %v2285, 0.0
        %v2289 = vadd.f32 %v2286, 0.0
        %s2290 = sld [smem:[#allocation11 + $0x16]]
        %v2291 = vstv %s2290
        %v2292 = vmul.f32 %v2291, %v2115
        %v2293 = vmul.f32 %v2291, %v2116
        %v2294 = vmul.f32 %v2291, %v2117
        %2298 = vrot.lane.b32.xlu0 %v2292, 127
        %v2299 = vpop.permute.xlu0 %2298
        %2300 = vrot.lane.b32.xlu0 %v2293, 127
        %v2301 = vpop.permute.xlu0 %2300
        %2302 = vrot.lane.b32.xlu0 %v2294, 127
        %v2303 = vpop.permute.xlu0 %2302
        %v2307 = vadd.f32 %v2287, %v2299
        %v2308 = vadd.f32 %v2288, %v2301
        %v2309 = vadd.f32 %v2289, %v2303
        %s2310 = sld [smem:[#allocation11 + $0x17]]
        %v2311 = vstv %s2310
        %v2312 = vmul.f32 %v2311, %v2115
        %v2313 = vmul.f32 %v2311, %v2116
        %v2314 = vmul.f32 %v2311, %v2117
        %2318 = vrot.lane.b32.xlu0 %v2312, 126
        %v2319 = vpop.permute.xlu0 %2318
        %2320 = vrot.lane.b32.xlu0 %v2313, 126
        %v2321 = vpop.permute.xlu0 %2320
        %2322 = vrot.lane.b32.xlu0 %v2314, 126
        %v2323 = vpop.permute.xlu0 %2322
        %v2327 = vadd.f32 %v2307, %v2319
        %v2328 = vadd.f32 %v2308, %v2321
        %v2329 = vadd.f32 %v2309, %v2323
        %s2330 = sld [smem:[#allocation11 + $0x18]]
        %v2331 = vstv %s2330
        %v2332 = vmul.f32 %v2331, %v2115
        %v2333 = vmul.f32 %v2331, %v2116
        %v2334 = vmul.f32 %v2331, %v2117
        %v2335 = vadd.f32 %v2332, 0.0
        %v2336 = vadd.f32 %v2333, 0.0
        %v2337 = vadd.f32 %v2334, 0.0
        %s2338 = sld [smem:[#allocation11 + $0x19]]
        %v2339 = vstv %s2338
        %v2340 = vmul.f32 %v2339, %v2115
        %v2341 = vmul.f32 %v2339, %v2116
        %v2342 = vmul.f32 %v2339, %v2117
        %2346 = vrot.lane.b32.xlu0 %v2340, 127
        %v2347 = vpop.permute.xlu0 %2346
        %2348 = vrot.lane.b32.xlu0 %v2341, 127
        %v2349 = vpop.permute.xlu0 %2348
        %2350 = vrot.lane.b32.xlu0 %v2342, 127
        %v2351 = vpop.permute.xlu0 %2350
        %v2355 = vadd.f32 %v2335, %v2347
        %v2356 = vadd.f32 %v2336, %v2349
        %v2357 = vadd.f32 %v2337, %v2351
        %s2358 = sld [smem:[#allocation11 + $0x1a]]
        %v2359 = vstv %s2358
        %v2360 = vmul.f32 %v2359, %v2115
        %v2361 = vmul.f32 %v2359, %v2116
        %v2362 = vmul.f32 %v2359, %v2117
        %2366 = vrot.lane.b32.xlu0 %v2360, 126
        %v2367 = vpop.permute.xlu0 %2366
        %2368 = vrot.lane.b32.xlu0 %v2361, 126
        %v2369 = vpop.permute.xlu0 %2368
        %2370 = vrot.lane.b32.xlu0 %v2362, 126
        %v2371 = vpop.permute.xlu0 %2370
        %v2375 = vadd.f32 %v2355, %v2367
        %v2376 = vadd.f32 %v2356, %v2369
        %v2377 = vadd.f32 %v2357, %v2371
        %s2378 = sld [smem:[#allocation11 + $0x24]]
        %v2379 = vstv %s2378
        %v2380 = vmul.f32 %v2379, %v2115
        %v2381 = vmul.f32 %v2379, %v2116
        %v2382 = vadd.f32 %v2380, 0.0
        %v2383 = vadd.f32 %v2381, 0.0
        %s2384 = sld [smem:[#allocation11 + $0x25]]
        %v2385 = vstv %s2384
        %v2386 = vmul.f32 %v2385, %v2115
        %v2387 = vmul.f32 %v2385, %v2116
        %2390 = vrot.lane.b32.xlu0 %v2386, 127
        %v2391 = vpop.permute.xlu0 %2390
        %2392 = vrot.lane.b32.xlu0 %v2387, 127
        %v2393 = vpop.permute.xlu0 %2392
        %v2396 = vadd.f32 %v2382, %v2391
        %v2397 = vadd.f32 %v2383, %v2393
        %s2398 = sld [smem:[#allocation11 + $0x26]]
        %v2399 = vstv %s2398
        %v2400 = vmul.f32 %v2399, %v2115
        %v2401 = vmul.f32 %v2399, %v2116
        %2404 = vrot.lane.b32.xlu0 %v2400, 126
        %v2405 = vpop.permute.xlu0 %2404
        %2406 = vrot.lane.b32.xlu0 %v2401, 126
        %v2407 = vpop.permute.xlu0 %2406
        %v2410 = vadd.f32 %v2396, %v2405
        %v2411 = vadd.f32 %v2397, %v2407
        %s2412 = sld [smem:[#allocation11 + $0x27]]
        %v2413 = vstv %s2412
        %v2414 = vmul.f32 %v2413, %v2115
        %v2415 = vmul.f32 %v2413, %v2116
        %v2416 = vmul.f32 %v2413, %v2117
        %v2417 = vadd.f32 %v2414, 0.0
        %v2418 = vadd.f32 %v2415, 0.0
        %v2419 = vadd.f32 %v2416, 0.0
        %s2420 = sld [smem:[#allocation11 + $0x28]]
        %v2421 = vstv %s2420
        %v2422 = vmul.f32 %v2421, %v2115
        %v2423 = vmul.f32 %v2421, %v2116
        %v2424 = vmul.f32 %v2421, %v2117
        %2428 = vrot.lane.b32.xlu0 %v2422, 127
        %v2429 = vpop.permute.xlu0 %2428
        %2430 = vrot.lane.b32.xlu0 %v2423, 127
        %v2431 = vpop.permute.xlu0 %2430
        %2432 = vrot.lane.b32.xlu0 %v2424, 127
        %v2433 = vpop.permute.xlu0 %2432
        %v2437 = vadd.f32 %v2417, %v2429
        %v2438 = vadd.f32 %v2418, %v2431
        %v2439 = vadd.f32 %v2419, %v2433
        %s2440 = sld [smem:[#allocation11 + $0x29]]
        %v2441 = vstv %s2440
        %v2442 = vmul.f32 %v2441, %v2115
        %v2443 = vmul.f32 %v2441, %v2116
        %v2444 = vmul.f32 %v2441, %v2117
        %2448 = vrot.lane.b32.xlu0 %v2442, 126
        %v2449 = vpop.permute.xlu0 %2448
        %2450 = vrot.lane.b32.xlu0 %v2443, 126
        %v2451 = vpop.permute.xlu0 %2450
        %2452 = vrot.lane.b32.xlu0 %v2444, 126
        %v2453 = vpop.permute.xlu0 %2452
        %v2457 = vadd.f32 %v2437, %v2449
        %v2458 = vadd.f32 %v2438, %v2451
        %v2459 = vadd.f32 %v2439, %v2453
        %s2460 = sld [smem:[#allocation11 + $0x2a]]
        %v2461 = vstv %s2460
        %v2462 = vmul.f32 %v2461, %v2115
        %v2463 = vmul.f32 %v2461, %v2116
        %v2464 = vmul.f32 %v2461, %v2117
        %v2465 = vadd.f32 %v2462, 0.0
        %v2466 = vadd.f32 %v2463, 0.0
        %v2467 = vadd.f32 %v2464, 0.0
        %s2468 = sld [smem:[#allocation11 + $0x2b]]
        %v2469 = vstv %s2468
        %v2470 = vmul.f32 %v2469, %v2115
        %v2471 = vmul.f32 %v2469, %v2116
        %v2472 = vmul.f32 %v2469, %v2117
        %2476 = vrot.lane.b32.xlu0 %v2470, 127
        %v2477 = vpop.permute.xlu0 %2476
        %2478 = vrot.lane.b32.xlu0 %v2471, 127
        %v2479 = vpop.permute.xlu0 %2478
        %2480 = vrot.lane.b32.xlu0 %v2472, 127
        %v2481 = vpop.permute.xlu0 %2480
        %v2485 = vadd.f32 %v2465, %v2477
        %v2486 = vadd.f32 %v2466, %v2479
        %v2487 = vadd.f32 %v2467, %v2481
        %s2488 = sld [smem:[#allocation11 + $0x2c]]
        %v2489 = vstv %s2488
        %v2490 = vmul.f32 %v2489, %v2115
        %v2491 = vmul.f32 %v2489, %v2116
        %v2492 = vmul.f32 %v2489, %v2117
        %2496 = vrot.lane.b32.xlu0 %v2490, 126
        %v2497 = vpop.permute.xlu0 %2496
        %2498 = vrot.lane.b32.xlu0 %v2491, 126
        %v2499 = vpop.permute.xlu0 %2498
        %2500 = vrot.lane.b32.xlu0 %v2492, 126
        %v2501 = vpop.permute.xlu0 %2500
        %v2505 = vadd.f32 %v2485, %v2497
        %v2506 = vadd.f32 %v2486, %v2499
        %v2507 = vadd.f32 %v2487, %v2501
        %s2508 = sld [smem:[#allocation11 + $0x36]]
        %v2509 = vstv %s2508
        %v2510 = vmul.f32 %v2509, %v2115
        %v2511 = vmul.f32 %v2509, %v2116
        %v2512 = vadd.f32 %v2510, 0.0
        %v2513 = vadd.f32 %v2511, 0.0
        %s2514 = sld [smem:[#allocation11 + $0x37]]
        %v2515 = vstv %s2514
        %v2516 = vmul.f32 %v2515, %v2115
        %v2517 = vmul.f32 %v2515, %v2116
        %2520 = vrot.lane.b32.xlu0 %v2516, 127
        %v2521 = vpop.permute.xlu0 %2520
        %2522 = vrot.lane.b32.xlu0 %v2517, 127
        %v2523 = vpop.permute.xlu0 %2522
        %v2526 = vadd.f32 %v2512, %v2521
        %v2527 = vadd.f32 %v2513, %v2523
        %s2528 = sld [smem:[#allocation11 + $0x38]]
        %v2529 = vstv %s2528
        %v2530 = vmul.f32 %v2529, %v2115
        %v2531 = vmul.f32 %v2529, %v2116
        %2534 = vrot.lane.b32.xlu0 %v2530, 126
        %v2535 = vpop.permute.xlu0 %2534
        %2536 = vrot.lane.b32.xlu0 %v2531, 126
        %v2537 = vpop.permute.xlu0 %2536
        %v2540 = vadd.f32 %v2526, %v2535
        %v2541 = vadd.f32 %v2527, %v2537
        %s2542 = sld [smem:[#allocation11 + $0x39]]
        %v2543 = vstv %s2542
        %v2544 = vmul.f32 %v2543, %v2115
        %v2545 = vmul.f32 %v2543, %v2116
        %v2546 = vmul.f32 %v2543, %v2117
        %v2547 = vadd.f32 %v2544, 0.0
        %v2548 = vadd.f32 %v2545, 0.0
        %v2549 = vadd.f32 %v2546, 0.0
        %s2550 = sld [smem:[#allocation11 + $0x3a]]
        %v2551 = vstv %s2550
        %v2552 = vmul.f32 %v2551, %v2115
        %v2553 = vmul.f32 %v2551, %v2116
        %v2554 = vmul.f32 %v2551, %v2117
        %2558 = vrot.lane.b32.xlu0 %v2552, 127
        %v2559 = vpop.permute.xlu0 %2558
        %2560 = vrot.lane.b32.xlu0 %v2553, 127
        %v2561 = vpop.permute.xlu0 %2560
        %2562 = vrot.lane.b32.xlu0 %v2554, 127
        %v2563 = vpop.permute.xlu0 %2562
        %v2567 = vadd.f32 %v2547, %v2559
        %v2568 = vadd.f32 %v2548, %v2561
        %v2569 = vadd.f32 %v2549, %v2563
        %s2570 = sld [smem:[#allocation11 + $0x3b]]
        %v2571 = vstv %s2570
        %v2572 = vmul.f32 %v2571, %v2115
        %v2573 = vmul.f32 %v2571, %v2116
        %v2574 = vmul.f32 %v2571, %v2117
        %2578 = vrot.lane.b32.xlu0 %v2572, 126
        %v2579 = vpop.permute.xlu0 %2578
        %2580 = vrot.lane.b32.xlu0 %v2573, 126
        %v2581 = vpop.permute.xlu0 %2580
        %2582 = vrot.lane.b32.xlu0 %v2574, 126
        %v2583 = vpop.permute.xlu0 %2582
        %v2587 = vadd.f32 %v2567, %v2579
        %v2588 = vadd.f32 %v2568, %v2581
        %v2589 = vadd.f32 %v2569, %v2583
        %s2590 = sld [smem:[#allocation11 + $0x3c]]
        %v2591 = vstv %s2590
        %v2592 = vmul.f32 %v2591, %v2115
        %v2593 = vmul.f32 %v2591, %v2116
        %v2594 = vmul.f32 %v2591, %v2117
        %v2595 = vadd.f32 %v2592, 0.0
        %v2596 = vadd.f32 %v2593, 0.0
        %v2597 = vadd.f32 %v2594, 0.0
        %s2598 = sld [smem:[#allocation11 + $0x3d]]
        %v2599 = vstv %s2598
        %v2600 = vmul.f32 %v2599, %v2115
        %v2601 = vmul.f32 %v2599, %v2116
        %v2602 = vmul.f32 %v2599, %v2117
        %2606 = vrot.lane.b32.xlu0 %v2600, 127
        %v2607 = vpop.permute.xlu0 %2606
        %2608 = vrot.lane.b32.xlu0 %v2601, 127
        %v2609 = vpop.permute.xlu0 %2608
        %2610 = vrot.lane.b32.xlu0 %v2602, 127
        %v2611 = vpop.permute.xlu0 %2610
        %v2615 = vadd.f32 %v2595, %v2607
        %v2616 = vadd.f32 %v2596, %v2609
        %v2617 = vadd.f32 %v2597, %v2611
        %s2618 = sld [smem:[#allocation11 + $0x3e]]
        %v2619 = vstv %s2618
        %v2620 = vmul.f32 %v2619, %v2115
        %v2621 = vmul.f32 %v2619, %v2116
        %v2622 = vmul.f32 %v2619, %v2117
        %2626 = vrot.lane.b32.xlu0 %v2620, 126
        %v2627 = vpop.permute.xlu0 %2626
        %2628 = vrot.lane.b32.xlu0 %v2621, 126
        %v2629 = vpop.permute.xlu0 %2628
        %2630 = vrot.lane.b32.xlu0 %v2622, 126
        %v2631 = vpop.permute.xlu0 %2630
        %v2635 = vadd.f32 %v2615, %v2627
        %v2636 = vadd.f32 %v2616, %v2629
        %v2637 = vadd.f32 %v2617, %v2631
        %v2638 = vld [vmem:[%s2112] sm:$0xff]
        %v2639 = vld [vmem:[%s2112 + $0x8] sm:$0xff]
        %v2640 = vld [vmem:[%s2112 + $0x10] sm:$0x3]
        %s2641 = sld [smem:[#allocation11 + $0x9]]
        %v2642 = vstv %s2641
        %v2643 = vmul.f32 %v2642, %v2638
        %v2644 = vmul.f32 %v2642, %v2639
        %v2645 = vadd.f32 %v2150, %v2643
        %v2646 = vadd.f32 %v2151, %v2644
        %s2647 = sld [smem:[#allocation11 + $0xa]]
        %v2648 = vstv %s2647
        %v2649 = vmul.f32 %v2648, %v2638
        %v2650 = vmul.f32 %v2648, %v2639
        %2653 = vrot.lane.b32.xlu0 %v2649, 127
        %v2654 = vpop.permute.xlu0 %2653
        %2655 = vrot.lane.b32.xlu0 %v2650, 127
        %v2656 = vpop.permute.xlu0 %2655
        %v2659 = vadd.f32 %v2645, %v2654
        %v2660 = vadd.f32 %v2646, %v2656
        %s2661 = sld [smem:[#allocation11 + $0xb]]
        %v2662 = vstv %s2661
        %v2663 = vmul.f32 %v2662, %v2638
        %v2664 = vmul.f32 %v2662, %v2639
        %2667 = vrot.lane.b32.xlu0 %v2663, 126
        %v2668 = vpop.permute.xlu0 %2667
        %2669 = vrot.lane.b32.xlu0 %v2664, 126
        %v2670 = vpop.permute.xlu0 %2669
        %v2673 = vadd.f32 %v2659, %v2668
        %v2674 = vadd.f32 %v2660, %v2670
        %s2675 = sld [smem:[#allocation11 + $0xc]]
        %v2676 = vstv %s2675
        %v2677 = vmul.f32 %v2676, %v2638
        %v2678 = vmul.f32 %v2676, %v2639
        %v2679 = vmul.f32 %v2676, %v2640
        %v2680 = vadd.f32 %v2197, %v2677
        %v2681 = vadd.f32 %v2198, %v2678
        %v2682 = vadd.f32 %v2199, %v2679
        %s2683 = sld [smem:[#allocation11 + $0xd]]
        %v2684 = vstv %s2683
        %v2685 = vmul.f32 %v2684, %v2638
        %v2686 = vmul.f32 %v2684, %v2639
        %v2687 = vmul.f32 %v2684, %v2640
        %2691 = vrot.lane.b32.xlu0 %v2685, 127
        %v2692 = vpop.permute.xlu0 %2691
        %2693 = vrot.lane.b32.xlu0 %v2686, 127
        %v2694 = vpop.permute.xlu0 %2693
        %2695 = vrot.lane.b32.xlu0 %v2687, 127
        %v2696 = vpop.permute.xlu0 %2695
        %v2700 = vadd.f32 %v2680, %v2692
        %v2701 = vadd.f32 %v2681, %v2694
        %v2702 = vadd.f32 %v2682, %v2696
        %s2703 = sld [smem:[#allocation11 + $0xe]]
        %v2704 = vstv %s2703
        %v2705 = vmul.f32 %v2704, %v2638
        %v2706 = vmul.f32 %v2704, %v2639
        %v2707 = vmul.f32 %v2704, %v2640
        %2711 = vrot.lane.b32.xlu0 %v2705, 126
        %v2712 = vpop.permute.xlu0 %2711
        %2713 = vrot.lane.b32.xlu0 %v2706, 126
        %v2714 = vpop.permute.xlu0 %2713
        %2715 = vrot.lane.b32.xlu0 %v2707, 126
        %v2716 = vpop.permute.xlu0 %2715
        %v2720 = vadd.f32 %v2700, %v2712
        %v2721 = vadd.f32 %v2701, %v2714
        %v2722 = vadd.f32 %v2702, %v2716
        %s2723 = sld [smem:[#allocation11 + $0xf]]
        %v2724 = vstv %s2723
        %v2725 = vmul.f32 %v2724, %v2638
        %v2726 = vmul.f32 %v2724, %v2639
        %v2727 = vmul.f32 %v2724, %v2640
        %v2728 = vadd.f32 %v2245, %v2725
        %v2729 = vadd.f32 %v2246, %v2726
        %v2730 = vadd.f32 %v2247, %v2727
        %s2731 = sld [smem:[#allocation11 + $0x10]]
        %v2732 = vstv %s2731
        %v2733 = vmul.f32 %v2732, %v2638
        %v2734 = vmul.f32 %v2732, %v2639
        %v2735 = vmul.f32 %v2732, %v2640
        %2739 = vrot.lane.b32.xlu0 %v2733, 127
        %v2740 = vpop.permute.xlu0 %2739
        %2741 = vrot.lane.b32.xlu0 %v2734, 127
        %v2742 = vpop.permute.xlu0 %2741
        %2743 = vrot.lane.b32.xlu0 %v2735, 127
        %v2744 = vpop.permute.xlu0 %2743
        %v2748 = vadd.f32 %v2728, %v2740
        %v2749 = vadd.f32 %v2729, %v2742
        %v2750 = vadd.f32 %v2730, %v2744
        %s2751 = sld [smem:[#allocation11 + $0x11]]
        %v2752 = vstv %s2751
        %v2753 = vmul.f32 %v2752, %v2638
        %v2754 = vmul.f32 %v2752, %v2639
        %v2755 = vmul.f32 %v2752, %v2640
        %2759 = vrot.lane.b32.xlu0 %v2753, 126
        %v2760 = vpop.permute.xlu0 %2759
        %2761 = vrot.lane.b32.xlu0 %v2754, 126
        %v2762 = vpop.permute.xlu0 %2761
        %2763 = vrot.lane.b32.xlu0 %v2755, 126
        %v2764 = vpop.permute.xlu0 %2763
        %v2768 = vadd.f32 %v2748, %v2760
        %v2769 = vadd.f32 %v2749, %v2762
        %v2770 = vadd.f32 %v2750, %v2764
        %s2771 = sld [smem:[#allocation11 + $0x1b]]
        %v2772 = vstv %s2771
        %v2773 = vmul.f32 %v2772, %v2638
        %v2774 = vmul.f32 %v2772, %v2639
        %v2775 = vadd.f32 %v2280, %v2773
        %v2776 = vadd.f32 %v2281, %v2774
        %s2777 = sld [smem:[#allocation11 + $0x1c]]
        %v2778 = vstv %s2777
        %v2779 = vmul.f32 %v2778, %v2638
        %v2780 = vmul.f32 %v2778, %v2639
        %2783 = vrot.lane.b32.xlu0 %v2779, 127
        %v2784 = vpop.permute.xlu0 %2783
        %2785 = vrot.lane.b32.xlu0 %v2780, 127
        %v2786 = vpop.permute.xlu0 %2785
        %v2789 = vadd.f32 %v2775, %v2784
        %v2790 = vadd.f32 %v2776, %v2786
        %s2791 = sld [smem:[#allocation11 + $0x1d]]
        %v2792 = vstv %s2791
        %v2793 = vmul.f32 %v2792, %v2638
        %v2794 = vmul.f32 %v2792, %v2639
        %2797 = vrot.lane.b32.xlu0 %v2793, 126
        %v2798 = vpop.permute.xlu0 %2797
        %2799 = vrot.lane.b32.xlu0 %v2794, 126
        %v2800 = vpop.permute.xlu0 %2799
        %v2803 = vadd.f32 %v2789, %v2798
        %v2804 = vadd.f32 %v2790, %v2800
        %s2805 = sld [smem:[#allocation11 + $0x1e]]
        %v2806 = vstv %s2805
        %v2807 = vmul.f32 %v2806, %v2638
        %v2808 = vmul.f32 %v2806, %v2639
        %v2809 = vmul.f32 %v2806, %v2640
        %v2810 = vadd.f32 %v2327, %v2807
        %v2811 = vadd.f32 %v2328, %v2808
        %v2812 = vadd.f32 %v2329, %v2809
        %s2813 = sld [smem:[#allocation11 + $0x1f]]
        %v2814 = vstv %s2813
        %v2815 = vmul.f32 %v2814, %v2638
        %v2816 = vmul.f32 %v2814, %v2639
        %v2817 = vmul.f32 %v2814, %v2640
        %2821 = vrot.lane.b32.xlu0 %v2815, 127
        %v2822 = vpop.permute.xlu0 %2821
        %2823 = vrot.lane.b32.xlu0 %v2816, 127
        %v2824 = vpop.permute.xlu0 %2823
        %2825 = vrot.lane.b32.xlu0 %v2817, 127
        %v2826 = vpop.permute.xlu0 %2825
        %v2830 = vadd.f32 %v2810, %v2822
        %v2831 = vadd.f32 %v2811, %v2824
        %v2832 = vadd.f32 %v2812, %v2826
        %s2833 = sld [smem:[#allocation11 + $0x20]]
        %v2834 = vstv %s2833
        %v2835 = vmul.f32 %v2834, %v2638
        %v2836 = vmul.f32 %v2834, %v2639
        %v2837 = vmul.f32 %v2834, %v2640
        %2841 = vrot.lane.b32.xlu0 %v2835, 126
        %v2842 = vpop.permute.xlu0 %2841
        %2843 = vrot.lane.b32.xlu0 %v2836, 126
        %v2844 = vpop.permute.xlu0 %2843
        %2845 = vrot.lane.b32.xlu0 %v2837, 126
        %v2846 = vpop.permute.xlu0 %2845
        %v2850 = vadd.f32 %v2830, %v2842
        %v2851 = vadd.f32 %v2831, %v2844
        %v2852 = vadd.f32 %v2832, %v2846
        %s2853 = sld [smem:[#allocation11 + $0x21]]
        %v2854 = vstv %s2853
        %v2855 = vmul.f32 %v2854, %v2638
        %v2856 = vmul.f32 %v2854, %v2639
        %v2857 = vmul.f32 %v2854, %v2640
        %v2858 = vadd.f32 %v2375, %v2855
        %v2859 = vadd.f32 %v2376, %v2856
        %v2860 = vadd.f32 %v2377, %v2857
        %s2861 = sld [smem:[#allocation11 + $0x22]]
        %v2862 = vstv %s2861
        %v2863 = vmul.f32 %v2862, %v2638
        %v2864 = vmul.f32 %v2862, %v2639
        %v2865 = vmul.f32 %v2862, %v2640
        %2869 = vrot.lane.b32.xlu0 %v2863, 127
        %v2870 = vpop.permute.xlu0 %2869
        %2871 = vrot.lane.b32.xlu0 %v2864, 127
        %v2872 = vpop.permute.xlu0 %2871
        %2873 = vrot.lane.b32.xlu0 %v2865, 127
        %v2874 = vpop.permute.xlu0 %2873
        %v2878 = vadd.f32 %v2858, %v2870
        %v2879 = vadd.f32 %v2859, %v2872
        %v2880 = vadd.f32 %v2860, %v2874
        %s2881 = sld [smem:[#allocation11 + $0x23]]
        %v2882 = vstv %s2881
        %v2883 = vmul.f32 %v2882, %v2638
        %v2884 = vmul.f32 %v2882, %v2639
        %v2885 = vmul.f32 %v2882, %v2640
        %2889 = vrot.lane.b32.xlu0 %v2883, 126
        %v2890 = vpop.permute.xlu0 %2889
        %2891 = vrot.lane.b32.xlu0 %v2884, 126
        %v2892 = vpop.permute.xlu0 %2891
        %2893 = vrot.lane.b32.xlu0 %v2885, 126
        %v2894 = vpop.permute.xlu0 %2893
        %v2898 = vadd.f32 %v2878, %v2890
        %v2899 = vadd.f32 %v2879, %v2892
        %v2900 = vadd.f32 %v2880, %v2894
        %s2901 = sld [smem:[#allocation11 + $0x2d]]
        %v2902 = vstv %s2901
        %v2903 = vmul.f32 %v2902, %v2638
        %v2904 = vmul.f32 %v2902, %v2639
        %v2905 = vadd.f32 %v2410, %v2903
        %v2906 = vadd.f32 %v2411, %v2904
        %s2907 = sld [smem:[#allocation11 + $0x2e]]
        %v2908 = vstv %s2907
        %v2909 = vmul.f32 %v2908, %v2638
        %v2910 = vmul.f32 %v2908, %v2639
        %2913 = vrot.lane.b32.xlu0 %v2909, 127
        %v2914 = vpop.permute.xlu0 %2913
        %2915 = vrot.lane.b32.xlu0 %v2910, 127
        %v2916 = vpop.permute.xlu0 %2915
        %v2919 = vadd.f32 %v2905, %v2914
        %v2920 = vadd.f32 %v2906, %v2916
        %s2921 = sld [smem:[#allocation11 + $0x2f]]
        %v2922 = vstv %s2921
        %v2923 = vmul.f32 %v2922, %v2638
        %v2924 = vmul.f32 %v2922, %v2639
        %2927 = vrot.lane.b32.xlu0 %v2923, 126
        %v2928 = vpop.permute.xlu0 %2927
        %2929 = vrot.lane.b32.xlu0 %v2924, 126
        %v2930 = vpop.permute.xlu0 %2929
        %v2933 = vadd.f32 %v2919, %v2928
        %v2934 = vadd.f32 %v2920, %v2930
        %s2935 = sld [smem:[#allocation11 + $0x30]]
        %v2936 = vstv %s2935
        %v2937 = vmul.f32 %v2936, %v2638
        %v2938 = vmul.f32 %v2936, %v2639
        %v2939 = vmul.f32 %v2936, %v2640
        %v2940 = vadd.f32 %v2457, %v2937
        %v2941 = vadd.f32 %v2458, %v2938
        %v2942 = vadd.f32 %v2459, %v2939
        %s2943 = sld [smem:[#allocation11 + $0x31]]
        %v2944 = vstv %s2943
        %v2945 = vmul.f32 %v2944, %v2638
        %v2946 = vmul.f32 %v2944, %v2639
        %v2947 = vmul.f32 %v2944, %v2640
        %2951 = vrot.lane.b32.xlu0 %v2945, 127
        %v2952 = vpop.permute.xlu0 %2951
        %2953 = vrot.lane.b32.xlu0 %v2946, 127
        %v2954 = vpop.permute.xlu0 %2953
        %2955 = vrot.lane.b32.xlu0 %v2947, 127
        %v2956 = vpop.permute.xlu0 %2955
        %v2960 = vadd.f32 %v2940, %v2952
        %v2961 = vadd.f32 %v2941, %v2954
        %v2962 = vadd.f32 %v2942, %v2956
        %s2963 = sld [smem:[#allocation11 + $0x32]]
        %v2964 = vstv %s2963
        %v2965 = vmul.f32 %v2964, %v2638
        %v2966 = vmul.f32 %v2964, %v2639
        %v2967 = vmul.f32 %v2964, %v2640
        %2971 = vrot.lane.b32.xlu0 %v2965, 126
        %v2972 = vpop.permute.xlu0 %2971
        %2973 = vrot.lane.b32.xlu0 %v2966, 126
        %v2974 = vpop.permute.xlu0 %2973
        %2975 = vrot.lane.b32.xlu0 %v2967, 126
        %v2976 = vpop.permute.xlu0 %2975
        %v2980 = vadd.f32 %v2960, %v2972
        %v2981 = vadd.f32 %v2961, %v2974
        %v2982 = vadd.f32 %v2962, %v2976
        %s2983 = sld [smem:[#allocation11 + $0x33]]
        %v2984 = vstv %s2983
        %v2985 = vmul.f32 %v2984, %v2638
        %v2986 = vmul.f32 %v2984, %v2639
        %v2987 = vmul.f32 %v2984, %v2640
        %v2988 = vadd.f32 %v2505, %v2985
        %v2989 = vadd.f32 %v2506, %v2986
        %v2990 = vadd.f32 %v2507, %v2987
        %s2991 = sld [smem:[#allocation11 + $0x34]]
        %v2992 = vstv %s2991
        %v2993 = vmul.f32 %v2992, %v2638
        %v2994 = vmul.f32 %v2992, %v2639
        %v2995 = vmul.f32 %v2992, %v2640
        %2999 = vrot.lane.b32.xlu0 %v2993, 127
        %v3000 = vpop.permute.xlu0 %2999
        %3001 = vrot.lane.b32.xlu0 %v2994, 127
        %v3002 = vpop.permute.xlu0 %3001
        %3003 = vrot.lane.b32.xlu0 %v2995, 127
        %v3004 = vpop.permute.xlu0 %3003
        %v3008 = vadd.f32 %v2988, %v3000
        %v3009 = vadd.f32 %v2989, %v3002
        %v3010 = vadd.f32 %v2990, %v3004
        %s3011 = sld [smem:[#allocation11 + $0x35]]
        %v3012 = vstv %s3011
        %v3013 = vmul.f32 %v3012, %v2638
        %v3014 = vmul.f32 %v3012, %v2639
        %v3015 = vmul.f32 %v3012, %v2640
        %3019 = vrot.lane.b32.xlu0 %v3013, 126
        %v3020 = vpop.permute.xlu0 %3019
        %3021 = vrot.lane.b32.xlu0 %v3014, 126
        %v3022 = vpop.permute.xlu0 %3021
        %3023 = vrot.lane.b32.xlu0 %v3015, 126
        %v3024 = vpop.permute.xlu0 %3023
        %v3028 = vadd.f32 %v3008, %v3020
        %v3029 = vadd.f32 %v3009, %v3022
        %v3030 = vadd.f32 %v3010, %v3024
        %s3031 = sld [smem:[#allocation11 + $0x3f]]
        %v3032 = vstv %s3031
        %v3033 = vmul.f32 %v3032, %v2638
        %v3034 = vmul.f32 %v3032, %v2639
        %v3035 = vadd.f32 %v2540, %v3033
        %v3036 = vadd.f32 %v2541, %v3034
        %s3037 = sld [smem:[#allocation11 + $0x40]]
        %v3038 = vstv %s3037
        %v3039 = vmul.f32 %v3038, %v2638
        %v3040 = vmul.f32 %v3038, %v2639
        %3043 = vrot.lane.b32.xlu0 %v3039, 127
        %v3044 = vpop.permute.xlu0 %3043
        %3045 = vrot.lane.b32.xlu0 %v3040, 127
        %v3046 = vpop.permute.xlu0 %3045
        %v3049 = vadd.f32 %v3035, %v3044
        %v3050 = vadd.f32 %v3036, %v3046
        %s3051 = sld [smem:[#allocation11 + $0x41]]
        %v3052 = vstv %s3051
        %v3053 = vmul.f32 %v3052, %v2638
        %v3054 = vmul.f32 %v3052, %v2639
        %3057 = vrot.lane.b32.xlu0 %v3053, 126
        %v3058 = vpop.permute.xlu0 %3057
        %3059 = vrot.lane.b32.xlu0 %v3054, 126
        %v3060 = vpop.permute.xlu0 %3059
        %v3063 = vadd.f32 %v3049, %v3058
        %v3064 = vadd.f32 %v3050, %v3060
        %s3065 = sld [smem:[#allocation11 + $0x42]]
        %v3066 = vstv %s3065
        %v3067 = vmul.f32 %v3066, %v2638
        %v3068 = vmul.f32 %v3066, %v2639
        %v3069 = vmul.f32 %v3066, %v2640
        %v3070 = vadd.f32 %v2587, %v3067
        %v3071 = vadd.f32 %v2588, %v3068
        %v3072 = vadd.f32 %v2589, %v3069
        %s3073 = sld [smem:[#allocation11 + $0x43]]
        %v3074 = vstv %s3073
        %v3075 = vmul.f32 %v3074, %v2638
        %v3076 = vmul.f32 %v3074, %v2639
        %v3077 = vmul.f32 %v3074, %v2640
        %3081 = vrot.lane.b32.xlu0 %v3075, 127
        %v3082 = vpop.permute.xlu0 %3081
        %3083 = vrot.lane.b32.xlu0 %v3076, 127
        %v3084 = vpop.permute.xlu0 %3083
        %3085 = vrot.lane.b32.xlu0 %v3077, 127
        %v3086 = vpop.permute.xlu0 %3085
        %v3090 = vadd.f32 %v3070, %v3082
        %v3091 = vadd.f32 %v3071, %v3084
        %v3092 = vadd.f32 %v3072, %v3086
        %s3093 = sld [smem:[#allocation11 + $0x44]]
        %v3094 = vstv %s3093
        %v3095 = vmul.f32 %v3094, %v2638
        %v3096 = vmul.f32 %v3094, %v2639
        %v3097 = vmul.f32 %v3094, %v2640
        %3101 = vrot.lane.b32.xlu0 %v3095, 126
        %v3102 = vpop.permute.xlu0 %3101
        %3103 = vrot.lane.b32.xlu0 %v3096, 126
        %v3104 = vpop.permute.xlu0 %3103
        %3105 = vrot.lane.b32.xlu0 %v3097, 126
        %v3106 = vpop.permute.xlu0 %3105
        %v3110 = vadd.f32 %v3090, %v3102
        %v3111 = vadd.f32 %v3091, %v3104
        %v3112 = vadd.f32 %v3092, %v3106
        %s3113 = sld [smem:[#allocation11 + $0x45]]
        %v3114 = vstv %s3113
        %v3115 = vmul.f32 %v3114, %v2638
        %v3116 = vmul.f32 %v3114, %v2639
        %v3117 = vmul.f32 %v3114, %v2640
        %v3118 = vadd.f32 %v2635, %v3115
        %v3119 = vadd.f32 %v2636, %v3116
        %v3120 = vadd.f32 %v2637, %v3117
        %s3121 = sld [smem:[#allocation11 + $0x46]]
        %v3122 = vstv %s3121
        %v3123 = vmul.f32 %v3122, %v2638
        %v3124 = vmul.f32 %v3122, %v2639
        %v3125 = vmul.f32 %v3122, %v2640
        %3129 = vrot.lane.b32.xlu0 %v3123, 127
        %v3130 = vpop.permute.xlu0 %3129
        %3131 = vrot.lane.b32.xlu0 %v3124, 127
        %v3132 = vpop.permute.xlu0 %3131
        %3133 = vrot.lane.b32.xlu0 %v3125, 127
        %v3134 = vpop.permute.xlu0 %3133
        %v3138 = vadd.f32 %v3118, %v3130
        %v3139 = vadd.f32 %v3119, %v3132
        %v3140 = vadd.f32 %v3120, %v3134
        %s3141 = sld [smem:[#allocation11 + $0x47]]
        %v3142 = vstv %s3141
        %v3143 = vmul.f32 %v3142, %v2638
        %v3144 = vmul.f32 %v3142, %v2639
        %v3145 = vmul.f32 %v3142, %v2640
        %3149 = vrot.lane.b32.xlu0 %v3143, 126
        %v3150 = vpop.permute.xlu0 %3149
        %3151 = vrot.lane.b32.xlu0 %v3144, 126
        %v3152 = vpop.permute.xlu0 %3151
        %3153 = vrot.lane.b32.xlu0 %v3145, 126
        %v3154 = vpop.permute.xlu0 %3153
        %v3158 = vadd.f32 %v3138, %v3150
        %v3159 = vadd.f32 %v3139, %v3152
        %v3160 = vadd.f32 %v3140, %v3154
        %v3164 = vrot.slane %v2720, 1
        %v3165 = vrot.slane %v2721, 1
        %v3166 = vsel %vm2027, %v3164, %v3165
        %v3167 = vrot.slane %v2722, 1
        %v3168 = vsel %vm2027, %v3165, %v3167
        %v3171 = vadd.f32 %v2673, %v3166
        %v3172 = vadd.f32 %v2674, %v3168
        %v3176 = vrot.slane %v2768, 2
        %v3177 = vrot.slane %v2769, 2
        %v3178 = vsel %vm2040, %v3176, %v3177
        %v3179 = vrot.slane %v2770, 2
        %v3180 = vsel %vm2040, %v3177, %v3179
        %v3183 = vadd.f32 %v3171, %v3178
        %v3184 = vadd.f32 %v3172, %v3180
        %s3185 = sld [smem:[#allocation13]]
        %v3186 = vstv %s3185
        %v3187 = vmul.f32 %v3183, %v3186
        %v3188 = vmul.f32 %v3184, %v3186
        %s3189 = sld [smem:[#allocation14]]
        %v3190 = vstv %s3189
        %v3191 = vadd.f32 %v3187, %v3190
        %v3192 = vadd.f32 %v3188, %v3190
        %v3193 = vmax.f32 %v3191, 0.0
        %v3194 = vmax.f32 %v3192, 0.0
        %vm3195 = vcmask 130048
        %3196 = vst.msk [vmem:[%s469] sm:$0xff] %vm3195, %v3193
        %3197 = vst.msk [vmem:[%s469 + $0x8] sm:$0xff] %vm3195, %v3194
        %v3201 = vrot.slane %v2850, 1
        %v3202 = vrot.slane %v2851, 1
        %v3203 = vsel %vm2027, %v3201, %v3202
        %v3204 = vrot.slane %v2852, 1
        %v3205 = vsel %vm2027, %v3202, %v3204
        %v3208 = vadd.f32 %v2803, %v3203
        %v3209 = vadd.f32 %v2804, %v3205
        %v3213 = vrot.slane %v2898, 2
        %v3214 = vrot.slane %v2899, 2
        %v3215 = vsel %vm2040, %v3213, %v3214
        %v3216 = vrot.slane %v2900, 2
        %v3217 = vsel %vm2040, %v3214, %v3216
        %v3220 = vadd.f32 %v3208, %v3215
        %v3221 = vadd.f32 %v3209, %v3217
        %s3222 = sld [smem:[#allocation13 + $0x1]]
        %v3223 = vstv %s3222
        %v3224 = vmul.f32 %v3220, %v3223
        %v3225 = vmul.f32 %v3221, %v3223
        %s3226 = sld [smem:[#allocation14 + $0x1]]
        %v3227 = vstv %s3226
        %v3228 = vadd.f32 %v3224, %v3227
        %v3229 = vadd.f32 %v3225, %v3227
        %v3230 = vmax.f32 %v3228, 0.0
        %v3231 = vmax.f32 %v3229, 0.0
        %s3232 = scalar_lea.vmem %s469, 16 [#allocation17]
        %3233 = vst.msk [vmem:[%s3232] sm:$0xff] %vm3195, %v3230
        %3234 = vst.msk [vmem:[%s3232 + $0x8] sm:$0xff] %vm3195, %v3231
        %v3238 = vrot.slane %v2980, 1
        %v3239 = vrot.slane %v2981, 1
        %v3240 = vsel %vm2027, %v3238, %v3239
        %v3241 = vrot.slane %v2982, 1
        %v3242 = vsel %vm2027, %v3239, %v3241
        %v3245 = vadd.f32 %v2933, %v3240
        %v3246 = vadd.f32 %v2934, %v3242
        %v3250 = vrot.slane %v3028, 2
        %v3251 = vrot.slane %v3029, 2
        %v3252 = vsel %vm2040, %v3250, %v3251
        %v3253 = vrot.slane %v3030, 2
        %v3254 = vsel %vm2040, %v3251, %v3253
        %v3257 = vadd.f32 %v3245, %v3252
        %v3258 = vadd.f32 %v3246, %v3254
        %s3259 = sld [smem:[#allocation13 + $0x2]]
        %v3260 = vstv %s3259
        %v3261 = vmul.f32 %v3257, %v3260
        %v3262 = vmul.f32 %v3258, %v3260
        %s3263 = sld [smem:[#allocation14 + $0x2]]
        %v3264 = vstv %s3263
        %v3265 = vadd.f32 %v3261, %v3264
        %v3266 = vadd.f32 %v3262, %v3264
        %v3267 = vmax.f32 %v3265, 0.0
        %v3268 = vmax.f32 %v3266, 0.0
        %s3269 = scalar_lea.vmem %s469, 32 [#allocation17]
        %3270 = vst.msk [vmem:[%s3269] sm:$0xff] %vm3195, %v3267
        %3271 = vst.msk [vmem:[%s3269 + $0x8] sm:$0xff] %vm3195, %v3268
        %v3275 = vrot.slane %v3110, 1
        %v3276 = vrot.slane %v3111, 1
        %v3277 = vsel %vm2027, %v3275, %v3276
        %v3278 = vrot.slane %v3112, 1
        %v3279 = vsel %vm2027, %v3276, %v3278
        %v3282 = vadd.f32 %v3063, %v3277
        %v3283 = vadd.f32 %v3064, %v3279
        %v3287 = vrot.slane %v3158, 2
        %v3288 = vrot.slane %v3159, 2
        %v3289 = vsel %vm2040, %v3287, %v3288
        %v3290 = vrot.slane %v3160, 2
        %v3291 = vsel %vm2040, %v3288, %v3290
        %v3294 = vadd.f32 %v3282, %v3289
        %v3295 = vadd.f32 %v3283, %v3291
        %s3296 = sld [smem:[#allocation13 + $0x3]]
        %v3297 = vstv %s3296
        %v3298 = vmul.f32 %v3294, %v3297
        %v3299 = vmul.f32 %v3295, %v3297
        %s3300 = sld [smem:[#allocation14 + $0x3]]
        %v3301 = vstv %s3300
        %v3302 = vadd.f32 %v3298, %v3301
        %v3303 = vadd.f32 %v3299, %v3301
        %v3304 = vmax.f32 %v3302, 0.0
        %v3305 = vmax.f32 %v3303, 0.0
        %s3306 = scalar_lea.vmem %s469, 48 [#allocation17]
        %3307 = vst.msk [vmem:[%s3306] sm:$0xff] %vm3195, %v3304
        %3308 = vst.msk [vmem:[%s3306 + $0x8] sm:$0xff] %vm3195, %v3305
        %s3309 = sand.u32 %s259, 1
        %s3310 = scalar_lea.sflag [#allocation6], %s3309
        %s3311 = sand.u32 %s259, 1
        %s3312 = smul.addr %s3311, 64
        %s3313 = scalar_lea.vmem [#allocation17], %s3312
        // Predicated region
        $region89: #{tpu_custom_call.1} parent=59 // pred_check
          %p3314 = pneg %p269
        $region90: #{tpu_custom_call.1} parent=59 // pred_check_branch
          %3316 = sbr.rel (%p3314) target = $region92
        $region91: #{tpu_custom_call.1} parent=59 // pred_region
          %s3318 = ssub.s32 1024, 1024
          %3319 = vsyncadd %s3310, %s3318
          %s3320 = smul.addr %s31, 8
          %s3321 = smul.addr %s3320, 128
          %s3322 = scalar_lea.hbm %s10, %s3321
          %s3323 = sshll.u32 %s3313, 4
          %s3324 = int_to_ptr.vmem [resolvable:$true] %s3323
          %3329 = dma.vmem_to_hbm [thread:$0]  %s3324, 1024, %s3322, %s3310, 128, 128, 8
        $region92: #{tpu_custom_call.1} parent=59 // pred_fallthru
          _
      $region60: #{tpu_custom_call.1} parent=5 // pred_fallthru
        _
      %p3330 = scmp.le.s32.totalorder 2, %s26
      // Predicated region
      $region93: #{tpu_custom_call.1} parent=5 // pred_check
        %p3331 = pneg %p3330
      $region94: #{tpu_custom_call.1} parent=5 // pred_check_branch
        %3333 = sbr.rel (%p3331) target = $region96
      $region95: #{tpu_custom_call.1} parent=5 // pred_region
        %s3334 = ssub.s32 %s26, 2
        // Predicated region
        $region97: #{tpu_custom_call.1} parent=95 // pred_check
          %p3335 = pneg %p275
        $region98: #{tpu_custom_call.1} parent=95 // pred_check_branch
          %3337 = sbr.rel (%p3335) target = $region100
        $region99: #{tpu_custom_call.1} parent=95 // pred_region
          %s3338 = sand.u32 %s260, 1
          %s3339 = scalar_lea.sflag [#allocation6], %s3338
          %s3340 = sand.u32 %s260, 1
          %s3341 = smul.addr %s3340, 64
          %s3342 = scalar_lea.vmem [#allocation17], %s3341
          %3343 = dma.done %s3339, 1024
        $region100: #{tpu_custom_call.1} parent=95 // pred_fallthru
          _
      $region96: #{tpu_custom_call.1} parent=5 // pred_fallthru
        _
    $region6: #{tpu_custom_call.1} parent=1 // loop_footer
      %s30 = sadd.s32 1, %s26
    $region7: #{tpu_custom_call.1} parent=1 // loop_footer_branch
      %25 = sbr.rel target = $region3
    $region8: #{tpu_custom_call.1} parent=1 // loop_exit
      _
    %3344 = vsyncpa [#allocation5], 1
    %s3345 = scalar_lea.sflag [#allocation5], 1
    %3346 = vsyncpa %s3345, 1
    %3347 = vsyncpa [#allocation6], 1
    %s3348 = scalar_lea.sflag [#allocation6], 1
    %3349 = vsyncpa %s3348, 1
    %3350 = vsyncpa [#allocation7], 1
    %s3351 = scalar_lea.sflag [#allocation7], 1
    %3352 = vsyncpa %s3351, 1
    %3353 = vsyncpa [#allocation9], 1
    %3354 = vsyncpa [#allocation12], 1
    %3355 = vsyncpa [#allocation15], 1

</llo_original>
